<compile_context>
chip_gen: v5e
topology: v5e:2x2
jax: 0.10.0
libtpu: 0.0.40
codegen_flags: <defaults>
</compile_context>

<pallas_src>
import jax
import jax.numpy as jnp
from jax.experimental import pallas as pl
from jax.experimental.pallas import tpu as pltpu


def _leaky_relu(x, slope=0.01):   # torch.nn.LeakyReLU() default slope inside attn_mlp
    return jnp.where(x > 0, x, slope * x)


def _round_up(a, b):
    return (a + b - 1) // b * b


# -----------------------------------------------------------------------------
# EGATLayer (+ fused eval BatchNorm1d + ReLU [+ final Linear]) kernel,
# tiled over edges with a resident accumulator.
# -----------------------------------------------------------------------------
def _build_egat_layer_kernel(fuse_linear):
    def kernel(x_ref,            # [N, Cin]  resident node features
               ea_ref,           # [TE, De]  edge-attr tile (bf16)
               src_ref,          # [TE, 1]   int32 source-index tile
               tgt_ref,          # [TE, 1]   int32 target-index tile
               tgtrow_ref,       # [1, TE]   int32 target-index tile (lane-major)
               ws_ref, bs_ref,   # lin_source (f32, used once)
               wt_ref, bt_ref,   # lin_target (f32, used once)
               w1t_ref,          # attn W1 target-block (f32, used once in the fold)
               w1s_ref,          # attn W1 source-block (bf16, per tile)
               wef_ref,          # folded  we @ w1e   (bf16, per tile)
               b1_ref,           # folded  b1 + be @ w1e (f32)
               w2_ref, b2_ref,   # attn_mlp[2] (bf16 / f32)
               w3r_ref, b3_ref,  # attn_mlp[4] as a [1, C/2] row (f32)
               scale_ref, shift_ref,   # fused eval BatchNorm1d scale / shift
               *rest):
        if fuse_linear:
            lin_w_ref, lin_b_ref, out_ref, xs_sc, xtw1_sc, xt_sc, acc_sc = rest
        else:
            out_ref, xs_sc, xtw1_sc, xt_sc = rest
            acc_sc = out_ref          # scatter accumulates directly into the
                                      # resident output block (constant index_map)

        f32, bf16 = jnp.float32, jnp.bfloat16
        pid = pl.program_id(0)

        # Node-side linears + folds + accumulator init: once, resident across tiles.
        @pl.when(pid == 0)
        def _init():
            x = x_ref[...]
            xs = jnp.dot(x, ws_ref[...], preferred_element_type=f32) + bs_ref[...]
            xt = jnp.dot(x, wt_ref[...], preferred_element_type=f32) + bt_ref[...]
            xs_sc[...] = xs.astype(bf16)                     # gather/scatter operand
            xt_sc[...] = xt                                  # residual (f32)
            xtw1_sc[...] = jnp.dot(xt, w1t_ref[...],
                                   preferred_element_type=f32).astype(bf16)
            acc_sc[...] = jnp.zeros_like(acc_sc)

        te = ea_ref.shape[0]
        n = xs_sc.shape[0]

        # One-hot gathers/scatter built in-kernel from int32 indices (no dense
        # [E, N] matrices ever touch HBM). 0/1 values are exact in bf16.
        node_iota = jax.lax.broadcasted_iota(jnp.int32, (te, n), 1)
        src_oh = (node_iota == src_ref[...]).astype(bf16)            # [TE, N]
        tgt_oh = (node_iota == tgt_ref[...]).astype(bf16)            # [TE, N]
        node_iota_t = jax.lax.broadcasted_iota(jnp.int32, (n, te), 0)
        tgt_oh_t = (node_iota_t == tgtrow_ref[...]).astype(bf16)     # [N, TE]

        xs_g = jnp.dot(src_oh, xs_sc[...], preferred_element_type=f32)   # [TE, C]
        h_t = jnp.dot(tgt_oh, xtw1_sc[...], preferred_element_type=f32)  # [TE, C]

        # Attention MLP with the edge linear and the target path folded away.
        h = (jnp.dot(xs_g.astype(bf16), w1s_ref[...], preferred_element_type=f32)
             + h_t
             + jnp.dot(ea_ref[...], wef_ref[...], preferred_element_type=f32)
             + b1_ref[...])
        h = _leaky_relu(h)
        h = _leaky_relu(jnp.dot(h.astype(bf16), w2_ref[...],
                                preferred_element_type=f32) + b2_ref[...])   # [TE, C/2]

        # Attention logit: VPU multiply + lane reduction (no 1-column MXU pass).
        e = jnp.sum(h * w3r_ref[...], axis=-1, keepdims=True) + b3_ref[...]  # [TE, 1]
        e = jnp.maximum(e, 0.0)                                              # relu(e)
        e = jnp.where(tgt_ref[...] < n, e, 0.0)          # explicitly mask padded edges

        # out.index_add_(0, target, e * xs_g) == tgt_oh_T @ (e * xs_g).
        weighted = (e * xs_g).astype(bf16)                                   # [TE, C]
        acc_sc[...] += jnp.dot(tgt_oh_t, weighted, preferred_element_type=f32)

        @pl.when(pid == pl.num_programs(0) - 1)
        def _finalize():
            y = acc_sc[...] + xt_sc[...]                         # EGATLayer output
            y = jnp.maximum(y * scale_ref[...] + shift_ref[...], 0.0)  # BN(eval)+ReLU
            if fuse_linear:                                      # fused final Linear
                out_ref[...] = (jnp.dot(y, lin_w_ref[...],
                                        preferred_element_type=f32) + lin_b_ref[...])
            else:
                out_ref[...] = y

    return kernel


def egat_layer_forward(x, edge_index, edge_attr, p, post_scale, post_shift,
                       *, lin_w=None, lin_b=None, edge_tile=256):
    fuse_linear = lin_w is not None
    n, cin = x.shape
    e_cnt, de = edge_attr.shape
    c = p["ws"].shape[1]
    c2 = p["w2"].shape[1]
    f32, bf16 = jnp.float32, jnp.bfloat16

    te = min(edge_tile, _round_up(e_cnt, 8))
    e_pad = _round_up(e_cnt, te)
    pad = e_pad - e_cnt

    source = edge_index[0].astype(jnp.int32)
    target = edge_index[1].astype(jnp.int32)
    if pad:
        edge_attr = jnp.pad(edge_attr, ((0, pad), (0, 0)))
        source = jnp.pad(source, (0, pad))                     # gathers node 0, but...
        target = jnp.pad(target, (0, pad), constant_values=n)  # ...out-of-range target
                                                               # + explicit e mask.
    ea_bf16 = edge_attr.astype(bf16)
    src_col = source.reshape(e_pad, 1)
    tgt_col = target.reshape(e_pad, 1)
    tgt_row = target.reshape(1, e_pad)

    # Algebraic folds (wrapper-side, f32), then cast per-tile MXU weights to bf16.
    we_fold = (p["we"] @ p["w1e"]).astype(bf16)                # [De, C]
    b1_fold = p["b1"] + p["be"] @ p["w1e"]                     # [1, C]
    w3_row = p["w3"].T                                         # [1, C/2]

    weights = [p["ws"], p["bs"], p["wt"], p["bt"], p["w1t"],
               p["w1s"].astype(bf16), we_fold, b1_fold,
               p["w2"].astype(bf16), p["b2"], w3_row, p["b3"],
               post_scale, post_shift]
    if fuse_linear:
        weights += [lin_w, lin_b]
    out_cols = lin_w.shape[1] if fuse_linear else c

    in_specs = (
        [pl.BlockSpec((n, cin), lambda e: (0, 0)),    # x, resident
         pl.BlockSpec((te, de), lambda e: (e, 0)),    # edge_attr tile
         pl.BlockSpec((te, 1), lambda e: (e, 0)),     # source idx tile
         pl.BlockSpec((te, 1), lambda e: (e, 0)),     # target idx tile
         pl.BlockSpec((1, te), lambda e: (0, e))]     # target idx tile (lane-major)
        + [pl.BlockSpec(w.shape, lambda e: (0, 0)) for w in weights]  # resident params
    )
    out_specs = pl.BlockSpec((n, out_cols), lambda e: (0, 0))   # resident block

    scratch = [pltpu.VMEM((n, c), bf16),    # xs_sc
               pltpu.VMEM((n, c), bf16),    # xtw1_sc
               pltpu.VMEM((n, c), f32)]     # xt_sc (residual)
    if fuse_linear:
        scratch += [pltpu.VMEM((n, c), f32)]   # acc_sc (out_ref is [N, out_cols])

    flops = 2 * (2 * n * cin * c + n * c * c      # node-side precompute (once)
                 + 2 * e_pad * n * c              # one-hot gathers
                 + e_pad * c * c                  # attn W1 source block
                 + e_pad * de * c                 # folded edge contribution
                 + e_pad * c * c2                 # attn W2
                 + e_pad * c2                     # attn logit reduce
                 + e_pad * n * c)                 # scatter
    if fuse_linear:
        flops += 2 * n * c * out_cols
    param_bytes = sum(int(w.size) * w.dtype.itemsize for w in weights)
    bytes_accessed = (4 * n * cin + 2 * e_pad * de + 3 * 4 * e_pad
                      + 4 * n * out_cols + param_bytes)

    return pl.pallas_call(
        _build_egat_layer_kernel(fuse_linear),
        out_shape=jax.ShapeDtypeStruct((n, out_cols), f32),
        grid_spec=pltpu.PrefetchScalarGridSpec(
            num_scalar_prefetch=0,
            grid=(e_pad // te,),
            in_specs=in_specs,
            out_specs=out_specs,
            scratch_shapes=scratch),
        compiler_params=pltpu.CompilerParams(
            dimension_semantics=("arbitrary",),      # loop-carried scatter accumulator
            vmem_limit_bytes=32 * 1024 * 1024),      # safe on v5e/v6e/v7x scoped VMEM
        cost_estimate=pl.CostEstimate(flops=int(flops), transcendentals=0,
                                      bytes_accessed=int(bytes_accessed)),
    )(x, ea_bf16, src_col, tgt_col, tgt_row, *weights)


# -----------------------------------------------------------------------------
# Full EGAT forward (eval mode). The final Linear is fused into conv2's finalize.
# -----------------------------------------------------------------------------
def egat_forward(x, edge_index, edge_attr, params):
    h = egat_layer_forward(x, edge_index, edge_attr, params["conv1"],
                           params["bn1_scale"], params["bn1_shift"])
    # TODO(synk): Dropout(0.2) is identity in eval mode; training-mode dropout RNG
    # and the physics loss (torch.autograd.grad w.r.t. inputs) are not translated.
    return egat_layer_forward(h, edge_index, edge_attr, params["conv2"],
                              params["bn2_scale"], params["bn2_shift"],
                              lin_w=params["lin_w"], lin_b=params["lin_b"])


# -----------------------------------------------------------------------------
# Parameters (PyTorch-Linear-style deterministic init) and pure-JAX f32 reference.
# -----------------------------------------------------------------------------
def init_linear(key, fan_in, fan_out):
    kw, kb = jax.random.split(key)
    bound = 1.0 / float(fan_in) ** 0.5
    w = jax.random.uniform(kw, (fan_in, fan_out), jnp.float32, -bound, bound)
    b = jax.random.uniform(kb, (1, fan_out), jnp.float32, -bound, bound)
    return w, b


def make_layer_params(key, in_channels, out_channels, edge_dim):
    c = out_channels
    keys = jax.random.split(key, 6)
    ws, bs = init_linear(keys[0], in_channels, c)       # lin_source
    wt, bt = init_linear(keys[1], in_channels, c)       # lin_target
    we, be = init_linear(keys[2], edge_dim, c)          # lin_edge
    w1, b1 = init_linear(keys[3], 3 * c, c)             # attn_mlp[0]
    w2, b2 = init_linear(keys[4], c, max(c // 2, 1))    # attn_mlp[2]
    w3, b3 = init_linear(keys[5], max(c // 2, 1), 1)    # attn_mlp[4]
    # W1 split along its input dim (3C) to match the [xs_g | xt_g | et] concat order.
    return dict(ws=ws, bs=bs, wt=wt, bt=bt, we=we, be=be,
                w1s=w1[:c], w1t=w1[c:2 * c], w1e=w1[2 * c:], b1=b1,
                w2=w2, b2=b2, w3=w3, b3=b3)


def make_params(key, in_channels, hidden_channels, out_channels, edge_dim):
    k1, k2, k3 = jax.random.split(key, 3)
    conv1 = make_layer_params(k1, in_channels, hidden_channels, edge_dim)
    conv2 = make_layer_params(k2, hidden_channels, hidden_channels, edge_dim)
    lin_w, lin_b = init_linear(k3, hidden_channels, out_channels)
    # Freshly-constructed BatchNorm1d in eval mode: gamma=1, beta=0, mean=0, var=1.
    eps = 1e-5
    gamma = jnp.ones((1, hidden_channels), jnp.float32)
    beta = jnp.zeros((1, hidden_channels), jnp.float32)
    mean = jnp.zeros((1, hidden_channels), jnp.float32)
    var = jnp.ones((1, hidden_channels), jnp.float32)
    scale = gamma / jnp.sqrt(var + eps)
    shift = beta - mean * scale
    return dict(conv1=conv1, conv2=conv2, lin_w=lin_w, lin_b=lin_b,
                bn1_scale=scale, bn1_shift=shift, bn2_scale=scale, bn2_shift=shift)


def egat_layer_reference(x, edge_index, edge_attr, p, post_scale, post_shift):
    source, target = edge_index[0], edge_index[1]
    xs = x @ p["ws"] + p["bs"]
    xt = x @ p["wt"] + p["bt"]
    et = edge_attr @ p["we"] + p["be"]
    xs_g, xt_g = xs[source], xt[target]
    w1 = jnp.concatenate([p["w1s"], p["w1t"], p["w1e"]], axis=0)
    h = _leaky_relu(jnp.concatenate([xs_g, xt_g, et], axis=1) @ w1 + p["b1"])
    h = _leaky_relu(h @ p["w2"] + p["b2"])
    e = jnp.maximum(h @ p["w3"] + p["b3"], 0.0)                 # [E, 1]
    out = jnp.zeros_like(xs).at[target].add(e * xs_g)
    y = out + xt
    return jnp.maximum(y * post_scale + post_shift, 0.0)        # BN(eval) + ReLU


def egat_reference(x, edge_index, edge_attr, params):
    h = egat_layer_reference(x, edge_index, edge_attr, params["conv1"],
                             params["bn1_scale"], params["bn1_shift"])
    h = egat_layer_reference(h, edge_index, edge_attr, params["conv2"],
                             params["bn2_scale"], params["bn2_shift"])
    return h @ params["lin_w"] + params["lin_b"]


if __name__ == "__main__":
    # Small synthetic graph; lane-dense hidden width (128).
    N, E = 128, 500
    IN_CH, HIDDEN, OUT_CH, EDGE_DIM = 16, 128, 8, 8

    key = jax.random.PRNGKey(0)
    kx, ke, ksrc, ktgt, kparam = jax.random.split(key, 5)

    x = jax.random.normal(kx, (N, IN_CH), jnp.float32)
    edge_attr = jax.random.normal(ke, (E, EDGE_DIM), jnp.float32)
    edge_index = jnp.stack([
        jax.random.randint(ksrc, (E,), 0, N),
        jax.random.randint(ktgt, (E,), 0, N),
    ], axis=0)

    params = make_params(kparam, IN_CH, HIDDEN, OUT_CH, EDGE_DIM)

    out = jax.block_until_ready(egat_forward(x, edge_index, edge_attr, params))
    ref = egat_reference(x, edge_index, edge_attr, params)

    assert out.shape == (N, OUT_CH)
    # bf16 MXU operands (f32 accumulation) plus tile-wise scatter order introduce
    # small rounding differences vs. the pure-f32 reference; tolerance set accordingly.
    assert jnp.allclose(out, ref, atol=5e-2, rtol=5e-2), "mismatch vs reference"

    print("KERNEL_OK")
</pallas_src>

<mosaic_0001>
module attributes {stable_mosaic.version = 11 : i64} {
  func.func @kernel(%arg0: i32, %arg1: memref<128x16xf32, #tpu.memory_space<vmem>>, %arg2: memref<256x8xbf16, #tpu.memory_space<vmem>>, %arg3: memref<256x1xi32, #tpu.memory_space<vmem>>, %arg4: memref<256x1xi32, #tpu.memory_space<vmem>>, %arg5: memref<1x256xi32, #tpu.memory_space<vmem>>, %arg6: memref<16x128xf32, #tpu.memory_space<vmem>>, %arg7: memref<1x128xf32, #tpu.memory_space<vmem>>, %arg8: memref<16x128xf32, #tpu.memory_space<vmem>>, %arg9: memref<1x128xf32, #tpu.memory_space<vmem>>, %arg10: memref<128x128xf32, #tpu.memory_space<vmem>>, %arg11: memref<128x128xbf16, #tpu.memory_space<vmem>>, %arg12: memref<8x128xbf16, #tpu.memory_space<vmem>>, %arg13: memref<1x128xf32, #tpu.memory_space<vmem>>, %arg14: memref<128x64xbf16, #tpu.memory_space<vmem>>, %arg15: memref<1x64xf32, #tpu.memory_space<vmem>>, %arg16: memref<1x64xf32, #tpu.memory_space<vmem>>, %arg17: memref<1x1xf32, #tpu.memory_space<vmem>>, %arg18: memref<1x128xf32, #tpu.memory_space<vmem>>, %arg19: memref<1x128xf32, #tpu.memory_space<vmem>>, %arg20: memref<128x128xf32, #tpu.memory_space<vmem>>, %arg21: memref<128x128xbf16, #tpu.memory_space<vmem>>, %arg22: memref<128x128xbf16, #tpu.memory_space<vmem>>, %arg23: memref<128x128xf32, #tpu.memory_space<vmem>>) attributes {dimension_semantics = [#tpu.dimension_semantics<arbitrary>], iteration_bounds = array<i64: 2>, scalar_prefetch = 0 : i64, scratch_operands = 3 : i64, tpu.core_type = #tpu.core_type<tc>, window_params = [{pipeline_mode = #tpu.pipeline_mode<synchronous>, transform_indices = @transform_0, window_bounds = array<i64: 128, 16>}, {transform_indices = @transform_1, window_bounds = array<i64: 256, 8>}, {transform_indices = @transform_2, window_bounds = array<i64: 256, 1>}, {transform_indices = @transform_3, window_bounds = array<i64: 256, 1>}, {transform_indices = @transform_4, window_bounds = array<i64: 1, 256>}, {pipeline_mode = #tpu.pipeline_mode<synchronous>, transform_indices = @transform_5, window_bounds = array<i64: 16, 128>}, {pipeline_mode = #tpu.pipeline_mode<synchronous>, transform_indices = @transform_6, window_bounds = array<i64: 1, 128>}, {pipeline_mode = #tpu.pipeline_mode<synchronous>, transform_indices = @transform_7, window_bounds = array<i64: 16, 128>}, {pipeline_mode = #tpu.pipeline_mode<synchronous>, transform_indices = @transform_8, window_bounds = array<i64: 1, 128>}, {pipeline_mode = #tpu.pipeline_mode<synchronous>, transform_indices = @transform_9, window_bounds = array<i64: 128, 128>}, {pipeline_mode = #tpu.pipeline_mode<synchronous>, transform_indices = @transform_10, window_bounds = array<i64: 128, 128>}, {pipeline_mode = #tpu.pipeline_mode<synchronous>, transform_indices = @transform_11, window_bounds = array<i64: 8, 128>}, {pipeline_mode = #tpu.pipeline_mode<synchronous>, transform_indices = @transform_12, window_bounds = array<i64: 1, 128>}, {pipeline_mode = #tpu.pipeline_mode<synchronous>, transform_indices = @transform_13, window_bounds = array<i64: 128, 64>}, {pipeline_mode = #tpu.pipeline_mode<synchronous>, transform_indices = @transform_14, window_bounds = array<i64: 1, 64>}, {pipeline_mode = #tpu.pipeline_mode<synchronous>, transform_indices = @transform_15, window_bounds = array<i64: 1, 64>}, {pipeline_mode = #tpu.pipeline_mode<synchronous>, transform_indices = @transform_16, window_bounds = array<i64: 1, 1>}, {pipeline_mode = #tpu.pipeline_mode<synchronous>, transform_indices = @transform_17, window_bounds = array<i64: 1, 128>}, {pipeline_mode = #tpu.pipeline_mode<synchronous>, transform_indices = @transform_18, window_bounds = array<i64: 1, 128>}, {pipeline_mode = #tpu.pipeline_mode<synchronous>, transform_indices = @transform_19, window_bounds = array<i64: 128, 128>}]} {
    %c0_i32 = arith.constant 0 : i32
    %0 = arith.cmpi eq, %arg0, %c0_i32 : i32
    %1 = arith.extui %0 : i1 to i32
    %c0_i32_0 = arith.constant 0 : i32
    %2 = arith.cmpi ne, %1, %c0_i32_0 : i32
    scf.if %2 {
      %c0_45 = arith.constant 0 : index
      %c0_46 = arith.constant 0 : index
      %79 = vector.load %arg1[%c0_45, %c0_46] : memref<128x16xf32, #tpu.memory_space<vmem>>, vector<128x16xf32>
      %c0_47 = arith.constant 0 : index
      %c0_48 = arith.constant 0 : index
      %80 = vector.load %arg6[%c0_47, %c0_48] : memref<16x128xf32, #tpu.memory_space<vmem>>, vector<16x128xf32>
      %cst_49 = arith.constant dense<0.000000e+00> : vector<128x128xf32>
      %81 = tpu.matmul %79, %80, %cst_49 {dimension_numbers = #tpu.dot_dimension_numbers<[1], [0], [0], [1], [0, 0, 1, 1], [], []>} : vector<128x16xf32>, vector<16x128xf32>, vector<128x128xf32> -> vector<128x128xf32>
      %c0_50 = arith.constant 0 : index
      %c0_51 = arith.constant 0 : index
      %82 = vector.load %arg7[%c0_50, %c0_51] : memref<1x128xf32, #tpu.memory_space<vmem>>, vector<1x128xf32>
      %83 = vector.broadcast %82 : vector<1x128xf32> to vector<128x128xf32>
      %84 = arith.addf %81, %83 : vector<128x128xf32>
      %c0_52 = arith.constant 0 : index
      %c0_53 = arith.constant 0 : index
      %85 = vector.load %arg8[%c0_52, %c0_53] : memref<16x128xf32, #tpu.memory_space<vmem>>, vector<16x128xf32>
      %cst_54 = arith.constant dense<0.000000e+00> : vector<128x128xf32>
      %86 = tpu.matmul %79, %85, %cst_54 {dimension_numbers = #tpu.dot_dimension_numbers<[1], [0], [0], [1], [0, 0, 1, 1], [], []>} : vector<128x16xf32>, vector<16x128xf32>, vector<128x128xf32> -> vector<128x128xf32>
      %c0_55 = arith.constant 0 : index
      %c0_56 = arith.constant 0 : index
      %87 = vector.load %arg9[%c0_55, %c0_56] : memref<1x128xf32, #tpu.memory_space<vmem>>, vector<1x128xf32>
      %88 = vector.broadcast %87 : vector<1x128xf32> to vector<128x128xf32>
      %89 = arith.addf %86, %88 : vector<128x128xf32>
      %90 = arith.truncf %84 : vector<128x128xf32> to vector<128x128xbf16>
      %c0_57 = arith.constant 0 : index
      %c0_58 = arith.constant 0 : index
      %91 = vector.load %arg21[%c0_57, %c0_58] : memref<128x128xbf16, #tpu.memory_space<vmem>>, vector<128x128xbf16>
      tpu.vector_store %arg21[%c0_57, %c0_58], %90 {strides = array<i32>} : memref<128x128xbf16, #tpu.memory_space<vmem>>, vector<128x128xbf16>,
      %c0_59 = arith.constant 0 : index
      %c0_60 = arith.constant 0 : index
      %92 = vector.load %arg23[%c0_59, %c0_60] : memref<128x128xf32, #tpu.memory_space<vmem>>, vector<128x128xf32>
      tpu.vector_store %arg23[%c0_59, %c0_60], %89 {strides = array<i32>} : memref<128x128xf32, #tpu.memory_space<vmem>>, vector<128x128xf32>,
      %c0_61 = arith.constant 0 : index
      %c0_62 = arith.constant 0 : index
      %93 = vector.load %arg10[%c0_61, %c0_62] : memref<128x128xf32, #tpu.memory_space<vmem>>, vector<128x128xf32>
      %cst_63 = arith.constant dense<0.000000e+00> : vector<128x128xf32>
      %94 = tpu.matmul %89, %93, %cst_63 {dimension_numbers = #tpu.dot_dimension_numbers<[1], [0], [0], [1], [0, 0, 1, 1], [], []>} : vector<128x128xf32>, vector<128x128xf32>, vector<128x128xf32> -> vector<128x128xf32>
      %95 = arith.truncf %94 : vector<128x128xf32> to vector<128x128xbf16>
      %c0_64 = arith.constant 0 : index
      %c0_65 = arith.constant 0 : index
      %96 = vector.load %arg22[%c0_64, %c0_65] : memref<128x128xbf16, #tpu.memory_space<vmem>>, vector<128x128xbf16>
      tpu.vector_store %arg22[%c0_64, %c0_65], %95 {strides = array<i32>} : memref<128x128xbf16, #tpu.memory_space<vmem>>, vector<128x128xbf16>,
      %cst_66 = arith.constant 0.000000e+00 : f32
      %97 = vector.broadcast %cst_66 : f32 to vector<128x128xf32>
      %c0_67 = arith.constant 0 : index
      %c0_68 = arith.constant 0 : index
      %98 = vector.load %arg20[%c0_67, %c0_68] : memref<128x128xf32, #tpu.memory_space<vmem>>, vector<128x128xf32>
      tpu.vector_store %arg20[%c0_67, %c0_68], %97 {strides = array<i32>} : memref<128x128xf32, #tpu.memory_space<vmem>>, vector<128x128xf32>,
    } else {
    }
    %3 = tpu.iota {dimensions = array<i32: 1>} : vector<256x128xi32>
    %c0 = arith.constant 0 : index
    %c0_1 = arith.constant 0 : index
    %4 = vector.load %arg3[%c0, %c0_1] : memref<256x1xi32, #tpu.memory_space<vmem>>, vector<256x1xi32>
    %5 = vector.broadcast %4 : vector<256x1xi32> to vector<256x128xi32>
    %6 = arith.cmpi eq, %3, %5 : vector<256x128xi32>
    %7 = arith.extui %6 : vector<256x128xi1> to vector<256x128xi32>
    %8 = arith.sitofp %7 : vector<256x128xi32> to vector<256x128xf32>
    %9 = arith.truncf %8 : vector<256x128xf32> to vector<256x128xbf16>
    %c0_2 = arith.constant 0 : index
    %c0_3 = arith.constant 0 : index
    %10 = vector.load %arg4[%c0_2, %c0_3] : memref<256x1xi32, #tpu.memory_space<vmem>>, vector<256x1xi32>
    %11 = vector.broadcast %10 : vector<256x1xi32> to vector<256x128xi32>
    %12 = arith.cmpi eq, %3, %11 : vector<256x128xi32>
    %13 = arith.extui %12 : vector<256x128xi1> to vector<256x128xi32>
    %14 = arith.sitofp %13 : vector<256x128xi32> to vector<256x128xf32>
    %15 = arith.truncf %14 : vector<256x128xf32> to vector<256x128xbf16>
    %16 = tpu.iota {dimensions = array<i32: 0>} : vector<128x256xi32>
    %c0_4 = arith.constant 0 : index
    %c0_5 = arith.constant 0 : index
    %17 = vector.load %arg5[%c0_4, %c0_5] : memref<1x256xi32, #tpu.memory_space<vmem>>, vector<1x256xi32>
    %18 = vector.broadcast %17 : vector<1x256xi32> to vector<128x256xi32>
    %19 = arith.cmpi eq, %16, %18 : vector<128x256xi32>
    %20 = arith.extui %19 : vector<128x256xi1> to vector<128x256xi32>
    %21 = arith.sitofp %20 : vector<128x256xi32> to vector<128x256xf32>
    %22 = arith.truncf %21 : vector<128x256xf32> to vector<128x256xbf16>
    %c0_6 = arith.constant 0 : index
    %c0_7 = arith.constant 0 : index
    %23 = vector.load %arg21[%c0_6, %c0_7] : memref<128x128xbf16, #tpu.memory_space<vmem>>, vector<128x128xbf16>
    %cst = arith.constant dense<0.000000e+00> : vector<256x128xf32>
    %24 = tpu.matmul %9, %23, %cst {dimension_numbers = #tpu.dot_dimension_numbers<[1], [0], [0], [1], [0, 0, 1, 1], [], []>} : vector<256x128xbf16>, vector<128x128xbf16>, vector<256x128xf32> -> vector<256x128xf32>
    %c0_8 = arith.constant 0 : index
    %c0_9 = arith.constant 0 : index
    %25 = vector.load %arg22[%c0_8, %c0_9] : memref<128x128xbf16, #tpu.memory_space<vmem>>, vector<128x128xbf16>
    %cst_10 = arith.constant dense<0.000000e+00> : vector<256x128xf32>
    %26 = tpu.matmul %15, %25, %cst_10 {dimension_numbers = #tpu.dot_dimension_numbers<[1], [0], [0], [1], [0, 0, 1, 1], [], []>} : vector<256x128xbf16>, vector<128x128xbf16>, vector<256x128xf32> -> vector<256x128xf32>
    %27 = arith.truncf %24 : vector<256x128xf32> to vector<256x128xbf16>
    %c0_11 = arith.constant 0 : index
    %c0_12 = arith.constant 0 : index
    %28 = vector.load %arg11[%c0_11, %c0_12] : memref<128x128xbf16, #tpu.memory_space<vmem>>, vector<128x128xbf16>
    %cst_13 = arith.constant dense<0.000000e+00> : vector<256x128xf32>
    %29 = tpu.matmul %27, %28, %cst_13 {dimension_numbers = #tpu.dot_dimension_numbers<[1], [0], [0], [1], [0, 0, 1, 1], [], []>} : vector<256x128xbf16>, vector<128x128xbf16>, vector<256x128xf32> -> vector<256x128xf32>
    %30 = arith.addf %29, %26 : vector<256x128xf32>
    %c0_14 = arith.constant 0 : index
    %c0_15 = arith.constant 0 : index
    %31 = vector.load %arg2[%c0_14, %c0_15] : memref<256x8xbf16, #tpu.memory_space<vmem>>, vector<256x8xbf16>
    %c0_16 = arith.constant 0 : index
    %c0_17 = arith.constant 0 : index
    %32 = vector.load %arg12[%c0_16, %c0_17] : memref<8x128xbf16, #tpu.memory_space<vmem>>, vector<8x128xbf16>
    %cst_18 = arith.constant dense<0.000000e+00> : vector<256x128xf32>
    %33 = tpu.matmul %31, %32, %cst_18 {dimension_numbers = #tpu.dot_dimension_numbers<[1], [0], [0], [1], [0, 0, 1, 1], [], []>} : vector<256x8xbf16>, vector<8x128xbf16>, vector<256x128xf32> -> vector<256x128xf32>
    %34 = arith.addf %30, %33 : vector<256x128xf32>
    %c0_19 = arith.constant 0 : index
    %c0_20 = arith.constant 0 : index
    %35 = vector.load %arg13[%c0_19, %c0_20] : memref<1x128xf32, #tpu.memory_space<vmem>>, vector<1x128xf32>
    %36 = vector.broadcast %35 : vector<1x128xf32> to vector<256x128xf32>
    %37 = arith.addf %34, %36 : vector<256x128xf32>
    %cst_21 = arith.constant 0.000000e+00 : f32
    %38 = vector.broadcast %cst_21 : f32 to vector<256x128xf32>
    %39 = arith.cmpf ogt, %37, %38 : vector<256x128xf32>
    %cst_22 = arith.constant 0.00999999977 : f32
    %40 = vector.broadcast %cst_22 : f32 to vector<256x128xf32>
    %41 = arith.mulf %40, %37 : vector<256x128xf32>
    %42 = arith.select %39, %37, %41 : vector<256x128xi1>, vector<256x128xf32>
    %43 = arith.truncf %42 : vector<256x128xf32> to vector<256x128xbf16>
    %c0_23 = arith.constant 0 : index
    %c0_24 = arith.constant 0 : index
    %44 = vector.load %arg14[%c0_23, %c0_24] : memref<128x64xbf16, #tpu.memory_space<vmem>>, vector<128x64xbf16>
    %cst_25 = arith.constant dense<0.000000e+00> : vector<256x64xf32>
    %45 = tpu.matmul %43, %44, %cst_25 {dimension_numbers = #tpu.dot_dimension_numbers<[1], [0], [0], [1], [0, 0, 1, 1], [], []>} : vector<256x128xbf16>, vector<128x64xbf16>, vector<256x64xf32> -> vector<256x64xf32>
    %c0_26 = arith.constant 0 : index
    %c0_27 = arith.constant 0 : index
    %46 = vector.load %arg15[%c0_26, %c0_27] : memref<1x64xf32, #tpu.memory_space<vmem>>, vector<1x64xf32>
    %47 = vector.broadcast %46 : vector<1x64xf32> to vector<256x64xf32>
    %48 = arith.addf %45, %47 : vector<256x64xf32>
    %cst_28 = arith.constant 0.000000e+00 : f32
    %49 = vector.broadcast %cst_28 : f32 to vector<256x64xf32>
    %50 = arith.cmpf ogt, %48, %49 : vector<256x64xf32>
    %cst_29 = arith.constant 0.00999999977 : f32
    %51 = vector.broadcast %cst_29 : f32 to vector<256x64xf32>
    %52 = arith.mulf %51, %48 : vector<256x64xf32>
    %53 = arith.select %50, %48, %52 : vector<256x64xi1>, vector<256x64xf32>
    %c0_30 = arith.constant 0 : index
    %c0_31 = arith.constant 0 : index
    %54 = vector.load %arg16[%c0_30, %c0_31] : memref<1x64xf32, #tpu.memory_space<vmem>>, vector<1x64xf32>
    %55 = vector.broadcast %54 : vector<1x64xf32> to vector<256x64xf32>
    %56 = arith.mulf %53, %55 : vector<256x64xf32>
    %cst_32 = arith.constant dense<0.000000e+00> : vector<256xf32>
    %57 = vector.multi_reduction <add>, %56, %cst_32 [1] : vector<256x64xf32> to vector<256xf32>
    %58 = vector.shape_cast %57 : vector<256xf32> to vector<256x1xf32>
    %c0_33 = arith.constant 0 : index
    %c0_34 = arith.constant 0 : index
    %59 = vector.load %arg17[%c0_33, %c0_34] : memref<1x1xf32, #tpu.memory_space<vmem>>, vector<1x1xf32>
    %60 = vector.broadcast %59 : vector<1x1xf32> to vector<256x1xf32>
    %61 = arith.addf %58, %60 : vector<256x1xf32>
    %cst_35 = arith.constant 0.000000e+00 : f32
    %62 = vector.broadcast %cst_35 : f32 to vector<256x1xf32>
    %63 = arith.maximumf %61, %62 : vector<256x1xf32>
    %c0_36 = arith.constant 0 : index
    %c0_37 = arith.constant 0 : index
    %64 = vector.load %arg4[%c0_36, %c0_37] : memref<256x1xi32, #tpu.memory_space<vmem>>, vector<256x1xi32>
    %c128_i32 = arith.constant 128 : i32
    %65 = vector.broadcast %c128_i32 : i32 to vector<256x1xi32>
    %66 = arith.cmpi slt, %64, %65 : vector<256x1xi32>
    %cst_38 = arith.constant 0.000000e+00 : f32
    %67 = vector.broadcast %cst_38 : f32 to vector<256x1xf32>
    %68 = arith.select %66, %63, %67 : vector<256x1xi1>, vector<256x1xf32>
    %69 = vector.broadcast %68 : vector<256x1xf32> to vector<256x128xf32>
    %70 = arith.mulf %69, %24 : vector<256x128xf32>
    %71 = arith.truncf %70 : vector<256x128xf32> to vector<256x128xbf16>
    %c0_39 = arith.constant 0 : index
    %c0_40 = arith.constant 0 : index
    %72 = vector.load %arg20[%c0_39, %c0_40] : memref<128x128xf32, #tpu.memory_space<vmem>>, vector<128x128xf32>
    %cst_41 = arith.constant dense<0.000000e+00> : vector<128x128xf32>
    %73 = tpu.matmul %22, %71, %cst_41 {dimension_numbers = #tpu.dot_dimension_numbers<[1], [0], [0], [1], [0, 0, 1, 1], [], []>} : vector<128x256xbf16>, vector<256x128xbf16>, vector<128x128xf32> -> vector<128x128xf32>
    %74 = arith.addf %72, %73 : vector<128x128xf32>
    %c0_42 = arith.constant 0 : index
    %c0_43 = arith.constant 0 : index
    %75 = vector.load %arg20[%c0_42, %c0_43] : memref<128x128xf32, #tpu.memory_space<vmem>>, vector<128x128xf32>
    tpu.vector_store %arg20[%c0_42, %c0_43], %74 {strides = array<i32>} : memref<128x128xf32, #tpu.memory_space<vmem>>, vector<128x128xf32>,
    %c1_i32 = arith.constant 1 : i32
    %76 = arith.cmpi eq, %arg0, %c1_i32 : i32
    %77 = arith.extui %76 : i1 to i32
    %c0_i32_44 = arith.constant 0 : i32
    %78 = arith.cmpi ne, %77, %c0_i32_44 : i32
    scf.if %78 {
      %c0_45 = arith.constant 0 : index
      %c0_46 = arith.constant 0 : index
      %79 = vector.load %arg20[%c0_45, %c0_46] : memref<128x128xf32, #tpu.memory_space<vmem>>, vector<128x128xf32>
      %c0_47 = arith.constant 0 : index
      %c0_48 = arith.constant 0 : index
      %80 = vector.load %arg23[%c0_47, %c0_48] : memref<128x128xf32, #tpu.memory_space<vmem>>, vector<128x128xf32>
      %81 = arith.addf %79, %80 : vector<128x128xf32>
      %c0_49 = arith.constant 0 : index
      %c0_50 = arith.constant 0 : index
      %82 = vector.load %arg18[%c0_49, %c0_50] : memref<1x128xf32, #tpu.memory_space<vmem>>, vector<1x128xf32>
      %83 = vector.broadcast %82 : vector<1x128xf32> to vector<128x128xf32>
      %84 = arith.mulf %81, %83 : vector<128x128xf32>
      %c0_51 = arith.constant 0 : index
      %c0_52 = arith.constant 0 : index
      %85 = vector.load %arg19[%c0_51, %c0_52] : memref<1x128xf32, #tpu.memory_space<vmem>>, vector<1x128xf32>
      %86 = vector.broadcast %85 : vector<1x128xf32> to vector<128x128xf32>
      %87 = arith.addf %84, %86 : vector<128x128xf32>
      %cst_53 = arith.constant 0.000000e+00 : f32
      %88 = vector.broadcast %cst_53 : f32 to vector<128x128xf32>
      %89 = arith.maximumf %87, %88 : vector<128x128xf32>
      %c0_54 = arith.constant 0 : index
      %c0_55 = arith.constant 0 : index
      %90 = vector.load %arg20[%c0_54, %c0_55] : memref<128x128xf32, #tpu.memory_space<vmem>>, vector<128x128xf32>
      tpu.vector_store %arg20[%c0_54, %c0_55], %89 {strides = array<i32>} : memref<128x128xf32, #tpu.memory_space<vmem>>, vector<128x128xf32>,
    } else {
    }
    return
  }
  func.func @transform_0(%arg0: i32) -> (i32, i32) {
    %c0_i32 = arith.constant 0 : i32
    %c0_i32_0 = arith.constant 0 : i32
    %c0_i32_1 = arith.constant 0 : i32
    return %c0_i32, %c0_i32_0 : i32, i32
  }
  func.func @transform_1(%arg0: i32) -> (i32, i32) {
    %c0_i32 = arith.constant 0 : i32
    %c0_i32_0 = arith.constant 0 : i32
    return %arg0, %c0_i32 : i32, i32
  }
  func.func @transform_2(%arg0: i32) -> (i32, i32) {
    %c0_i32 = arith.constant 0 : i32
    %c0_i32_0 = arith.constant 0 : i32
    return %arg0, %c0_i32 : i32, i32
  }
  func.func @transform_3(%arg0: i32) -> (i32, i32) {
    %c0_i32 = arith.constant 0 : i32
    %c0_i32_0 = arith.constant 0 : i32
    return %arg0, %c0_i32 : i32, i32
  }
  func.func @transform_4(%arg0: i32) -> (i32, i32) {
    %c0_i32 = arith.constant 0 : i32
    %c0_i32_0 = arith.constant 0 : i32
    return %c0_i32, %arg0 : i32, i32
  }
  func.func @transform_5(%arg0: i32) -> (i32, i32) {
    %c0_i32 = arith.constant 0 : i32
    %c0_i32_0 = arith.constant 0 : i32
    %c0_i32_1 = arith.constant 0 : i32
    return %c0_i32, %c0_i32_0 : i32, i32
  }
  func.func @transform_6(%arg0: i32) -> (i32, i32) {
    %c0_i32 = arith.constant 0 : i32
    %c0_i32_0 = arith.constant 0 : i32
    %c0_i32_1 = arith.constant 0 : i32
    return %c0_i32, %c0_i32_0 : i32, i32
  }
  func.func @transform_7(%arg0: i32) -> (i32, i32) {
    %c0_i32 = arith.constant 0 : i32
    %c0_i32_0 = arith.constant 0 : i32
    %c0_i32_1 = arith.constant 0 : i32
    return %c0_i32, %c0_i32_0 : i32, i32
  }
  func.func @transform_8(%arg0: i32) -> (i32, i32) {
    %c0_i32 = arith.constant 0 : i32
    %c0_i32_0 = arith.constant 0 : i32
    %c0_i32_1 = arith.constant 0 : i32
    return %c0_i32, %c0_i32_0 : i32, i32
  }
  func.func @transform_9(%arg0: i32) -> (i32, i32) {
    %c0_i32 = arith.constant 0 : i32
    %c0_i32_0 = arith.constant 0 : i32
    %c0_i32_1 = arith.constant 0 : i32
    return %c0_i32, %c0_i32_0 : i32, i32
  }
  func.func @transform_10(%arg0: i32) -> (i32, i32) {
    %c0_i32 = arith.constant 0 : i32
    %c0_i32_0 = arith.constant 0 : i32
    %c0_i32_1 = arith.constant 0 : i32
    return %c0_i32, %c0_i32_0 : i32, i32
  }
  func.func @transform_11(%arg0: i32) -> (i32, i32) {
    %c0_i32 = arith.constant 0 : i32
    %c0_i32_0 = arith.constant 0 : i32
    %c0_i32_1 = arith.constant 0 : i32
    return %c0_i32, %c0_i32_0 : i32, i32
  }
  func.func @transform_12(%arg0: i32) -> (i32, i32) {
    %c0_i32 = arith.constant 0 : i32
    %c0_i32_0 = arith.constant 0 : i32
    %c0_i32_1 = arith.constant 0 : i32
    return %c0_i32, %c0_i32_0 : i32, i32
  }
  func.func @transform_13(%arg0: i32) -> (i32, i32) {
    %c0_i32 = arith.constant 0 : i32
    %c0_i32_0 = arith.constant 0 : i32
    %c0_i32_1 = arith.constant 0 : i32
    return %c0_i32, %c0_i32_0 : i32, i32
  }
  func.func @transform_14(%arg0: i32) -> (i32, i32) {
    %c0_i32 = arith.constant 0 : i32
    %c0_i32_0 = arith.constant 0 : i32
    %c0_i32_1 = arith.constant 0 : i32
    return %c0_i32, %c0_i32_0 : i32, i32
  }
  func.func @transform_15(%arg0: i32) -> (i32, i32) {
    %c0_i32 = arith.constant 0 : i32
    %c0_i32_0 = arith.constant 0 : i32
    %c0_i32_1 = arith.constant 0 : i32
    return %c0_i32, %c0_i32_0 : i32, i32
  }
  func.func @transform_16(%arg0: i32) -> (i32, i32) {
    %c0_i32 = arith.constant 0 : i32
    %c0_i32_0 = arith.constant 0 : i32
    %c0_i32_1 = arith.constant 0 : i32
    return %c0_i32, %c0_i32_0 : i32, i32
  }
  func.func @transform_17(%arg0: i32) -> (i32, i32) {
    %c0_i32 = arith.constant 0 : i32
    %c0_i32_0 = arith.constant 0 : i32
    %c0_i32_1 = arith.constant 0 : i32
    return %c0_i32, %c0_i32_0 : i32, i32
  }
  func.func @transform_18(%arg0: i32) -> (i32, i32) {
    %c0_i32 = arith.constant 0 : i32
    %c0_i32_0 = arith.constant 0 : i32
    %c0_i32_1 = arith.constant 0 : i32
    return %c0_i32, %c0_i32_0 : i32, i32
  }
  func.func @transform_19(%arg0: i32) -> (i32, i32) {
    %c0_i32 = arith.constant 0 : i32
    %c0_i32_0 = arith.constant 0 : i32
    %c0_i32_1 = arith.constant 0 : i32
    return %c0_i32, %c0_i32_0 : i32, i32
  }
}

</mosaic_0001>

<llo_original>
// kernel: tpu_custom_call.1
$region0: #{tpu_custom_call.1}
  #allocation0 [shape = 'u32[]', space=smem, size = 0x4, offset = 0x4, fixed_abs, tag = 'smem constant byte address 0x4 - core index']
  #allocation1 [shape = 'u32[72,128]{1,0:T(1,128)}', space=vmem, size = 0x9000, scoped, tag = 'internal scratch']
  #allocation2 [shape = 'bf16[128,128]{1,0:T(8,128)(2,1)}', space=vmem, size = 0x8000, scoped, tag = 'scratch operand']
  #allocation3 [shape = 'bf16[128,128]{1,0:T(8,128)(2,1)}', space=vmem, size = 0x8000, scoped, tag = 'scratch operand']
  #allocation4 [shape = 'f32[128,128]{1,0:T(8,128)}', space=vmem, size = 0x10000, scoped, tag = 'scratch operand']
  #allocation5 [shape = 'f32[1,1]{1,0:T(1,128)S(1)}', space=vmem, size = 0x200, scoped, tag = 'scoped memory for tpu_custom_call.1']
  %s0 = inlined_call_operand.vmem [shape: f32[128,16], index: 0, kind: input, shape index: {}]
  %s1 = inlined_call_operand.vmem [shape: bf16[512,8], index: 1, kind: input, shape index: {}]
  %s2 = inlined_call_operand.vmem [shape: s32[512,1], index: 2, kind: input, shape index: {}]
  %s3 = inlined_call_operand.vmem [shape: s32[512,1], index: 3, kind: input, shape index: {}]
  %s4 = inlined_call_operand.vmem [shape: s32[1,512], index: 4, kind: input, shape index: {}]
  %s5 = inlined_call_operand.vmem [shape: f32[16,128], index: 5, kind: input, shape index: {}]
  %s6 = inlined_call_operand.vmem [shape: f32[1,128], index: 6, kind: input, shape index: {}]
  %s7 = inlined_call_operand.vmem [shape: f32[16,128], index: 7, kind: input, shape index: {}]
  %s8 = inlined_call_operand.vmem [shape: f32[1,128], index: 8, kind: input, shape index: {}]
  %s9 = inlined_call_operand.vmem [shape: f32[128,128], index: 9, kind: input, shape index: {}]
  %s10 = inlined_call_operand.vmem [shape: bf16[128,128], index: 10, kind: input, shape index: {}]
  %s11 = inlined_call_operand.vmem [shape: bf16[8,128], index: 11, kind: input, shape index: {}]
  %s12 = inlined_call_operand.vmem [shape: f32[1,128], index: 12, kind: input, shape index: {}]
  %s13 = inlined_call_operand.vmem [shape: bf16[128,64], index: 13, kind: input, shape index: {}]
  %s14 = inlined_call_operand.vmem [shape: f32[1,64], index: 14, kind: input, shape index: {}]
  %s15 = inlined_call_operand.vmem [shape: f32[1,64], index: 15, kind: input, shape index: {}]
  %s16 = inlined_call_operand.<no memory space> [shape: f32[1,1], index: 16, kind: input, shape index: {}]
  %s17 = inlined_call_operand.vmem [shape: f32[1,128], index: 17, kind: input, shape index: {}]
  %s18 = inlined_call_operand.vmem [shape: f32[1,128], index: 18, kind: input, shape index: {}]
  %s19 = inlined_call_operand.hbm [shape: f32[128,128], index: 19, kind: output, shape index: {}]
  %s20 = sld [smem:[#allocation0]]
  $region117: #{tpu_custom_call.1} parent=0
    _
  %s22 = ssub.s32 1, %s20
  %s23 = scalar_select 0, %s22, %s20
  %v24 = vstv %s16
  %25 = vst [vmem:[#allocation5] sm:$0x1] %v24
  $region1: #{tpu_custom_call.1} parent=0
    #allocation6 [shape = 'u8[65536]{0}', space=vmem, size = 0x10000, scoped, tag = 'output window, operand 0, single buffered']
    #allocation7 [shape = 's32[2]{0}', space=sflag, size = 0x8, scoped, tag = 'scoped memory for tpu_custom_call.1']
    %26 = vsyncpa [#allocation7], 0
    loop: start=0, step=1, limit=4
    $region2: #{tpu_custom_call.1} parent=1 // loop_pre_header
      _
    $region3: #{tpu_custom_call.1} parent=1 // loop_header
      %s28 = sphi 0, %s32
      %p29 = scmp.ge.s32.totalorder %s28, 4
      %s36 = sphi 0, %s36
      %s38 = sphi 0, %s36
      %s39 = sphi 0, %s38
      %s53 = sphi 0, %s39
      %s59 = sphi 0, %s61
      %s62 = sphi 0, %s59
      %s63 = sphi 0, %s62
      %s79 = sphi 0, %s63
      %s85 = sphi 0, %s87
      %s88 = sphi 0, %s85
      %s89 = sphi 0, %s88
      %s105 = sphi 0, %s89
      %s111 = sphi 0, %s113
      %s114 = sphi 0, %s111
      %s115 = sphi 0, %s114
      %s131 = sphi 0, %s115
      %s137 = sphi 0, %s139
      %s140 = sphi 0, %s137
      %s141 = sphi 0, %s140
      %s157 = sphi 0, %s141
      %s161 = sphi 0, %s161
      %s163 = sphi 0, %s161
      %s164 = sphi 0, %s163
      %s178 = sphi 0, %s164
      %s182 = sphi 0, %s182
      %s184 = sphi 0, %s182
      %s185 = sphi 0, %s184
      %s199 = sphi 0, %s185
      %s203 = sphi 0, %s203
      %s205 = sphi 0, %s203
      %s206 = sphi 0, %s205
      %s220 = sphi 0, %s206
      %s224 = sphi 0, %s224
      %s226 = sphi 0, %s224
      %s227 = sphi 0, %s226
      %s241 = sphi 0, %s227
      %s245 = sphi 0, %s245
      %s247 = sphi 0, %s245
      %s248 = sphi 0, %s247
      %s262 = sphi 0, %s248
      %s266 = sphi 0, %s266
      %s268 = sphi 0, %s266
      %s269 = sphi 0, %s268
      %s283 = sphi 0, %s269
      %s287 = sphi 0, %s287
      %s289 = sphi 0, %s287
      %s290 = sphi 0, %s289
      %s304 = sphi 0, %s290
      %s308 = sphi 0, %s308
      %s310 = sphi 0, %s308
      %s311 = sphi 0, %s310
      %s325 = sphi 0, %s311
      %s329 = sphi 0, %s329
      %s331 = sphi 0, %s329
      %s332 = sphi 0, %s331
      %s346 = sphi 0, %s332
      %s350 = sphi 0, %s350
      %s352 = sphi 0, %s350
      %s353 = sphi 0, %s352
      %s367 = sphi 0, %s353
      %s371 = sphi 0, %s371
      %s373 = sphi 0, %s371
      %s374 = sphi 0, %s373
      %s388 = sphi 0, %s374
      %s392 = sphi 0, %s392
      %s394 = sphi 0, %s392
      %s395 = sphi 0, %s394
      %s409 = sphi 0, %s395
      %s413 = sphi 0, %s413
      %s415 = sphi 0, %s413
      %s416 = sphi 0, %s415
      %s430 = sphi 0, %s416
      %s434 = sphi 0, %s434
      %s436 = sphi 0, %s434
      %s437 = sphi 0, %s436
      %s451 = sphi 0, %s437
      %s455 = sphi 0, %s455
      %s457 = sphi 0, %s455
      %s458 = sphi 0, %s457
      %s472 = sphi 0, %s458
    $region4: #{tpu_custom_call.1} parent=1 // loop_header_branch
      %31 = sbr.rel (%p29) target = $region8
    $region5: #{tpu_custom_call.1} parent=1 // loop_body
      %s33 = ssub.s32 %s28, 1
      %s34 = ssub.s32 %s28, 2
      %s35 = sadd.s32 %s28, 1
      %s37 = sadd.s32 %s36, 1
      %p40 = scmp.eq.s32.totalorder %s28, 1
      %p41 = scmp.ne.s32.totalorder %s36, %s38
      %p42 = scmp.eq.s32.totalorder %s28, 0
      %p43 = por %p41, %p42
      %p44 = scmp.ne.s32.totalorder %s36, %s38
      %p45 = scmp.eq.s32.totalorder %s33, 1
      %p46 = por %p44, %p45
      %p47 = scmp.ne.s32.totalorder %s38, %s39
      %p48 = scmp.eq.s32.totalorder %s33, 0
      %p49 = por %p47, %p48
      %p50 = scmp.ne.s32.totalorder %s38, %s39
      %p51 = scmp.eq.s32.totalorder %s34, 1
      %p52 = por %p50, %p51
      %p54 = scmp.ne.s32.totalorder %s39, %s53
      %p55 = scmp.eq.s32.totalorder %s34, 0
      %p56 = por %p54, %p55
      %s57 = ssub.s32 %s28, %s35
      %p58 = scmp.eq.s32.totalorder %s57, 0
      %s60 = sadd.s32 %s59, 1
      %s61 = scalar_select %p58, %s59, %s60
      %p64 = pneg %p58
      %p65 = scmp.eq.s32.totalorder %s28, 1
      %p66 = por %p64, %p65
      %p67 = scmp.ne.s32.totalorder %s59, %s62
      %p68 = scmp.eq.s32.totalorder %s28, 0
      %p69 = por %p67, %p68
      %p70 = scmp.ne.s32.totalorder %s59, %s62
      %p71 = scmp.eq.s32.totalorder %s33, 1
      %p72 = por %p70, %p71
      %p73 = scmp.ne.s32.totalorder %s62, %s63
      %p74 = scmp.eq.s32.totalorder %s33, 0
      %p75 = por %p73, %p74
      %p76 = scmp.ne.s32.totalorder %s62, %s63
      %p77 = scmp.eq.s32.totalorder %s34, 1
      %p78 = por %p76, %p77
      %p80 = scmp.ne.s32.totalorder %s63, %s79
      %p81 = scmp.eq.s32.totalorder %s34, 0
      %p82 = por %p80, %p81
      %s83 = ssub.s32 %s28, %s35
      %p84 = scmp.eq.s32.totalorder %s83, 0
      %s86 = sadd.s32 %s85, 1
      %s87 = scalar_select %p84, %s85, %s86
      %p90 = pneg %p84
      %p91 = scmp.eq.s32.totalorder %s28, 1
      %p92 = por %p90, %p91
      %p93 = scmp.ne.s32.totalorder %s85, %s88
      %p94 = scmp.eq.s32.totalorder %s28, 0
      %p95 = por %p93, %p94
      %p96 = scmp.ne.s32.totalorder %s85, %s88
      %p97 = scmp.eq.s32.totalorder %s33, 1
      %p98 = por %p96, %p97
      %p99 = scmp.ne.s32.totalorder %s88, %s89
      %p100 = scmp.eq.s32.totalorder %s33, 0
      %p101 = por %p99, %p100
      %p102 = scmp.ne.s32.totalorder %s88, %s89
      %p103 = scmp.eq.s32.totalorder %s34, 1
      %p104 = por %p102, %p103
      %p106 = scmp.ne.s32.totalorder %s89, %s105
      %p107 = scmp.eq.s32.totalorder %s34, 0
      %p108 = por %p106, %p107
      %s109 = ssub.s32 %s28, %s35
      %p110 = scmp.eq.s32.totalorder %s109, 0
      %s112 = sadd.s32 %s111, 1
      %s113 = scalar_select %p110, %s111, %s112
      %p116 = pneg %p110
      %p117 = scmp.eq.s32.totalorder %s28, 1
      %p118 = por %p116, %p117
      %p119 = scmp.ne.s32.totalorder %s111, %s114
      %p120 = scmp.eq.s32.totalorder %s28, 0
      %p121 = por %p119, %p120
      %p122 = scmp.ne.s32.totalorder %s111, %s114
      %p123 = scmp.eq.s32.totalorder %s33, 1
      %p124 = por %p122, %p123
      %p125 = scmp.ne.s32.totalorder %s114, %s115
      %p126 = scmp.eq.s32.totalorder %s33, 0
      %p127 = por %p125, %p126
      %p128 = scmp.ne.s32.totalorder %s114, %s115
      %p129 = scmp.eq.s32.totalorder %s34, 1
      %p130 = por %p128, %p129
      %p132 = scmp.ne.s32.totalorder %s115, %s131
      %p133 = scmp.eq.s32.totalorder %s34, 0
      %p134 = por %p132, %p133
      %s135 = ssub.s32 %s28, %s35
      %p136 = scmp.eq.s32.totalorder %s135, 0
      %s138 = sadd.s32 %s137, 1
      %s139 = scalar_select %p136, %s137, %s138
      %p142 = pneg %p136
      %p143 = scmp.eq.s32.totalorder %s28, 1
      %p144 = por %p142, %p143
      %p145 = scmp.ne.s32.totalorder %s137, %s140
      %p146 = scmp.eq.s32.totalorder %s28, 0
      %p147 = por %p145, %p146
      %p148 = scmp.ne.s32.totalorder %s137, %s140
      %p149 = scmp.eq.s32.totalorder %s33, 1
      %p150 = por %p148, %p149
      %p151 = scmp.ne.s32.totalorder %s140, %s141
      %p152 = scmp.eq.s32.totalorder %s33, 0
      %p153 = por %p151, %p152
      %p154 = scmp.ne.s32.totalorder %s140, %s141
      %p155 = scmp.eq.s32.totalorder %s34, 1
      %p156 = por %p154, %p155
      %p158 = scmp.ne.s32.totalorder %s141, %s157
      %p159 = scmp.eq.s32.totalorder %s34, 0
      %p160 = por %p158, %p159
      %s162 = sadd.s32 %s161, 1
      %p165 = scmp.eq.s32.totalorder %s28, 1
      %p166 = scmp.ne.s32.totalorder %s161, %s163
      %p167 = scmp.eq.s32.totalorder %s28, 0
      %p168 = por %p166, %p167
      %p169 = scmp.ne.s32.totalorder %s161, %s163
      %p170 = scmp.eq.s32.totalorder %s33, 1
      %p171 = por %p169, %p170
      %p172 = scmp.ne.s32.totalorder %s163, %s164
      %p173 = scmp.eq.s32.totalorder %s33, 0
      %p174 = por %p172, %p173
      %p175 = scmp.ne.s32.totalorder %s163, %s164
      %p176 = scmp.eq.s32.totalorder %s34, 1
      %p177 = por %p175, %p176
      %p179 = scmp.ne.s32.totalorder %s164, %s178
      %p180 = scmp.eq.s32.totalorder %s34, 0
      %p181 = por %p179, %p180
      %s183 = sadd.s32 %s182, 1
      %p186 = scmp.eq.s32.totalorder %s28, 1
      %p187 = scmp.ne.s32.totalorder %s182, %s184
      %p188 = scmp.eq.s32.totalorder %s28, 0
      %p189 = por %p187, %p188
      %p190 = scmp.ne.s32.totalorder %s182, %s184
      %p191 = scmp.eq.s32.totalorder %s33, 1
      %p192 = por %p190, %p191
      %p193 = scmp.ne.s32.totalorder %s184, %s185
      %p194 = scmp.eq.s32.totalorder %s33, 0
      %p195 = por %p193, %p194
      %p196 = scmp.ne.s32.totalorder %s184, %s185
      %p197 = scmp.eq.s32.totalorder %s34, 1
      %p198 = por %p196, %p197
      %p200 = scmp.ne.s32.totalorder %s185, %s199
      %p201 = scmp.eq.s32.totalorder %s34, 0
      %p202 = por %p200, %p201
      %s204 = sadd.s32 %s203, 1
      %p207 = scmp.eq.s32.totalorder %s28, 1
      %p208 = scmp.ne.s32.totalorder %s203, %s205
      %p209 = scmp.eq.s32.totalorder %s28, 0
      %p210 = por %p208, %p209
      %p211 = scmp.ne.s32.totalorder %s203, %s205
      %p212 = scmp.eq.s32.totalorder %s33, 1
      %p213 = por %p211, %p212
      %p214 = scmp.ne.s32.totalorder %s205, %s206
      %p215 = scmp.eq.s32.totalorder %s33, 0
      %p216 = por %p214, %p215
      %p217 = scmp.ne.s32.totalorder %s205, %s206
      %p218 = scmp.eq.s32.totalorder %s34, 1
      %p219 = por %p217, %p218
      %p221 = scmp.ne.s32.totalorder %s206, %s220
      %p222 = scmp.eq.s32.totalorder %s34, 0
      %p223 = por %p221, %p222
      %s225 = sadd.s32 %s224, 1
      %p228 = scmp.eq.s32.totalorder %s28, 1
      %p229 = scmp.ne.s32.totalorder %s224, %s226
      %p230 = scmp.eq.s32.totalorder %s28, 0
      %p231 = por %p229, %p230
      %p232 = scmp.ne.s32.totalorder %s224, %s226
      %p233 = scmp.eq.s32.totalorder %s33, 1
      %p234 = por %p232, %p233
      %p235 = scmp.ne.s32.totalorder %s226, %s227
      %p236 = scmp.eq.s32.totalorder %s33, 0
      %p237 = por %p235, %p236
      %p238 = scmp.ne.s32.totalorder %s226, %s227
      %p239 = scmp.eq.s32.totalorder %s34, 1
      %p240 = por %p238, %p239
      %p242 = scmp.ne.s32.totalorder %s227, %s241
      %p243 = scmp.eq.s32.totalorder %s34, 0
      %p244 = por %p242, %p243
      %s246 = sadd.s32 %s245, 1
      %p249 = scmp.eq.s32.totalorder %s28, 1
      %p250 = scmp.ne.s32.totalorder %s245, %s247
      %p251 = scmp.eq.s32.totalorder %s28, 0
      %p252 = por %p250, %p251
      %p253 = scmp.ne.s32.totalorder %s245, %s247
      %p254 = scmp.eq.s32.totalorder %s33, 1
      %p255 = por %p253, %p254
      %p256 = scmp.ne.s32.totalorder %s247, %s248
      %p257 = scmp.eq.s32.totalorder %s33, 0
      %p258 = por %p256, %p257
      %p259 = scmp.ne.s32.totalorder %s247, %s248
      %p260 = scmp.eq.s32.totalorder %s34, 1
      %p261 = por %p259, %p260
      %p263 = scmp.ne.s32.totalorder %s248, %s262
      %p264 = scmp.eq.s32.totalorder %s34, 0
      %p265 = por %p263, %p264
      %s267 = sadd.s32 %s266, 1
      %p270 = scmp.eq.s32.totalorder %s28, 1
      %p271 = scmp.ne.s32.totalorder %s266, %s268
      %p272 = scmp.eq.s32.totalorder %s28, 0
      %p273 = por %p271, %p272
      %p274 = scmp.ne.s32.totalorder %s266, %s268
      %p275 = scmp.eq.s32.totalorder %s33, 1
      %p276 = por %p274, %p275
      %p277 = scmp.ne.s32.totalorder %s268, %s269
      %p278 = scmp.eq.s32.totalorder %s33, 0
      %p279 = por %p277, %p278
      %p280 = scmp.ne.s32.totalorder %s268, %s269
      %p281 = scmp.eq.s32.totalorder %s34, 1
      %p282 = por %p280, %p281
      %p284 = scmp.ne.s32.totalorder %s269, %s283
      %p285 = scmp.eq.s32.totalorder %s34, 0
      %p286 = por %p284, %p285
      %s288 = sadd.s32 %s287, 1
      %p291 = scmp.eq.s32.totalorder %s28, 1
      %p292 = scmp.ne.s32.totalorder %s287, %s289
      %p293 = scmp.eq.s32.totalorder %s28, 0
      %p294 = por %p292, %p293
      %p295 = scmp.ne.s32.totalorder %s287, %s289
      %p296 = scmp.eq.s32.totalorder %s33, 1
      %p297 = por %p295, %p296
      %p298 = scmp.ne.s32.totalorder %s289, %s290
      %p299 = scmp.eq.s32.totalorder %s33, 0
      %p300 = por %p298, %p299
      %p301 = scmp.ne.s32.totalorder %s289, %s290
      %p302 = scmp.eq.s32.totalorder %s34, 1
      %p303 = por %p301, %p302
      %p305 = scmp.ne.s32.totalorder %s290, %s304
      %p306 = scmp.eq.s32.totalorder %s34, 0
      %p307 = por %p305, %p306
      %s309 = sadd.s32 %s308, 1
      %p312 = scmp.eq.s32.totalorder %s28, 1
      %p313 = scmp.ne.s32.totalorder %s308, %s310
      %p314 = scmp.eq.s32.totalorder %s28, 0
      %p315 = por %p313, %p314
      %p316 = scmp.ne.s32.totalorder %s308, %s310
      %p317 = scmp.eq.s32.totalorder %s33, 1
      %p318 = por %p316, %p317
      %p319 = scmp.ne.s32.totalorder %s310, %s311
      %p320 = scmp.eq.s32.totalorder %s33, 0
      %p321 = por %p319, %p320
      %p322 = scmp.ne.s32.totalorder %s310, %s311
      %p323 = scmp.eq.s32.totalorder %s34, 1
      %p324 = por %p322, %p323
      %p326 = scmp.ne.s32.totalorder %s311, %s325
      %p327 = scmp.eq.s32.totalorder %s34, 0
      %p328 = por %p326, %p327
      %s330 = sadd.s32 %s329, 1
      %p333 = scmp.eq.s32.totalorder %s28, 1
      %p334 = scmp.ne.s32.totalorder %s329, %s331
      %p335 = scmp.eq.s32.totalorder %s28, 0
      %p336 = por %p334, %p335
      %p337 = scmp.ne.s32.totalorder %s329, %s331
      %p338 = scmp.eq.s32.totalorder %s33, 1
      %p339 = por %p337, %p338
      %p340 = scmp.ne.s32.totalorder %s331, %s332
      %p341 = scmp.eq.s32.totalorder %s33, 0
      %p342 = por %p340, %p341
      %p343 = scmp.ne.s32.totalorder %s331, %s332
      %p344 = scmp.eq.s32.totalorder %s34, 1
      %p345 = por %p343, %p344
      %p347 = scmp.ne.s32.totalorder %s332, %s346
      %p348 = scmp.eq.s32.totalorder %s34, 0
      %p349 = por %p347, %p348
      %s351 = sadd.s32 %s350, 1
      %p354 = scmp.eq.s32.totalorder %s28, 1
      %p355 = scmp.ne.s32.totalorder %s350, %s352
      %p356 = scmp.eq.s32.totalorder %s28, 0
      %p357 = por %p355, %p356
      %p358 = scmp.ne.s32.totalorder %s350, %s352
      %p359 = scmp.eq.s32.totalorder %s33, 1
      %p360 = por %p358, %p359
      %p361 = scmp.ne.s32.totalorder %s352, %s353
      %p362 = scmp.eq.s32.totalorder %s33, 0
      %p363 = por %p361, %p362
      %p364 = scmp.ne.s32.totalorder %s352, %s353
      %p365 = scmp.eq.s32.totalorder %s34, 1
      %p366 = por %p364, %p365
      %p368 = scmp.ne.s32.totalorder %s353, %s367
      %p369 = scmp.eq.s32.totalorder %s34, 0
      %p370 = por %p368, %p369
      %s372 = sadd.s32 %s371, 1
      %p375 = scmp.eq.s32.totalorder %s28, 1
      %p376 = scmp.ne.s32.totalorder %s371, %s373
      %p377 = scmp.eq.s32.totalorder %s28, 0
      %p378 = por %p376, %p377
      %p379 = scmp.ne.s32.totalorder %s371, %s373
      %p380 = scmp.eq.s32.totalorder %s33, 1
      %p381 = por %p379, %p380
      %p382 = scmp.ne.s32.totalorder %s373, %s374
      %p383 = scmp.eq.s32.totalorder %s33, 0
      %p384 = por %p382, %p383
      %p385 = scmp.ne.s32.totalorder %s373, %s374
      %p386 = scmp.eq.s32.totalorder %s34, 1
      %p387 = por %p385, %p386
      %p389 = scmp.ne.s32.totalorder %s374, %s388
      %p390 = scmp.eq.s32.totalorder %s34, 0
      %p391 = por %p389, %p390
      %s393 = sadd.s32 %s392, 1
      %p396 = scmp.eq.s32.totalorder %s28, 1
      %p397 = scmp.ne.s32.totalorder %s392, %s394
      %p398 = scmp.eq.s32.totalorder %s28, 0
      %p399 = por %p397, %p398
      %p400 = scmp.ne.s32.totalorder %s392, %s394
      %p401 = scmp.eq.s32.totalorder %s33, 1
      %p402 = por %p400, %p401
      %p403 = scmp.ne.s32.totalorder %s394, %s395
      %p404 = scmp.eq.s32.totalorder %s33, 0
      %p405 = por %p403, %p404
      %p406 = scmp.ne.s32.totalorder %s394, %s395
      %p407 = scmp.eq.s32.totalorder %s34, 1
      %p408 = por %p406, %p407
      %p410 = scmp.ne.s32.totalorder %s395, %s409
      %p411 = scmp.eq.s32.totalorder %s34, 0
      %p412 = por %p410, %p411
      %s414 = sadd.s32 %s413, 1
      %p417 = scmp.eq.s32.totalorder %s28, 1
      %p418 = scmp.ne.s32.totalorder %s413, %s415
      %p419 = scmp.eq.s32.totalorder %s28, 0
      %p420 = por %p418, %p419
      %p421 = scmp.ne.s32.totalorder %s413, %s415
      %p422 = scmp.eq.s32.totalorder %s33, 1
      %p423 = por %p421, %p422
      %p424 = scmp.ne.s32.totalorder %s415, %s416
      %p425 = scmp.eq.s32.totalorder %s33, 0
      %p426 = por %p424, %p425
      %p427 = scmp.ne.s32.totalorder %s415, %s416
      %p428 = scmp.eq.s32.totalorder %s34, 1
      %p429 = por %p427, %p428
      %p431 = scmp.ne.s32.totalorder %s416, %s430
      %p432 = scmp.eq.s32.totalorder %s34, 0
      %p433 = por %p431, %p432
      %s435 = sadd.s32 %s434, 1
      %p438 = scmp.eq.s32.totalorder %s28, 1
      %p439 = scmp.ne.s32.totalorder %s434, %s436
      %p440 = scmp.eq.s32.totalorder %s28, 0
      %p441 = por %p439, %p440
      %p442 = scmp.ne.s32.totalorder %s434, %s436
      %p443 = scmp.eq.s32.totalorder %s33, 1
      %p444 = por %p442, %p443
      %p445 = scmp.ne.s32.totalorder %s436, %s437
      %p446 = scmp.eq.s32.totalorder %s33, 0
      %p447 = por %p445, %p446
      %p448 = scmp.ne.s32.totalorder %s436, %s437
      %p449 = scmp.eq.s32.totalorder %s34, 1
      %p450 = por %p448, %p449
      %p452 = scmp.ne.s32.totalorder %s437, %s451
      %p453 = scmp.eq.s32.totalorder %s34, 0
      %p454 = por %p452, %p453
      %s456 = sadd.s32 %s455, 1
      %p459 = scmp.eq.s32.totalorder %s28, 1
      %p460 = scmp.ne.s32.totalorder %s455, %s457
      %p461 = scmp.eq.s32.totalorder %s28, 0
      %p462 = por %p460, %p461
      %p463 = scmp.ne.s32.totalorder %s455, %s457
      %p464 = scmp.eq.s32.totalorder %s33, 1
      %p465 = por %p463, %p464
      %p466 = scmp.ne.s32.totalorder %s457, %s458
      %p467 = scmp.eq.s32.totalorder %s33, 0
      %p468 = por %p466, %p467
      %p469 = scmp.ne.s32.totalorder %s457, %s458
      %p470 = scmp.eq.s32.totalorder %s34, 1
      %p471 = por %p469, %p470
      %p473 = scmp.ne.s32.totalorder %s458, %s472
      %p474 = scmp.eq.s32.totalorder %s34, 0
      %p475 = por %p473, %p474
      %p476 = scmp.le.s32.totalorder 1, %s28
      %p477 = scmp.lt.s32.totalorder %s28, 3
      %p478 = pnand %p476, %p477
      %p479 = pneg %p478
      // Predicated region
      $region9: #{tpu_custom_call.1} parent=5 // pred_check
        _
      $region10: #{tpu_custom_call.1} parent=5 // pred_check_branch
        %481 = sbr.rel (%p478) target = $region12
      $region11: #{tpu_custom_call.1} parent=5 // pred_region
        %s482 = ssub.s32 %s28, 1
        // Predicated region
        $region13: #{tpu_custom_call.1} parent=11 // pred_check
          %p483 = pneg %p49
        $region14: #{tpu_custom_call.1} parent=11 // pred_check_branch
          %485 = sbr.rel (%p483) target = $region16
        $region15: #{tpu_custom_call.1} parent=11 // pred_region
          _
        $region16: #{tpu_custom_call.1} parent=11 // pred_fallthru
          _
        // Predicated region
        $region17: #{tpu_custom_call.1} parent=11 // pred_check
          %p486 = pneg %p174
        $region18: #{tpu_custom_call.1} parent=11 // pred_check_branch
          %488 = sbr.rel (%p486) target = $region20
        $region19: #{tpu_custom_call.1} parent=11 // pred_region
          _
        $region20: #{tpu_custom_call.1} parent=11 // pred_fallthru
          _
        // Predicated region
        $region21: #{tpu_custom_call.1} parent=11 // pred_check
          %p489 = pneg %p195
        $region22: #{tpu_custom_call.1} parent=11 // pred_check_branch
          %491 = sbr.rel (%p489) target = $region24
        $region23: #{tpu_custom_call.1} parent=11 // pred_region
          _
        $region24: #{tpu_custom_call.1} parent=11 // pred_fallthru
          _
        // Predicated region
        $region25: #{tpu_custom_call.1} parent=11 // pred_check
          %p492 = pneg %p216
        $region26: #{tpu_custom_call.1} parent=11 // pred_check_branch
          %494 = sbr.rel (%p492) target = $region28
        $region27: #{tpu_custom_call.1} parent=11 // pred_region
          _
        $region28: #{tpu_custom_call.1} parent=11 // pred_fallthru
          _
        // Predicated region
        $region29: #{tpu_custom_call.1} parent=11 // pred_check
          %p495 = pneg %p237
        $region30: #{tpu_custom_call.1} parent=11 // pred_check_branch
          %497 = sbr.rel (%p495) target = $region32
        $region31: #{tpu_custom_call.1} parent=11 // pred_region
          _
        $region32: #{tpu_custom_call.1} parent=11 // pred_fallthru
          _
        // Predicated region
        $region33: #{tpu_custom_call.1} parent=11 // pred_check
          %p498 = pneg %p258
        $region34: #{tpu_custom_call.1} parent=11 // pred_check_branch
          %500 = sbr.rel (%p498) target = $region36
        $region35: #{tpu_custom_call.1} parent=11 // pred_region
          _
        $region36: #{tpu_custom_call.1} parent=11 // pred_fallthru
          _
        // Predicated region
        $region37: #{tpu_custom_call.1} parent=11 // pred_check
          %p501 = pneg %p279
        $region38: #{tpu_custom_call.1} parent=11 // pred_check_branch
          %503 = sbr.rel (%p501) target = $region40
        $region39: #{tpu_custom_call.1} parent=11 // pred_region
          _
        $region40: #{tpu_custom_call.1} parent=11 // pred_fallthru
          _
        // Predicated region
        $region41: #{tpu_custom_call.1} parent=11 // pred_check
          %p504 = pneg %p300
        $region42: #{tpu_custom_call.1} parent=11 // pred_check_branch
          %506 = sbr.rel (%p504) target = $region44
        $region43: #{tpu_custom_call.1} parent=11 // pred_region
          _
        $region44: #{tpu_custom_call.1} parent=11 // pred_fallthru
          _
        // Predicated region
        $region45: #{tpu_custom_call.1} parent=11 // pred_check
          %p507 = pneg %p321
        $region46: #{tpu_custom_call.1} parent=11 // pred_check_branch
          %509 = sbr.rel (%p507) target = $region48
        $region47: #{tpu_custom_call.1} parent=11 // pred_region
          _
        $region48: #{tpu_custom_call.1} parent=11 // pred_fallthru
          _
        // Predicated region
        $region49: #{tpu_custom_call.1} parent=11 // pred_check
          %p510 = pneg %p342
        $region50: #{tpu_custom_call.1} parent=11 // pred_check_branch
          %512 = sbr.rel (%p510) target = $region52
        $region51: #{tpu_custom_call.1} parent=11 // pred_region
          _
        $region52: #{tpu_custom_call.1} parent=11 // pred_fallthru
          _
        // Predicated region
        $region53: #{tpu_custom_call.1} parent=11 // pred_check
          %p513 = pneg %p363
        $region54: #{tpu_custom_call.1} parent=11 // pred_check_branch
          %515 = sbr.rel (%p513) target = $region56
        $region55: #{tpu_custom_call.1} parent=11 // pred_region
          _
        $region56: #{tpu_custom_call.1} parent=11 // pred_fallthru
          _
        // Predicated region
        $region57: #{tpu_custom_call.1} parent=11 // pred_check
          %p516 = pneg %p384
        $region58: #{tpu_custom_call.1} parent=11 // pred_check_branch
          %518 = sbr.rel (%p516) target = $region60
        $region59: #{tpu_custom_call.1} parent=11 // pred_region
          _
        $region60: #{tpu_custom_call.1} parent=11 // pred_fallthru
          _
        // Predicated region
        $region61: #{tpu_custom_call.1} parent=11 // pred_check
          %p519 = pneg %p405
        $region62: #{tpu_custom_call.1} parent=11 // pred_check_branch
          %521 = sbr.rel (%p519) target = $region64
        $region63: #{tpu_custom_call.1} parent=11 // pred_region
          _
        $region64: #{tpu_custom_call.1} parent=11 // pred_fallthru
          _
        // Predicated region
        $region65: #{tpu_custom_call.1} parent=11 // pred_check
          %p522 = pneg %p426
        $region66: #{tpu_custom_call.1} parent=11 // pred_check_branch
          %524 = sbr.rel (%p522) target = $region68
        $region67: #{tpu_custom_call.1} parent=11 // pred_region
          _
        $region68: #{tpu_custom_call.1} parent=11 // pred_fallthru
          _
        // Predicated region
        $region69: #{tpu_custom_call.1} parent=11 // pred_check
          %p525 = pneg %p447
        $region70: #{tpu_custom_call.1} parent=11 // pred_check_branch
          %527 = sbr.rel (%p525) target = $region72
        $region71: #{tpu_custom_call.1} parent=11 // pred_region
          _
        $region72: #{tpu_custom_call.1} parent=11 // pred_fallthru
          _
      $region12: #{tpu_custom_call.1} parent=5 // pred_fallthru
        _
      %p528 = scmp.lt.s32.totalorder %s28, 2
      // Predicated region
      $region73: #{tpu_custom_call.1} parent=5 // pred_check
        %p529 = pneg %p528
      $region74: #{tpu_custom_call.1} parent=5 // pred_check_branch
        %531 = sbr.rel (%p529) target = $region76
      $region75: #{tpu_custom_call.1} parent=5 // pred_region
        // Predicated region
        $region77: #{tpu_custom_call.1} parent=75 // pred_check
          %p532 = pneg %p69
        $region78: #{tpu_custom_call.1} parent=75 // pred_check_branch
          %534 = sbr.rel (%p532) target = $region80
        $region79: #{tpu_custom_call.1} parent=75 // pred_region
          %s535 = smul.u32 32, %s28
          %p536 = scmp.lt.s32.totalorder %s535, 63
          %s537 = scalar_select %p536, %s535, 63
          %s538 = smul.addr %s537, 4
          %s539 = scalar_lea.vmem %s1, %s538
          %s540 = smul.u32 32, %s28
        $region80: #{tpu_custom_call.1} parent=75 // pred_fallthru
          _
        // Predicated region
        $region81: #{tpu_custom_call.1} parent=75 // pred_check
          %p541 = pneg %p95
        $region82: #{tpu_custom_call.1} parent=75 // pred_check_branch
          %543 = sbr.rel (%p541) target = $region84
        $region83: #{tpu_custom_call.1} parent=75 // pred_region
          %s544 = smul.u32 32, %s28
          %p545 = scmp.lt.s32.totalorder %s544, 63
          %s546 = scalar_select %p545, %s544, 63
          %s547 = smul.addr %s546, 8
          %s548 = scalar_lea.vmem %s2, %s547
          %s549 = smul.u32 32, %s28
        $region84: #{tpu_custom_call.1} parent=75 // pred_fallthru
          _
        // Predicated region
        $region85: #{tpu_custom_call.1} parent=75 // pred_check
          %p550 = pneg %p121
        $region86: #{tpu_custom_call.1} parent=75 // pred_check_branch
          %552 = sbr.rel (%p550) target = $region88
        $region87: #{tpu_custom_call.1} parent=75 // pred_region
          %s553 = smul.u32 32, %s28
          %p554 = scmp.lt.s32.totalorder %s553, 63
          %s555 = scalar_select %p554, %s553, 63
          %s556 = smul.addr %s555, 8
          %s557 = scalar_lea.vmem %s3, %s556
          %s558 = smul.u32 32, %s28
        $region88: #{tpu_custom_call.1} parent=75 // pred_fallthru
          _
        // Predicated region
        $region89: #{tpu_custom_call.1} parent=75 // pred_check
          %p559 = pneg %p147
        $region90: #{tpu_custom_call.1} parent=75 // pred_check_branch
          %561 = sbr.rel (%p559) target = $region92
        $region91: #{tpu_custom_call.1} parent=75 // pred_region
          %s562 = smul.u32 2, %s28
          %p563 = scmp.lt.s32.totalorder %s562, 3
          %s564 = scalar_select %p563, %s562, 3
          %s565 = scalar_lea.vmem %s4, %s564
          %s566 = smul.u32 2, %s28
        $region92: #{tpu_custom_call.1} parent=75 // pred_fallthru
          _
      $region76: #{tpu_custom_call.1} parent=5 // pred_fallthru
        _
      %p567 = scmp.le.s32.totalorder 1, %s28
      %p568 = scmp.lt.s32.totalorder %s28, 3
      %p569 = pnand %p567, %p568
      %p570 = pneg %p569
      // Predicated region
      $region93: #{tpu_custom_call.1} parent=5 // pred_check
        _
      $region94: #{tpu_custom_call.1} parent=5 // pred_check_branch
        %572 = sbr.rel (%p569) target = $region96
      $region95: #{tpu_custom_call.1} parent=5 // pred_region
        %s573 = ssub.s32 %s28, 1
        %p574 = pneg %p49
        %p575 = pneg %p46
        %s576 = smul.u32 32, %s33
        %p577 = scmp.lt.s32.totalorder %s576, 63
        %s578 = scalar_select %p577, %s576, 63
        %s579 = smul.addr %s578, 4
        %s580 = scalar_lea.vmem %s1, %s579
        %p581 = pneg %p75
        %p582 = pneg %p72
        %s583 = smul.u32 32, %s33
        %p584 = scmp.lt.s32.totalorder %s583, 63
        %s585 = scalar_select %p584, %s583, 63
        %s586 = smul.addr %s585, 8
        %s587 = scalar_lea.vmem %s2, %s586
        %p588 = pneg %p101
        %p589 = pneg %p98
        %s590 = smul.u32 32, %s33
        %p591 = scmp.lt.s32.totalorder %s590, 63
        %s592 = scalar_select %p591, %s590, 63
        %s593 = smul.addr %s592, 8
        %s594 = scalar_lea.vmem %s3, %s593
        %p595 = pneg %p127
        %p596 = pneg %p124
        %s597 = smul.u32 2, %s33
        %p598 = scmp.lt.s32.totalorder %s597, 3
        %s599 = scalar_select %p598, %s597, 3
        %s600 = scalar_lea.vmem %s4, %s599
        %p601 = pneg %p153
        %p602 = pneg %p150
        %p603 = pneg %p174
        %p604 = pneg %p171
        %p605 = pneg %p195
        %p606 = pneg %p192
        %p607 = pneg %p216
        %p608 = pneg %p213
        %p609 = pneg %p237
        %p610 = pneg %p234
        %p611 = pneg %p258
        %p612 = pneg %p255
        %p613 = pneg %p279
        %p614 = pneg %p276
        %p615 = pneg %p300
        %p616 = pneg %p297
        %p617 = pneg %p321
        %p618 = pneg %p318
        %p619 = pneg %p342
        %p620 = pneg %p339
        %p621 = pneg %p363
        %p622 = pneg %p360
        %p623 = pneg %p384
        %p624 = pneg %p381
        %p625 = pneg %p405
        %p626 = pneg %p402
        %p627 = pneg %p426
        %p628 = pneg %p423
        %p629 = pneg %p447
        %p630 = pneg %p444
        %p631 = pneg %p468
        %p632 = pneg %p465
        %s633 = smul.u32 32, %s33
        %p634 = scmp.lt.s32.totalorder %s633, 63
        %s635 = scalar_select %p634, %s633, 63
        %s636 = smul.addr %s635, 4
        %s637 = scalar_lea.vmem %s1, %s636
        %s638 = smul.u32 32, %s33
        %s639 = smul.u32 32, %s33
        %p640 = scmp.lt.s32.totalorder %s639, 63
        %s641 = scalar_select %p640, %s639, 63
        %s642 = smul.addr %s641, 8
        %s643 = scalar_lea.vmem %s2, %s642
        %s644 = smul.u32 32, %s33
        %s645 = smul.u32 32, %s33
        %p646 = scmp.lt.s32.totalorder %s645, 63
        %s647 = scalar_select %p646, %s645, 63
        %s648 = smul.addr %s647, 8
        %s649 = scalar_lea.vmem %s3, %s648
        %s650 = smul.u32 32, %s33
        %s651 = smul.u32 2, %s33
        %p652 = scmp.lt.s32.totalorder %s651, 3
        %s653 = scalar_select %p652, %s651, 3
        %s654 = scalar_lea.vmem %s4, %s653
        %s655 = smul.u32 2, %s33
        %p657 = scmp.eq.s32.totalorder %s33, 0
        // Predicated region
        $region97: #{tpu_custom_call.1} parent=95 // pred_check
          %p658 = pneg %p657
        $region98: #{tpu_custom_call.1} parent=95 // pred_check_branch
          %660 = sbr.rel (%p658) target = $region100
        $region99: #{tpu_custom_call.1} parent=95 // pred_region
          %v661 = vld [vmem:[%s0] sm:$0xff]
          %v662 = vld [vmem:[%s0 + $0x8] sm:$0xff]
          %v663 = vld [vmem:[%s0 + $0x10] sm:$0xff]
          %v664 = vld [vmem:[%s0 + $0x18] sm:$0xff]
          %v665 = vld [vmem:[%s0 + $0x20] sm:$0xff]
          %v666 = vld [vmem:[%s0 + $0x28] sm:$0xff]
          %v667 = vld [vmem:[%s0 + $0x30] sm:$0xff]
          %v668 = vld [vmem:[%s0 + $0x38] sm:$0xff]
          %v669 = vld [vmem:[%s0 + $0x40] sm:$0xff]
          %v670 = vld [vmem:[%s0 + $0x48] sm:$0xff]
          %v671 = vld [vmem:[%s0 + $0x50] sm:$0xff]
          %v672 = vld [vmem:[%s0 + $0x58] sm:$0xff]
          %v673 = vld [vmem:[%s0 + $0x60] sm:$0xff]
          %v674 = vld [vmem:[%s0 + $0x68] sm:$0xff]
          %v675 = vld [vmem:[%s0 + $0x70] sm:$0xff]
          %v676 = vld [vmem:[%s0 + $0x78] sm:$0xff]
          %v677 = vld [vmem:[%s5] sm:$0xff]
          %v678 = vld [vmem:[%s5 + $0x8] sm:$0xff]
          %v679 = vld [vmem:[%s6] sm:$0x1]
          %v681 = vperm.slane %v679, 0
          %vm683 = vcmask 130048
          %v685 = vsel %vm683, %v661, 0
          %v688 = vsel %vm683, %v662, 0
          %v691 = vsel %vm683, %v663, 0
          %v694 = vsel %vm683, %v664, 0
          %v697 = vsel %vm683, %v665, 0
          %v700 = vsel %vm683, %v666, 0
          %v703 = vsel %vm683, %v667, 0
          %v706 = vsel %vm683, %v668, 0
          %v709 = vsel %vm683, %v669, 0
          %v712 = vsel %vm683, %v670, 0
          %v715 = vsel %vm683, %v671, 0
          %v718 = vsel %vm683, %v672, 0
          %v721 = vsel %vm683, %v673, 0
          %v724 = vsel %vm683, %v674, 0
          %v727 = vsel %vm683, %v675, 0
          %v730 = vsel %vm683, %v676, 0
          %732 = vmatpush.msra.mxu0 0.0
          %733 = vmatpush.msra.mxu0 0.0
          %734 = vmatpush.msra.mxu0 0.0
          %735 = vmatpush.msra.mxu0 0.0
          %736 = vmatpush.msra.mxu0 0.0
          %737 = vmatpush.msra.mxu0 0.0
          %738 = vmatpush.msra.mxu0 0.0
          %739 = vmatpush.msra.mxu0 0.0
          %740 = vmatpush.msra.mxu0 0.0
          %741 = vmatpush.msra.mxu0 0.0
          %742 = vmatpush.msra.mxu0 0.0
          %743 = vmatpush.msra.mxu0 0.0
          %744 = vmatpush.msra.mxu0 0.0
          %745 = vmatpush.msra.mxu0 0.0
          %746 = vmatpush.msra.mxu0 %v678
          %747 = vmatpush.msra.mxu0 %v677
          %748 = vmatmul.f32.gmra.mxu0 %v685
          %v749 = vpop.f32.mrf.mxu0
          %v750 = vadd.f32 %v681, %v749
          %751 = vmatmul.f32.gmra.mxu0 %v688
          %v752 = vpop.f32.mrf.mxu0
          %v753 = vadd.f32 %v681, %v752
          %754 = vmatmul.f32.gmra.mxu0 %v691
          %v755 = vpop.f32.mrf.mxu0
          %v756 = vadd.f32 %v681, %v755
          %757 = vmatmul.f32.gmra.mxu0 %v694
          %v758 = vpop.f32.mrf.mxu0
          %v759 = vadd.f32 %v681, %v758
          %760 = vmatmul.f32.gmra.mxu0 %v697
          %v761 = vpop.f32.mrf.mxu0
          %v762 = vadd.f32 %v681, %v761
          %763 = vmatmul.f32.gmra.mxu0 %v700
          %v764 = vpop.f32.mrf.mxu0
          %v765 = vadd.f32 %v681, %v764
          %766 = vmatmul.f32.gmra.mxu0 %v703
          %v767 = vpop.f32.mrf.mxu0
          %v768 = vadd.f32 %v681, %v767
          %769 = vmatmul.f32.gmra.mxu0 %v706
          %v770 = vpop.f32.mrf.mxu0
          %v771 = vadd.f32 %v681, %v770
          %772 = vmatmul.f32.gmra.mxu0 %v709
          %v773 = vpop.f32.mrf.mxu0
          %v774 = vadd.f32 %v681, %v773
          %775 = vmatmul.f32.gmra.mxu0 %v712
          %v776 = vpop.f32.mrf.mxu0
          %v777 = vadd.f32 %v681, %v776
          %778 = vmatmul.f32.gmra.mxu0 %v715
          %v779 = vpop.f32.mrf.mxu0
          %v780 = vadd.f32 %v681, %v779
          %781 = vmatmul.f32.gmra.mxu0 %v718
          %v782 = vpop.f32.mrf.mxu0
          %v783 = vadd.f32 %v681, %v782
          %784 = vmatmul.f32.gmra.mxu0 %v721
          %v785 = vpop.f32.mrf.mxu0
          %v786 = vadd.f32 %v681, %v785
          %787 = vmatmul.f32.gmra.mxu0 %v724
          %v788 = vpop.f32.mrf.mxu0
          %v789 = vadd.f32 %v681, %v788
          %790 = vmatmul.f32.gmra.mxu0 %v727
          %v791 = vpop.f32.mrf.mxu0
          %v792 = vadd.f32 %v681, %v791
          %793 = vmatmul.f32.gmra.mxu0 %v730
          %v794 = vpop.f32.mrf.mxu0
          %v795 = vadd.f32 %v681, %v794
          %796 = vdwg.mxu0
          %v797 = vld [vmem:[%s7] sm:$0xff]
          %v798 = vld [vmem:[%s7 + $0x8] sm:$0xff]
          %v799 = vld [vmem:[%s8] sm:$0x1]
          %v801 = vperm.slane %v799, 0
          %803 = vmatpush.msra.mxu0 0.0
          %804 = vmatpush.msra.mxu0 0.0
          %805 = vmatpush.msra.mxu0 0.0
          %806 = vmatpush.msra.mxu0 0.0
          %807 = vmatpush.msra.mxu0 0.0
          %808 = vmatpush.msra.mxu0 0.0
          %809 = vmatpush.msra.mxu0 0.0
          %810 = vmatpush.msra.mxu0 0.0
          %811 = vmatpush.msra.mxu0 0.0
          %812 = vmatpush.msra.mxu0 0.0
          %813 = vmatpush.msra.mxu0 0.0
          %814 = vmatpush.msra.mxu0 0.0
          %815 = vmatpush.msra.mxu0 0.0
          %816 = vmatpush.msra.mxu0 0.0
          %817 = vmatpush.msra.mxu0 %v798
          %818 = vmatpush.msra.mxu0 %v797
          %819 = vmatmul.f32.gmra.mxu0 %v685
          %v820 = vpop.f32.mrf.mxu0
          %v821 = vadd.f32 %v801, %v820
          %822 = vmatmul.f32.gmra.mxu0 %v688
          %v823 = vpop.f32.mrf.mxu0
          %v824 = vadd.f32 %v801, %v823
          %825 = vmatmul.f32.gmra.mxu0 %v691
          %v826 = vpop.f32.mrf.mxu0
          %v827 = vadd.f32 %v801, %v826
          %828 = vmatmul.f32.gmra.mxu0 %v694
          %v829 = vpop.f32.mrf.mxu0
          %v830 = vadd.f32 %v801, %v829
          %831 = vmatmul.f32.gmra.mxu0 %v697
          %v832 = vpop.f32.mrf.mxu0
          %v833 = vadd.f32 %v801, %v832
          %834 = vmatmul.f32.gmra.mxu0 %v700
          %v835 = vpop.f32.mrf.mxu0
          %v836 = vadd.f32 %v801, %v835
          %837 = vmatmul.f32.gmra.mxu0 %v703
          %v838 = vpop.f32.mrf.mxu0
          %v839 = vadd.f32 %v801, %v838
          %840 = vmatmul.f32.gmra.mxu0 %v706
          %v841 = vpop.f32.mrf.mxu0
          %v842 = vadd.f32 %v801, %v841
          %843 = vmatmul.f32.gmra.mxu0 %v709
          %v844 = vpop.f32.mrf.mxu0
          %v845 = vadd.f32 %v801, %v844
          %846 = vmatmul.f32.gmra.mxu0 %v712
          %v847 = vpop.f32.mrf.mxu0
          %v848 = vadd.f32 %v801, %v847
          %849 = vmatmul.f32.gmra.mxu0 %v715
          %v850 = vpop.f32.mrf.mxu0
          %v851 = vadd.f32 %v801, %v850
          %852 = vmatmul.f32.gmra.mxu0 %v718
          %v853 = vpop.f32.mrf.mxu0
          %v854 = vadd.f32 %v801, %v853
          %855 = vmatmul.f32.gmra.mxu0 %v721
          %v856 = vpop.f32.mrf.mxu0
          %v857 = vadd.f32 %v801, %v856
          %858 = vmatmul.f32.gmra.mxu0 %v724
          %v859 = vpop.f32.mrf.mxu0
          %v860 = vadd.f32 %v801, %v859
          %861 = vmatmul.f32.gmra.mxu0 %v727
          %v862 = vpop.f32.mrf.mxu0
          %v863 = vadd.f32 %v801, %v862
          %864 = vmatmul.f32.gmra.mxu0 %v730
          %v865 = vpop.f32.mrf.mxu0
          %v866 = vadd.f32 %v801, %v865
          %867 = vdwg.mxu0
          %v868 = vpack.c.bf16 %v750, %v750
          %v869 = vpack.c.bf16 %v753, %v753
          %v870 = vpack.c.bf16 %v756, %v756
          %v871 = vpack.c.bf16 %v759, %v759
          %v872 = vpack.c.bf16 %v762, %v762
          %v873 = vpack.c.bf16 %v765, %v765
          %v874 = vpack.c.bf16 %v768, %v768
          %v875 = vpack.c.bf16 %v771, %v771
          %v876 = vpack.c.bf16 %v774, %v774
          %v877 = vpack.c.bf16 %v777, %v777
          %v878 = vpack.c.bf16 %v780, %v780
          %v879 = vpack.c.bf16 %v783, %v783
          %v880 = vpack.c.bf16 %v786, %v786
          %v881 = vpack.c.bf16 %v789, %v789
          %v882 = vpack.c.bf16 %v792, %v792
          %v883 = vpack.c.bf16 %v795, %v795
          %884 = vst [vmem:[#allocation2] sm:$0xf] %v868
          %885 = vst [vmem:[#allocation2 + $0x4] sm:$0xf] %v869
          %886 = vst [vmem:[#allocation2 + $0x8] sm:$0xf] %v870
          %887 = vst [vmem:[#allocation2 + $0xc] sm:$0xf] %v871
          %888 = vst [vmem:[#allocation2 + $0x10] sm:$0xf] %v872
          %889 = vst [vmem:[#allocation2 + $0x14] sm:$0xf] %v873
          %890 = vst [vmem:[#allocation2 + $0x18] sm:$0xf] %v874
          %891 = vst [vmem:[#allocation2 + $0x1c] sm:$0xf] %v875
          %892 = vst [vmem:[#allocation2 + $0x20] sm:$0xf] %v876
          %893 = vst [vmem:[#allocation2 + $0x24] sm:$0xf] %v877
          %894 = vst [vmem:[#allocation2 + $0x28] sm:$0xf] %v878
          %895 = vst [vmem:[#allocation2 + $0x2c] sm:$0xf] %v879
          %896 = vst [vmem:[#allocation2 + $0x30] sm:$0xf] %v880
          %897 = vst [vmem:[#allocation2 + $0x34] sm:$0xf] %v881
          %898 = vst [vmem:[#allocation2 + $0x38] sm:$0xf] %v882
          %899 = vst [vmem:[#allocation2 + $0x3c] sm:$0xf] %v883
          %900 = vst [vmem:[#allocation4] sm:$0xff] %v821
          %901 = vst [vmem:[#allocation4 + $0x8] sm:$0xff] %v824
          %902 = vst [vmem:[#allocation4 + $0x10] sm:$0xff] %v827
          %903 = vst [vmem:[#allocation4 + $0x18] sm:$0xff] %v830
          %904 = vst [vmem:[#allocation4 + $0x20] sm:$0xff] %v833
          %905 = vst [vmem:[#allocation4 + $0x28] sm:$0xff] %v836
          %906 = vst [vmem:[#allocation4 + $0x30] sm:$0xff] %v839
          %907 = vst [vmem:[#allocation4 + $0x38] sm:$0xff] %v842
          %908 = vst [vmem:[#allocation4 + $0x40] sm:$0xff] %v845
          %909 = vst [vmem:[#allocation4 + $0x48] sm:$0xff] %v848
          %910 = vst [vmem:[#allocation4 + $0x50] sm:$0xff] %v851
          %911 = vst [vmem:[#allocation4 + $0x58] sm:$0xff] %v854
          %912 = vst [vmem:[#allocation4 + $0x60] sm:$0xff] %v857
          %913 = vst [vmem:[#allocation4 + $0x68] sm:$0xff] %v860
          %914 = vst [vmem:[#allocation4 + $0x70] sm:$0xff] %v863
          %915 = vst [vmem:[#allocation4 + $0x78] sm:$0xff] %v866
          %v916 = vld [vmem:[%s9] sm:$0xff]
          %v917 = vld [vmem:[%s9 + $0x8] sm:$0xff]
          %v918 = vld [vmem:[%s9 + $0x10] sm:$0xff]
          %v919 = vld [vmem:[%s9 + $0x18] sm:$0xff]
          %v920 = vld [vmem:[%s9 + $0x20] sm:$0xff]
          %v921 = vld [vmem:[%s9 + $0x28] sm:$0xff]
          %v922 = vld [vmem:[%s9 + $0x30] sm:$0xff]
          %v923 = vld [vmem:[%s9 + $0x38] sm:$0xff]
          %v924 = vld [vmem:[%s9 + $0x40] sm:$0xff]
          %v925 = vld [vmem:[%s9 + $0x48] sm:$0xff]
          %v926 = vld [vmem:[%s9 + $0x50] sm:$0xff]
          %v927 = vld [vmem:[%s9 + $0x58] sm:$0xff]
          %v928 = vld [vmem:[%s9 + $0x60] sm:$0xff]
          %v929 = vld [vmem:[%s9 + $0x68] sm:$0xff]
          %v930 = vld [vmem:[%s9 + $0x70] sm:$0xff]
          %v931 = vld [vmem:[%s9 + $0x78] sm:$0xff]
          %932 = vmatpush.msra.mxu0 %v931
          %933 = vmatpush.msra.mxu0 %v930
          %934 = vmatpush.msra.mxu0 %v929
          %935 = vmatpush.msra.mxu0 %v928
          %936 = vmatpush.msra.mxu0 %v927
          %937 = vmatpush.msra.mxu0 %v926
          %938 = vmatpush.msra.mxu0 %v925
          %939 = vmatpush.msra.mxu0 %v924
          %940 = vmatpush.msra.mxu0 %v923
          %941 = vmatpush.msra.mxu0 %v922
          %942 = vmatpush.msra.mxu0 %v921
          %943 = vmatpush.msra.mxu0 %v920
          %944 = vmatpush.msra.mxu0 %v919
          %945 = vmatpush.msra.mxu0 %v918
          %946 = vmatpush.msra.mxu0 %v917
          %947 = vmatpush.msra.mxu0 %v916
          %948 = vmatmul.f32.gmra.mxu0 %v821
          %v949 = vpop.f32.mrf.mxu0
          %v950 = vadd.f32 0.0, %v949
          %951 = vmatmul.f32.gmra.mxu0 %v824
          %v952 = vpop.f32.mrf.mxu0
          %v953 = vadd.f32 0.0, %v952
          %954 = vmatmul.f32.gmra.mxu0 %v827
          %v955 = vpop.f32.mrf.mxu0
          %v956 = vadd.f32 0.0, %v955
          %957 = vmatmul.f32.gmra.mxu0 %v830
          %v958 = vpop.f32.mrf.mxu0
          %v959 = vadd.f32 0.0, %v958
          %960 = vmatmul.f32.gmra.mxu0 %v833
          %v961 = vpop.f32.mrf.mxu0
          %v962 = vadd.f32 0.0, %v961
          %963 = vmatmul.f32.gmra.mxu0 %v836
          %v964 = vpop.f32.mrf.mxu0
          %v965 = vadd.f32 0.0, %v964
          %966 = vmatmul.f32.gmra.mxu0 %v839
          %v967 = vpop.f32.mrf.mxu0
          %v968 = vadd.f32 0.0, %v967
          %969 = vmatmul.f32.gmra.mxu0 %v842
          %v970 = vpop.f32.mrf.mxu0
          %v971 = vadd.f32 0.0, %v970
          %972 = vmatmul.f32.gmra.mxu0 %v845
          %v973 = vpop.f32.mrf.mxu0
          %v974 = vadd.f32 0.0, %v973
          %975 = vmatmul.f32.gmra.mxu0 %v848
          %v976 = vpop.f32.mrf.mxu0
          %v977 = vadd.f32 0.0, %v976
          %978 = vmatmul.f32.gmra.mxu0 %v851
          %v979 = vpop.f32.mrf.mxu0
          %v980 = vadd.f32 0.0, %v979
          %981 = vmatmul.f32.gmra.mxu0 %v854
          %v982 = vpop.f32.mrf.mxu0
          %v983 = vadd.f32 0.0, %v982
          %984 = vmatmul.f32.gmra.mxu0 %v857
          %v985 = vpop.f32.mrf.mxu0
          %v986 = vadd.f32 0.0, %v985
          %987 = vmatmul.f32.gmra.mxu0 %v860
          %v988 = vpop.f32.mrf.mxu0
          %v989 = vadd.f32 0.0, %v988
          %990 = vmatmul.f32.gmra.mxu0 %v863
          %v991 = vpop.f32.mrf.mxu0
          %v992 = vadd.f32 0.0, %v991
          %993 = vmatmul.f32.gmra.mxu0 %v866
          %v994 = vpop.f32.mrf.mxu0
          %v995 = vadd.f32 0.0, %v994
          %996 = vdwg.mxu0
          %v997 = vpack.c.bf16 %v950, %v950
          %v998 = vpack.c.bf16 %v953, %v953
          %v999 = vpack.c.bf16 %v956, %v956
          %v1000 = vpack.c.bf16 %v959, %v959
          %v1001 = vpack.c.bf16 %v962, %v962
          %v1002 = vpack.c.bf16 %v965, %v965
          %v1003 = vpack.c.bf16 %v968, %v968
          %v1004 = vpack.c.bf16 %v971, %v971
          %v1005 = vpack.c.bf16 %v974, %v974
          %v1006 = vpack.c.bf16 %v977, %v977
          %v1007 = vpack.c.bf16 %v980, %v980
          %v1008 = vpack.c.bf16 %v983, %v983
          %v1009 = vpack.c.bf16 %v986, %v986
          %v1010 = vpack.c.bf16 %v989, %v989
          %v1011 = vpack.c.bf16 %v992, %v992
          %v1012 = vpack.c.bf16 %v995, %v995
          %1013 = vst [vmem:[#allocation3] sm:$0xf] %v997
          %1014 = vst [vmem:[#allocation3 + $0x4] sm:$0xf] %v998
          %1015 = vst [vmem:[#allocation3 + $0x8] sm:$0xf] %v999
          %1016 = vst [vmem:[#allocation3 + $0xc] sm:$0xf] %v1000
          %1017 = vst [vmem:[#allocation3 + $0x10] sm:$0xf] %v1001
          %1018 = vst [vmem:[#allocation3 + $0x14] sm:$0xf] %v1002
          %1019 = vst [vmem:[#allocation3 + $0x18] sm:$0xf] %v1003
          %1020 = vst [vmem:[#allocation3 + $0x1c] sm:$0xf] %v1004
          %1021 = vst [vmem:[#allocation3 + $0x20] sm:$0xf] %v1005
          %1022 = vst [vmem:[#allocation3 + $0x24] sm:$0xf] %v1006
          %1023 = vst [vmem:[#allocation3 + $0x28] sm:$0xf] %v1007
          %1024 = vst [vmem:[#allocation3 + $0x2c] sm:$0xf] %v1008
          %1025 = vst [vmem:[#allocation3 + $0x30] sm:$0xf] %v1009
          %1026 = vst [vmem:[#allocation3 + $0x34] sm:$0xf] %v1010
          %1027 = vst [vmem:[#allocation3 + $0x38] sm:$0xf] %v1011
          %1028 = vst [vmem:[#allocation3 + $0x3c] sm:$0xf] %v1012
          %1029 = vst [vmem:[#allocation6] sm:$0xff] 0.0
          %1030 = vst [vmem:[#allocation6 + $0x8] sm:$0xff] 0.0
          %1031 = vst [vmem:[#allocation6 + $0x10] sm:$0xff] 0.0
          %1032 = vst [vmem:[#allocation6 + $0x18] sm:$0xff] 0.0
          %1033 = vst [vmem:[#allocation6 + $0x20] sm:$0xff] 0.0
          %1034 = vst [vmem:[#allocation6 + $0x28] sm:$0xff] 0.0
          %1035 = vst [vmem:[#allocation6 + $0x30] sm:$0xff] 0.0
          %1036 = vst [vmem:[#allocation6 + $0x38] sm:$0xff] 0.0
          %1037 = vst [vmem:[#allocation6 + $0x40] sm:$0xff] 0.0
          %1038 = vst [vmem:[#allocation6 + $0x48] sm:$0xff] 0.0
          %1039 = vst [vmem:[#allocation6 + $0x50] sm:$0xff] 0.0
          %1040 = vst [vmem:[#allocation6 + $0x58] sm:$0xff] 0.0
          %1041 = vst [vmem:[#allocation6 + $0x60] sm:$0xff] 0.0
          %1042 = vst [vmem:[#allocation6 + $0x68] sm:$0xff] 0.0
          %1043 = vst [vmem:[#allocation6 + $0x70] sm:$0xff] 0.0
          %1044 = vst [vmem:[#allocation6 + $0x78] sm:$0xff] 0.0
        $region100: #{tpu_custom_call.1} parent=95 // pred_fallthru
          _
        %v1045 = vlaneseq
        %v1046 = vand.u32 %v1045, 127
        %v1047 = vld [vmem:[%s643] sm:$0xff]
        %v1048 = vld [vmem:[%s643 + $0x8] sm:$0xff]
        %v1049 = vld [vmem:[%s643 + $0x10] sm:$0xff]
        %v1050 = vld [vmem:[%s643 + $0x18] sm:$0xff]
        %v1051 = vld [vmem:[%s643 + $0x20] sm:$0xff]
        %v1052 = vld [vmem:[%s643 + $0x28] sm:$0xff]
        %v1053 = vld [vmem:[%s643 + $0x30] sm:$0xff]
        %v1054 = vld [vmem:[%s643 + $0x38] sm:$0xff]
        %v1055 = vld [vmem:[%s643 + $0x40] sm:$0xff]
        %v1056 = vld [vmem:[%s643 + $0x48] sm:$0xff]
        %v1057 = vld [vmem:[%s643 + $0x50] sm:$0xff]
        %v1058 = vld [vmem:[%s643 + $0x58] sm:$0xff]
        %v1059 = vld [vmem:[%s643 + $0x60] sm:$0xff]
        %v1060 = vld [vmem:[%s643 + $0x68] sm:$0xff]
        %v1061 = vld [vmem:[%s643 + $0x70] sm:$0xff]
        %v1062 = vld [vmem:[%s643 + $0x78] sm:$0xff]
        %v1063 = vld [vmem:[%s643 + $0x80] sm:$0xff]
        %v1064 = vld [vmem:[%s643 + $0x88] sm:$0xff]
        %v1065 = vld [vmem:[%s643 + $0x90] sm:$0xff]
        %v1066 = vld [vmem:[%s643 + $0x98] sm:$0xff]
        %v1067 = vld [vmem:[%s643 + $0xa0] sm:$0xff]
        %v1068 = vld [vmem:[%s643 + $0xa8] sm:$0xff]
        %v1069 = vld [vmem:[%s643 + $0xb0] sm:$0xff]
        %v1070 = vld [vmem:[%s643 + $0xb8] sm:$0xff]
        %v1071 = vld [vmem:[%s643 + $0xc0] sm:$0xff]
        %v1072 = vld [vmem:[%s643 + $0xc8] sm:$0xff]
        %v1073 = vld [vmem:[%s643 + $0xd0] sm:$0xff]
        %v1074 = vld [vmem:[%s643 + $0xd8] sm:$0xff]
        %v1075 = vld [vmem:[%s643 + $0xe0] sm:$0xff]
        %v1076 = vld [vmem:[%s643 + $0xe8] sm:$0xff]
        %v1077 = vld [vmem:[%s643 + $0xf0] sm:$0xff]
        %v1078 = vld [vmem:[%s643 + $0xf8] sm:$0xff]
        %1079 = vset.pattern.permute.xlu0 0
        %1080 = vperm.xlu0 %1079, %v1047
        %v1081 = vpop.permute.xlu0 %1080
        %1082 = vset.pattern.permute.xlu0 0
        %1083 = vperm.xlu0 %1082, %v1048
        %v1084 = vpop.permute.xlu0 %1083
        %1085 = vset.pattern.permute.xlu0 0
        %1086 = vperm.xlu0 %1085, %v1049
        %v1087 = vpop.permute.xlu0 %1086
        %1088 = vset.pattern.permute.xlu0 0
        %1089 = vperm.xlu0 %1088, %v1050
        %v1090 = vpop.permute.xlu0 %1089
        %1091 = vset.pattern.permute.xlu0 0
        %1092 = vperm.xlu0 %1091, %v1051
        %v1093 = vpop.permute.xlu0 %1092
        %1094 = vset.pattern.permute.xlu0 0
        %1095 = vperm.xlu0 %1094, %v1052
        %v1096 = vpop.permute.xlu0 %1095
        %1097 = vset.pattern.permute.xlu0 0
        %1098 = vperm.xlu0 %1097, %v1053
        %v1099 = vpop.permute.xlu0 %1098
        %1100 = vset.pattern.permute.xlu0 0
        %1101 = vperm.xlu0 %1100, %v1054
        %v1102 = vpop.permute.xlu0 %1101
        %1103 = vset.pattern.permute.xlu0 0
        %1104 = vperm.xlu0 %1103, %v1055
        %v1105 = vpop.permute.xlu0 %1104
        %1106 = vset.pattern.permute.xlu0 0
        %1107 = vperm.xlu0 %1106, %v1056
        %v1108 = vpop.permute.xlu0 %1107
        %1109 = vset.pattern.permute.xlu0 0
        %1110 = vperm.xlu0 %1109, %v1057
        %v1111 = vpop.permute.xlu0 %1110
        %1112 = vset.pattern.permute.xlu0 0
        %1113 = vperm.xlu0 %1112, %v1058
        %v1114 = vpop.permute.xlu0 %1113
        %1115 = vset.pattern.permute.xlu0 0
        %1116 = vperm.xlu0 %1115, %v1059
        %v1117 = vpop.permute.xlu0 %1116
        %1118 = vset.pattern.permute.xlu0 0
        %1119 = vperm.xlu0 %1118, %v1060
        %v1120 = vpop.permute.xlu0 %1119
        %1121 = vset.pattern.permute.xlu0 0
        %1122 = vperm.xlu0 %1121, %v1061
        %v1123 = vpop.permute.xlu0 %1122
        %1124 = vset.pattern.permute.xlu0 0
        %1125 = vperm.xlu0 %1124, %v1062
        %v1126 = vpop.permute.xlu0 %1125
        %1127 = vset.pattern.permute.xlu0 0
        %1128 = vperm.xlu0 %1127, %v1063
        %v1129 = vpop.permute.xlu0 %1128
        %1130 = vset.pattern.permute.xlu0 0
        %1131 = vperm.xlu0 %1130, %v1064
        %v1132 = vpop.permute.xlu0 %1131
        %1133 = vset.pattern.permute.xlu0 0
        %1134 = vperm.xlu0 %1133, %v1065
        %v1135 = vpop.permute.xlu0 %1134
        %1136 = vset.pattern.permute.xlu0 0
        %1137 = vperm.xlu0 %1136, %v1066
        %v1138 = vpop.permute.xlu0 %1137
        %1139 = vset.pattern.permute.xlu0 0
        %1140 = vperm.xlu0 %1139, %v1067
        %v1141 = vpop.permute.xlu0 %1140
        %1142 = vset.pattern.permute.xlu0 0
        %1143 = vperm.xlu0 %1142, %v1068
        %v1144 = vpop.permute.xlu0 %1143
        %1145 = vset.pattern.permute.xlu0 0
        %1146 = vperm.xlu0 %1145, %v1069
        %v1147 = vpop.permute.xlu0 %1146
        %1148 = vset.pattern.permute.xlu0 0
        %1149 = vperm.xlu0 %1148, %v1070
        %v1150 = vpop.permute.xlu0 %1149
        %1151 = vset.pattern.permute.xlu0 0
        %1152 = vperm.xlu0 %1151, %v1071
        %v1153 = vpop.permute.xlu0 %1152
        %1154 = vset.pattern.permute.xlu0 0
        %1155 = vperm.xlu0 %1154, %v1072
        %v1156 = vpop.permute.xlu0 %1155
        %1157 = vset.pattern.permute.xlu0 0
        %1158 = vperm.xlu0 %1157, %v1073
        %v1159 = vpop.permute.xlu0 %1158
        %1160 = vset.pattern.permute.xlu0 0
        %1161 = vperm.xlu0 %1160, %v1074
        %v1162 = vpop.permute.xlu0 %1161
        %1163 = vset.pattern.permute.xlu0 0
        %1164 = vperm.xlu0 %1163, %v1075
        %v1165 = vpop.permute.xlu0 %1164
        %1166 = vset.pattern.permute.xlu0 0
        %1167 = vperm.xlu0 %1166, %v1076
        %v1168 = vpop.permute.xlu0 %1167
        %1169 = vset.pattern.permute.xlu0 0
        %1170 = vperm.xlu0 %1169, %v1077
        %v1171 = vpop.permute.xlu0 %1170
        %1172 = vset.pattern.permute.xlu0 0
        %1173 = vperm.xlu0 %1172, %v1078
        %v1174 = vpop.permute.xlu0 %1173
        %vm1175 = vcmp.eq.s32.totalorder %v1046, %v1081
        %vm1176 = vcmp.eq.s32.totalorder %v1046, %v1084
        %vm1177 = vcmp.eq.s32.totalorder %v1046, %v1087
        %vm1178 = vcmp.eq.s32.totalorder %v1046, %v1090
        %vm1179 = vcmp.eq.s32.totalorder %v1046, %v1093
        %vm1180 = vcmp.eq.s32.totalorder %v1046, %v1096
        %vm1181 = vcmp.eq.s32.totalorder %v1046, %v1099
        %vm1182 = vcmp.eq.s32.totalorder %v1046, %v1102
        %vm1183 = vcmp.eq.s32.totalorder %v1046, %v1105
        %vm1184 = vcmp.eq.s32.totalorder %v1046, %v1108
        %vm1185 = vcmp.eq.s32.totalorder %v1046, %v1111
        %vm1186 = vcmp.eq.s32.totalorder %v1046, %v1114
        %vm1187 = vcmp.eq.s32.totalorder %v1046, %v1117
        %vm1188 = vcmp.eq.s32.totalorder %v1046, %v1120
        %vm1189 = vcmp.eq.s32.totalorder %v1046, %v1123
        %vm1190 = vcmp.eq.s32.totalorder %v1046, %v1126
        %vm1191 = vcmp.eq.s32.totalorder %v1046, %v1129
        %vm1192 = vcmp.eq.s32.totalorder %v1046, %v1132
        %vm1193 = vcmp.eq.s32.totalorder %v1046, %v1135
        %vm1194 = vcmp.eq.s32.totalorder %v1046, %v1138
        %vm1195 = vcmp.eq.s32.totalorder %v1046, %v1141
        %vm1196 = vcmp.eq.s32.totalorder %v1046, %v1144
        %vm1197 = vcmp.eq.s32.totalorder %v1046, %v1147
        %vm1198 = vcmp.eq.s32.totalorder %v1046, %v1150
        %vm1199 = vcmp.eq.s32.totalorder %v1046, %v1153
        %vm1200 = vcmp.eq.s32.totalorder %v1046, %v1156
        %vm1201 = vcmp.eq.s32.totalorder %v1046, %v1159
        %vm1202 = vcmp.eq.s32.totalorder %v1046, %v1162
        %vm1203 = vcmp.eq.s32.totalorder %v1046, %v1165
        %vm1204 = vcmp.eq.s32.totalorder %v1046, %v1168
        %vm1205 = vcmp.eq.s32.totalorder %v1046, %v1171
        %vm1206 = vcmp.eq.s32.totalorder %v1046, %v1174
        %v1207 = vsel %vm1175, 1, 0
        %v1208 = vsel %vm1176, 1, 0
        %v1209 = vsel %vm1177, 1, 0
        %v1210 = vsel %vm1178, 1, 0
        %v1211 = vsel %vm1179, 1, 0
        %v1212 = vsel %vm1180, 1, 0
        %v1213 = vsel %vm1181, 1, 0
        %v1214 = vsel %vm1182, 1, 0
        %v1215 = vsel %vm1183, 1, 0
        %v1216 = vsel %vm1184, 1, 0
        %v1217 = vsel %vm1185, 1, 0
        %v1218 = vsel %vm1186, 1, 0
        %v1219 = vsel %vm1187, 1, 0
        %v1220 = vsel %vm1188, 1, 0
        %v1221 = vsel %vm1189, 1, 0
        %v1222 = vsel %vm1190, 1, 0
        %v1223 = vsel %vm1191, 1, 0
        %v1224 = vsel %vm1192, 1, 0
        %v1225 = vsel %vm1193, 1, 0
        %v1226 = vsel %vm1194, 1, 0
        %v1227 = vsel %vm1195, 1, 0
        %v1228 = vsel %vm1196, 1, 0
        %v1229 = vsel %vm1197, 1, 0
        %v1230 = vsel %vm1198, 1, 0
        %v1231 = vsel %vm1199, 1, 0
        %v1232 = vsel %vm1200, 1, 0
        %v1233 = vsel %vm1201, 1, 0
        %v1234 = vsel %vm1202, 1, 0
        %v1235 = vsel %vm1203, 1, 0
        %v1236 = vsel %vm1204, 1, 0
        %v1237 = vsel %vm1205, 1, 0
        %v1238 = vsel %vm1206, 1, 0
        %v1239 = vcvt.s32.f32 %v1207
        %v1240 = vcvt.s32.f32 %v1208
        %v1241 = vcvt.s32.f32 %v1209
        %v1242 = vcvt.s32.f32 %v1210
        %v1243 = vcvt.s32.f32 %v1211
        %v1244 = vcvt.s32.f32 %v1212
        %v1245 = vcvt.s32.f32 %v1213
        %v1246 = vcvt.s32.f32 %v1214
        %v1247 = vcvt.s32.f32 %v1215
        %v1248 = vcvt.s32.f32 %v1216
        %v1249 = vcvt.s32.f32 %v1217
        %v1250 = vcvt.s32.f32 %v1218
        %v1251 = vcvt.s32.f32 %v1219
        %v1252 = vcvt.s32.f32 %v1220
        %v1253 = vcvt.s32.f32 %v1221
        %v1254 = vcvt.s32.f32 %v1222
        %v1255 = vcvt.s32.f32 %v1223
        %v1256 = vcvt.s32.f32 %v1224
        %v1257 = vcvt.s32.f32 %v1225
        %v1258 = vcvt.s32.f32 %v1226
        %v1259 = vcvt.s32.f32 %v1227
        %v1260 = vcvt.s32.f32 %v1228
        %v1261 = vcvt.s32.f32 %v1229
        %v1262 = vcvt.s32.f32 %v1230
        %v1263 = vcvt.s32.f32 %v1231
        %v1264 = vcvt.s32.f32 %v1232
        %v1265 = vcvt.s32.f32 %v1233
        %v1266 = vcvt.s32.f32 %v1234
        %v1267 = vcvt.s32.f32 %v1235
        %v1268 = vcvt.s32.f32 %v1236
        %v1269 = vcvt.s32.f32 %v1237
        %v1270 = vcvt.s32.f32 %v1238
        %v1271 = vpack.c.bf16 %v1240, %v1239
        %v1272 = vpack.c.bf16 %v1242, %v1241
        %v1273 = vpack.c.bf16 %v1244, %v1243
        %v1274 = vpack.c.bf16 %v1246, %v1245
        %v1275 = vpack.c.bf16 %v1248, %v1247
        %v1276 = vpack.c.bf16 %v1250, %v1249
        %v1277 = vpack.c.bf16 %v1252, %v1251
        %v1278 = vpack.c.bf16 %v1254, %v1253
        %v1279 = vpack.c.bf16 %v1256, %v1255
        %v1280 = vpack.c.bf16 %v1258, %v1257
        %v1281 = vpack.c.bf16 %v1260, %v1259
        %v1282 = vpack.c.bf16 %v1262, %v1261
        %v1283 = vpack.c.bf16 %v1264, %v1263
        %v1284 = vpack.c.bf16 %v1266, %v1265
        %v1285 = vpack.c.bf16 %v1268, %v1267
        %v1286 = vpack.c.bf16 %v1270, %v1269
        %v1287 = vld [vmem:[%s649] sm:$0xff]
        %v1288 = vld [vmem:[%s649 + $0x8] sm:$0xff]
        %v1289 = vld [vmem:[%s649 + $0x10] sm:$0xff]
        %v1290 = vld [vmem:[%s649 + $0x18] sm:$0xff]
        %v1291 = vld [vmem:[%s649 + $0x20] sm:$0xff]
        %v1292 = vld [vmem:[%s649 + $0x28] sm:$0xff]
        %v1293 = vld [vmem:[%s649 + $0x30] sm:$0xff]
        %v1294 = vld [vmem:[%s649 + $0x38] sm:$0xff]
        %v1295 = vld [vmem:[%s649 + $0x40] sm:$0xff]
        %v1296 = vld [vmem:[%s649 + $0x48] sm:$0xff]
        %v1297 = vld [vmem:[%s649 + $0x50] sm:$0xff]
        %v1298 = vld [vmem:[%s649 + $0x58] sm:$0xff]
        %v1299 = vld [vmem:[%s649 + $0x60] sm:$0xff]
        %v1300 = vld [vmem:[%s649 + $0x68] sm:$0xff]
        %v1301 = vld [vmem:[%s649 + $0x70] sm:$0xff]
        %v1302 = vld [vmem:[%s649 + $0x78] sm:$0xff]
        %v1303 = vld [vmem:[%s649 + $0x80] sm:$0xff]
        %v1304 = vld [vmem:[%s649 + $0x88] sm:$0xff]
        %v1305 = vld [vmem:[%s649 + $0x90] sm:$0xff]
        %v1306 = vld [vmem:[%s649 + $0x98] sm:$0xff]
        %v1307 = vld [vmem:[%s649 + $0xa0] sm:$0xff]
        %v1308 = vld [vmem:[%s649 + $0xa8] sm:$0xff]
        %v1309 = vld [vmem:[%s649 + $0xb0] sm:$0xff]
        %v1310 = vld [vmem:[%s649 + $0xb8] sm:$0xff]
        %v1311 = vld [vmem:[%s649 + $0xc0] sm:$0xff]
        %v1312 = vld [vmem:[%s649 + $0xc8] sm:$0xff]
        %v1313 = vld [vmem:[%s649 + $0xd0] sm:$0xff]
        %v1314 = vld [vmem:[%s649 + $0xd8] sm:$0xff]
        %v1315 = vld [vmem:[%s649 + $0xe0] sm:$0xff]
        %v1316 = vld [vmem:[%s649 + $0xe8] sm:$0xff]
        %v1317 = vld [vmem:[%s649 + $0xf0] sm:$0xff]
        %v1318 = vld [vmem:[%s649 + $0xf8] sm:$0xff]
        %1319 = vset.pattern.permute.xlu0 0
        %1320 = vperm.xlu0 %1319, %v1287
        %v1321 = vpop.permute.xlu0 %1320
        %1322 = vset.pattern.permute.xlu0 0
        %1323 = vperm.xlu0 %1322, %v1288
        %v1324 = vpop.permute.xlu0 %1323
        %1325 = vset.pattern.permute.xlu0 0
        %1326 = vperm.xlu0 %1325, %v1289
        %v1327 = vpop.permute.xlu0 %1326
        %1328 = vset.pattern.permute.xlu0 0
        %1329 = vperm.xlu0 %1328, %v1290
        %v1330 = vpop.permute.xlu0 %1329
        %1331 = vset.pattern.permute.xlu0 0
        %1332 = vperm.xlu0 %1331, %v1291
        %v1333 = vpop.permute.xlu0 %1332
        %1334 = vset.pattern.permute.xlu0 0
        %1335 = vperm.xlu0 %1334, %v1292
        %v1336 = vpop.permute.xlu0 %1335
        %1337 = vset.pattern.permute.xlu0 0
        %1338 = vperm.xlu0 %1337, %v1293
        %v1339 = vpop.permute.xlu0 %1338
        %1340 = vset.pattern.permute.xlu0 0
        %1341 = vperm.xlu0 %1340, %v1294
        %v1342 = vpop.permute.xlu0 %1341
        %1343 = vset.pattern.permute.xlu0 0
        %1344 = vperm.xlu0 %1343, %v1295
        %v1345 = vpop.permute.xlu0 %1344
        %1346 = vset.pattern.permute.xlu0 0
        %1347 = vperm.xlu0 %1346, %v1296
        %v1348 = vpop.permute.xlu0 %1347
        %1349 = vset.pattern.permute.xlu0 0
        %1350 = vperm.xlu0 %1349, %v1297
        %v1351 = vpop.permute.xlu0 %1350
        %1352 = vset.pattern.permute.xlu0 0
        %1353 = vperm.xlu0 %1352, %v1298
        %v1354 = vpop.permute.xlu0 %1353
        %1355 = vset.pattern.permute.xlu0 0
        %1356 = vperm.xlu0 %1355, %v1299
        %v1357 = vpop.permute.xlu0 %1356
        %1358 = vset.pattern.permute.xlu0 0
        %1359 = vperm.xlu0 %1358, %v1300
        %v1360 = vpop.permute.xlu0 %1359
        %1361 = vset.pattern.permute.xlu0 0
        %1362 = vperm.xlu0 %1361, %v1301
        %v1363 = vpop.permute.xlu0 %1362
        %1364 = vset.pattern.permute.xlu0 0
        %1365 = vperm.xlu0 %1364, %v1302
        %v1366 = vpop.permute.xlu0 %1365
        %1367 = vset.pattern.permute.xlu0 0
        %1368 = vperm.xlu0 %1367, %v1303
        %v1369 = vpop.permute.xlu0 %1368
        %1370 = vset.pattern.permute.xlu0 0
        %1371 = vperm.xlu0 %1370, %v1304
        %v1372 = vpop.permute.xlu0 %1371
        %1373 = vset.pattern.permute.xlu0 0
        %1374 = vperm.xlu0 %1373, %v1305
        %v1375 = vpop.permute.xlu0 %1374
        %1376 = vset.pattern.permute.xlu0 0
        %1377 = vperm.xlu0 %1376, %v1306
        %v1378 = vpop.permute.xlu0 %1377
        %1379 = vset.pattern.permute.xlu0 0
        %1380 = vperm.xlu0 %1379, %v1307
        %v1381 = vpop.permute.xlu0 %1380
        %1382 = vset.pattern.permute.xlu0 0
        %1383 = vperm.xlu0 %1382, %v1308
        %v1384 = vpop.permute.xlu0 %1383
        %1385 = vset.pattern.permute.xlu0 0
        %1386 = vperm.xlu0 %1385, %v1309
        %v1387 = vpop.permute.xlu0 %1386
        %1388 = vset.pattern.permute.xlu0 0
        %1389 = vperm.xlu0 %1388, %v1310
        %v1390 = vpop.permute.xlu0 %1389
        %1391 = vset.pattern.permute.xlu0 0
        %1392 = vperm.xlu0 %1391, %v1311
        %v1393 = vpop.permute.xlu0 %1392
        %1394 = vset.pattern.permute.xlu0 0
        %1395 = vperm.xlu0 %1394, %v1312
        %v1396 = vpop.permute.xlu0 %1395
        %1397 = vset.pattern.permute.xlu0 0
        %1398 = vperm.xlu0 %1397, %v1313
        %v1399 = vpop.permute.xlu0 %1398
        %1400 = vset.pattern.permute.xlu0 0
        %1401 = vperm.xlu0 %1400, %v1314
        %v1402 = vpop.permute.xlu0 %1401
        %1403 = vset.pattern.permute.xlu0 0
        %1404 = vperm.xlu0 %1403, %v1315
        %v1405 = vpop.permute.xlu0 %1404
        %1406 = vset.pattern.permute.xlu0 0
        %1407 = vperm.xlu0 %1406, %v1316
        %v1408 = vpop.permute.xlu0 %1407
        %1409 = vset.pattern.permute.xlu0 0
        %1410 = vperm.xlu0 %1409, %v1317
        %v1411 = vpop.permute.xlu0 %1410
        %1412 = vset.pattern.permute.xlu0 0
        %1413 = vperm.xlu0 %1412, %v1318
        %v1414 = vpop.permute.xlu0 %1413
        %vm1415 = vcmp.eq.s32.totalorder %v1046, %v1321
        %vm1416 = vcmp.eq.s32.totalorder %v1046, %v1324
        %vm1417 = vcmp.eq.s32.totalorder %v1046, %v1327
        %vm1418 = vcmp.eq.s32.totalorder %v1046, %v1330
        %vm1419 = vcmp.eq.s32.totalorder %v1046, %v1333
        %vm1420 = vcmp.eq.s32.totalorder %v1046, %v1336
        %vm1421 = vcmp.eq.s32.totalorder %v1046, %v1339
        %vm1422 = vcmp.eq.s32.totalorder %v1046, %v1342
        %vm1423 = vcmp.eq.s32.totalorder %v1046, %v1345
        %vm1424 = vcmp.eq.s32.totalorder %v1046, %v1348
        %vm1425 = vcmp.eq.s32.totalorder %v1046, %v1351
        %vm1426 = vcmp.eq.s32.totalorder %v1046, %v1354
        %vm1427 = vcmp.eq.s32.totalorder %v1046, %v1357
        %vm1428 = vcmp.eq.s32.totalorder %v1046, %v1360
        %vm1429 = vcmp.eq.s32.totalorder %v1046, %v1363
        %vm1430 = vcmp.eq.s32.totalorder %v1046, %v1366
        %vm1431 = vcmp.eq.s32.totalorder %v1046, %v1369
        %vm1432 = vcmp.eq.s32.totalorder %v1046, %v1372
        %vm1433 = vcmp.eq.s32.totalorder %v1046, %v1375
        %vm1434 = vcmp.eq.s32.totalorder %v1046, %v1378
        %vm1435 = vcmp.eq.s32.totalorder %v1046, %v1381
        %vm1436 = vcmp.eq.s32.totalorder %v1046, %v1384
        %vm1437 = vcmp.eq.s32.totalorder %v1046, %v1387
        %vm1438 = vcmp.eq.s32.totalorder %v1046, %v1390
        %vm1439 = vcmp.eq.s32.totalorder %v1046, %v1393
        %vm1440 = vcmp.eq.s32.totalorder %v1046, %v1396
        %vm1441 = vcmp.eq.s32.totalorder %v1046, %v1399
        %vm1442 = vcmp.eq.s32.totalorder %v1046, %v1402
        %vm1443 = vcmp.eq.s32.totalorder %v1046, %v1405
        %vm1444 = vcmp.eq.s32.totalorder %v1046, %v1408
        %vm1445 = vcmp.eq.s32.totalorder %v1046, %v1411
        %vm1446 = vcmp.eq.s32.totalorder %v1046, %v1414
        %v1447 = vsel %vm1415, 1, 0
        %v1448 = vsel %vm1416, 1, 0
        %v1449 = vsel %vm1417, 1, 0
        %v1450 = vsel %vm1418, 1, 0
        %v1451 = vsel %vm1419, 1, 0
        %v1452 = vsel %vm1420, 1, 0
        %v1453 = vsel %vm1421, 1, 0
        %v1454 = vsel %vm1422, 1, 0
        %v1455 = vsel %vm1423, 1, 0
        %v1456 = vsel %vm1424, 1, 0
        %v1457 = vsel %vm1425, 1, 0
        %v1458 = vsel %vm1426, 1, 0
        %v1459 = vsel %vm1427, 1, 0
        %v1460 = vsel %vm1428, 1, 0
        %v1461 = vsel %vm1429, 1, 0
        %v1462 = vsel %vm1430, 1, 0
        %v1463 = vsel %vm1431, 1, 0
        %v1464 = vsel %vm1432, 1, 0
        %v1465 = vsel %vm1433, 1, 0
        %v1466 = vsel %vm1434, 1, 0
        %v1467 = vsel %vm1435, 1, 0
        %v1468 = vsel %vm1436, 1, 0
        %v1469 = vsel %vm1437, 1, 0
        %v1470 = vsel %vm1438, 1, 0
        %v1471 = vsel %vm1439, 1, 0
        %v1472 = vsel %vm1440, 1, 0
        %v1473 = vsel %vm1441, 1, 0
        %v1474 = vsel %vm1442, 1, 0
        %v1475 = vsel %vm1443, 1, 0
        %v1476 = vsel %vm1444, 1, 0
        %v1477 = vsel %vm1445, 1, 0
        %v1478 = vsel %vm1446, 1, 0
        %v1479 = vcvt.s32.f32 %v1447
        %v1480 = vcvt.s32.f32 %v1448
        %v1481 = vcvt.s32.f32 %v1449
        %v1482 = vcvt.s32.f32 %v1450
        %v1483 = vcvt.s32.f32 %v1451
        %v1484 = vcvt.s32.f32 %v1452
        %v1485 = vcvt.s32.f32 %v1453
        %v1486 = vcvt.s32.f32 %v1454
        %v1487 = vcvt.s32.f32 %v1455
        %v1488 = vcvt.s32.f32 %v1456
        %v1489 = vcvt.s32.f32 %v1457
        %v1490 = vcvt.s32.f32 %v1458
        %v1491 = vcvt.s32.f32 %v1459
        %v1492 = vcvt.s32.f32 %v1460
        %v1493 = vcvt.s32.f32 %v1461
        %v1494 = vcvt.s32.f32 %v1462
        %v1495 = vcvt.s32.f32 %v1463
        %v1496 = vcvt.s32.f32 %v1464
        %v1497 = vcvt.s32.f32 %v1465
        %v1498 = vcvt.s32.f32 %v1466
        %v1499 = vcvt.s32.f32 %v1467
        %v1500 = vcvt.s32.f32 %v1468
        %v1501 = vcvt.s32.f32 %v1469
        %v1502 = vcvt.s32.f32 %v1470
        %v1503 = vcvt.s32.f32 %v1471
        %v1504 = vcvt.s32.f32 %v1472
        %v1505 = vcvt.s32.f32 %v1473
        %v1506 = vcvt.s32.f32 %v1474
        %v1507 = vcvt.s32.f32 %v1475
        %v1508 = vcvt.s32.f32 %v1476
        %v1509 = vcvt.s32.f32 %v1477
        %v1510 = vcvt.s32.f32 %v1478
        %v1511 = vpack.c.bf16 %v1480, %v1479
        %v1512 = vpack.c.bf16 %v1482, %v1481
        %v1513 = vpack.c.bf16 %v1484, %v1483
        %v1514 = vpack.c.bf16 %v1486, %v1485
        %v1515 = vpack.c.bf16 %v1488, %v1487
        %v1516 = vpack.c.bf16 %v1490, %v1489
        %v1517 = vpack.c.bf16 %v1492, %v1491
        %v1518 = vpack.c.bf16 %v1494, %v1493
        %v1519 = vpack.c.bf16 %v1496, %v1495
        %v1520 = vpack.c.bf16 %v1498, %v1497
        %v1521 = vpack.c.bf16 %v1500, %v1499
        %v1522 = vpack.c.bf16 %v1502, %v1501
        %v1523 = vpack.c.bf16 %v1504, %v1503
        %v1524 = vpack.c.bf16 %v1506, %v1505
        %v1525 = vpack.c.bf16 %v1508, %v1507
        %v1526 = vpack.c.bf16 %v1510, %v1509
        %v1527 = vlaneseq
        %v1528 = vshrl.u32 %v1527, 7
        %v1529 = vadd.s32 %v1528, 8
        %v1530 = vadd.s32 %v1528, 16
        %v1531 = vadd.s32 %v1528, 24
        %v1532 = vadd.s32 %v1528, 32
        %v1533 = vadd.s32 %v1528, 40
        %v1534 = vadd.s32 %v1528, 48
        %v1535 = vadd.s32 %v1528, 56
        %v1536 = vadd.s32 %v1528, 64
        %v1537 = vadd.s32 %v1528, 72
        %v1538 = vadd.s32 %v1528, 80
        %v1539 = vadd.s32 %v1528, 88
        %v1540 = vadd.s32 %v1528, 96
        %v1541 = vadd.s32 %v1528, 104
        %v1542 = vadd.s32 %v1528, 112
        %v1543 = vadd.s32 %v1528, 120
        %v1544 = vld [vmem:[%s654] sm:$0x3]
        %v1545 = vperm.slane %v1544, 0
        %v1546 = vperm.slane %v1544, 1
        %vm1547 = vcmp.eq.s32.totalorder %v1528, %v1545
        %vm1548 = vcmp.eq.s32.totalorder %v1528, %v1546
        %vm1549 = vcmp.eq.s32.totalorder %v1529, %v1545
        %vm1550 = vcmp.eq.s32.totalorder %v1529, %v1546
        %vm1551 = vcmp.eq.s32.totalorder %v1530, %v1545
        %vm1552 = vcmp.eq.s32.totalorder %v1530, %v1546
        %vm1553 = vcmp.eq.s32.totalorder %v1531, %v1545
        %vm1554 = vcmp.eq.s32.totalorder %v1531, %v1546
        %vm1555 = vcmp.eq.s32.totalorder %v1532, %v1545
        %vm1556 = vcmp.eq.s32.totalorder %v1532, %v1546
        %vm1557 = vcmp.eq.s32.totalorder %v1533, %v1545
        %vm1558 = vcmp.eq.s32.totalorder %v1533, %v1546
        %vm1559 = vcmp.eq.s32.totalorder %v1534, %v1545
        %vm1560 = vcmp.eq.s32.totalorder %v1534, %v1546
        %vm1561 = vcmp.eq.s32.totalorder %v1535, %v1545
        %vm1562 = vcmp.eq.s32.totalorder %v1535, %v1546
        %vm1563 = vcmp.eq.s32.totalorder %v1536, %v1545
        %vm1564 = vcmp.eq.s32.totalorder %v1536, %v1546
        %vm1565 = vcmp.eq.s32.totalorder %v1537, %v1545
        %vm1566 = vcmp.eq.s32.totalorder %v1537, %v1546
        %vm1567 = vcmp.eq.s32.totalorder %v1538, %v1545
        %vm1568 = vcmp.eq.s32.totalorder %v1538, %v1546
        %vm1569 = vcmp.eq.s32.totalorder %v1539, %v1545
        %vm1570 = vcmp.eq.s32.totalorder %v1539, %v1546
        %vm1571 = vcmp.eq.s32.totalorder %v1540, %v1545
        %vm1572 = vcmp.eq.s32.totalorder %v1540, %v1546
        %vm1573 = vcmp.eq.s32.totalorder %v1541, %v1545
        %vm1574 = vcmp.eq.s32.totalorder %v1541, %v1546
        %vm1575 = vcmp.eq.s32.totalorder %v1542, %v1545
        %vm1576 = vcmp.eq.s32.totalorder %v1542, %v1546
        %vm1577 = vcmp.eq.s32.totalorder %v1543, %v1545
        %vm1578 = vcmp.eq.s32.totalorder %v1543, %v1546
        %v1579 = vsel %vm1547, 1, 0
        %v1580 = vsel %vm1548, 1, 0
        %v1581 = vsel %vm1549, 1, 0
        %v1582 = vsel %vm1550, 1, 0
        %v1583 = vsel %vm1551, 1, 0
        %v1584 = vsel %vm1552, 1, 0
        %v1585 = vsel %vm1553, 1, 0
        %v1586 = vsel %vm1554, 1, 0
        %v1587 = vsel %vm1555, 1, 0
        %v1588 = vsel %vm1556, 1, 0
        %v1589 = vsel %vm1557, 1, 0
        %v1590 = vsel %vm1558, 1, 0
        %v1591 = vsel %vm1559, 1, 0
        %v1592 = vsel %vm1560, 1, 0
        %v1593 = vsel %vm1561, 1, 0
        %v1594 = vsel %vm1562, 1, 0
        %v1595 = vsel %vm1563, 1, 0
        %v1596 = vsel %vm1564, 1, 0
        %v1597 = vsel %vm1565, 1, 0
        %v1598 = vsel %vm1566, 1, 0
        %v1599 = vsel %vm1567, 1, 0
        %v1600 = vsel %vm1568, 1, 0
        %v1601 = vsel %vm1569, 1, 0
        %v1602 = vsel %vm1570, 1, 0
        %v1603 = vsel %vm1571, 1, 0
        %v1604 = vsel %vm1572, 1, 0
        %v1605 = vsel %vm1573, 1, 0
        %v1606 = vsel %vm1574, 1, 0
        %v1607 = vsel %vm1575, 1, 0
        %v1608 = vsel %vm1576, 1, 0
        %v1609 = vsel %vm1577, 1, 0
        %v1610 = vsel %vm1578, 1, 0
        %v1611 = vcvt.s32.f32 %v1579
        %v1612 = vcvt.s32.f32 %v1580
        %v1613 = vcvt.s32.f32 %v1581
        %v1614 = vcvt.s32.f32 %v1582
        %v1615 = vcvt.s32.f32 %v1583
        %v1616 = vcvt.s32.f32 %v1584
        %v1617 = vcvt.s32.f32 %v1585
        %v1618 = vcvt.s32.f32 %v1586
        %v1619 = vcvt.s32.f32 %v1587
        %v1620 = vcvt.s32.f32 %v1588
        %v1621 = vcvt.s32.f32 %v1589
        %v1622 = vcvt.s32.f32 %v1590
        %v1623 = vcvt.s32.f32 %v1591
        %v1624 = vcvt.s32.f32 %v1592
        %v1625 = vcvt.s32.f32 %v1593
        %v1626 = vcvt.s32.f32 %v1594
        %v1627 = vcvt.s32.f32 %v1595
        %v1628 = vcvt.s32.f32 %v1596
        %v1629 = vcvt.s32.f32 %v1597
        %v1630 = vcvt.s32.f32 %v1598
        %v1631 = vcvt.s32.f32 %v1599
        %v1632 = vcvt.s32.f32 %v1600
        %v1633 = vcvt.s32.f32 %v1601
        %v1634 = vcvt.s32.f32 %v1602
        %v1635 = vcvt.s32.f32 %v1603
        %v1636 = vcvt.s32.f32 %v1604
        %v1637 = vcvt.s32.f32 %v1605
        %v1638 = vcvt.s32.f32 %v1606
        %v1639 = vcvt.s32.f32 %v1607
        %v1640 = vcvt.s32.f32 %v1608
        %v1641 = vcvt.s32.f32 %v1609
        %v1642 = vcvt.s32.f32 %v1610
        %v1643 = vpack.c.bf16 %v1613, %v1611
        %v1644 = vpack.c.bf16 %v1614, %v1612
        %v1645 = vpack.c.bf16 %v1617, %v1615
        %v1646 = vpack.c.bf16 %v1618, %v1616
        %v1647 = vpack.c.bf16 %v1621, %v1619
        %v1648 = vpack.c.bf16 %v1622, %v1620
        %v1649 = vpack.c.bf16 %v1625, %v1623
        %v1650 = vpack.c.bf16 %v1626, %v1624
        %v1651 = vpack.c.bf16 %v1629, %v1627
        %v1652 = vpack.c.bf16 %v1630, %v1628
        %v1653 = vpack.c.bf16 %v1633, %v1631
        %v1654 = vpack.c.bf16 %v1634, %v1632
        %v1655 = vpack.c.bf16 %v1637, %v1635
        %v1656 = vpack.c.bf16 %v1638, %v1636
        %v1657 = vpack.c.bf16 %v1641, %v1639
        %v1658 = vpack.c.bf16 %v1642, %v1640
        %v1659 = vld [vmem:[#allocation2] sm:$0xf]
        %v1660 = vld [vmem:[#allocation2 + $0x4] sm:$0xf]
        %v1661 = vld [vmem:[#allocation2 + $0x8] sm:$0xf]
        %v1662 = vld [vmem:[#allocation2 + $0xc] sm:$0xf]
        %v1663 = vld [vmem:[#allocation2 + $0x10] sm:$0xf]
        %v1664 = vld [vmem:[#allocation2 + $0x14] sm:$0xf]
        %v1665 = vld [vmem:[#allocation2 + $0x18] sm:$0xf]
        %v1666 = vld [vmem:[#allocation2 + $0x1c] sm:$0xf]
        %v1667 = vld [vmem:[#allocation2 + $0x20] sm:$0xf]
        %v1668 = vld [vmem:[#allocation2 + $0x24] sm:$0xf]
        %v1669 = vld [vmem:[#allocation2 + $0x28] sm:$0xf]
        %v1670 = vld [vmem:[#allocation2 + $0x2c] sm:$0xf]
        %v1671 = vld [vmem:[#allocation2 + $0x30] sm:$0xf]
        %v1672 = vld [vmem:[#allocation2 + $0x34] sm:$0xf]
        %v1673 = vld [vmem:[#allocation2 + $0x38] sm:$0xf]
        %v1674 = vld [vmem:[#allocation2 + $0x3c] sm:$0xf]
        %v1691 = vunpack.c.l.b16 %v1659
        %v1692 = vunpack.c.l.b16 %v1660
        %v1693 = vunpack.c.l.b16 %v1661
        %v1694 = vunpack.c.l.b16 %v1662
        %v1695 = vunpack.c.l.b16 %v1663
        %v1696 = vunpack.c.l.b16 %v1664
        %v1697 = vunpack.c.l.b16 %v1665
        %v1698 = vunpack.c.l.b16 %v1666
        %v1699 = vunpack.c.l.b16 %v1667
        %v1700 = vunpack.c.l.b16 %v1668
        %v1701 = vunpack.c.l.b16 %v1669
        %v1702 = vunpack.c.l.b16 %v1670
        %v1703 = vunpack.c.l.b16 %v1671
        %v1704 = vunpack.c.l.b16 %v1672
        %v1705 = vunpack.c.l.b16 %v1673
        %v1706 = vunpack.c.l.b16 %v1674
        %v1707 = vpack.c.b16 %v1692, %v1691
        %v1708 = vpack.c.b16 %v1694, %v1693
        %v1709 = vpack.c.b16 %v1696, %v1695
        %v1710 = vpack.c.b16 %v1698, %v1697
        %v1711 = vpack.c.b16 %v1700, %v1699
        %v1712 = vpack.c.b16 %v1702, %v1701
        %v1713 = vpack.c.b16 %v1704, %v1703
        %v1714 = vpack.c.b16 %v1706, %v1705
        %1723 = vmatpush.bf16.msra.mxu0 %v1714
        %1724 = vmatpush.bf16.msra.mxu0 %v1713
        %1725 = vmatpush.bf16.msra.mxu0 %v1712
        %1726 = vmatpush.bf16.msra.mxu0 %v1711
        %1727 = vmatpush.bf16.msra.mxu0 %v1710
        %1728 = vmatpush.bf16.msra.mxu0 %v1709
        %1729 = vmatpush.bf16.msra.mxu0 %v1708
        %1730 = vmatpush.bf16.msra.mxu0 %v1707
        %1731 = vmatmul.bf16.gmra.mxu0 %v1271
        %v1732 = vpop.f32.mrf.mxu0
        %v1733 = vadd.f32 0.0, %v1732
        %v1734 = vpop.f32.mrf.mxu0
        %v1735 = vadd.f32 0.0, %v1734
        %1736 = vmatmul.bf16.gmra.mxu0 %v1272
        %v1737 = vpop.f32.mrf.mxu0
        %v1738 = vadd.f32 0.0, %v1737
        %v1739 = vpop.f32.mrf.mxu0
        %v1740 = vadd.f32 0.0, %v1739
        %1741 = vmatmul.bf16.gmra.mxu0 %v1273
        %v1742 = vpop.f32.mrf.mxu0
        %v1743 = vadd.f32 0.0, %v1742
        %v1744 = vpop.f32.mrf.mxu0
        %v1745 = vadd.f32 0.0, %v1744
        %1746 = vmatmul.bf16.gmra.mxu0 %v1274
        %v1747 = vpop.f32.mrf.mxu0
        %v1748 = vadd.f32 0.0, %v1747
        %v1749 = vpop.f32.mrf.mxu0
        %v1750 = vadd.f32 0.0, %v1749
        %1751 = vmatmul.bf16.gmra.mxu0 %v1275
        %v1752 = vpop.f32.mrf.mxu0
        %v1753 = vadd.f32 0.0, %v1752
        %v1754 = vpop.f32.mrf.mxu0
        %v1755 = vadd.f32 0.0, %v1754
        %1756 = vmatmul.bf16.gmra.mxu0 %v1276
        %v1757 = vpop.f32.mrf.mxu0
        %v1758 = vadd.f32 0.0, %v1757
        %v1759 = vpop.f32.mrf.mxu0
        %v1760 = vadd.f32 0.0, %v1759
        %1761 = vmatmul.bf16.gmra.mxu0 %v1277
        %v1762 = vpop.f32.mrf.mxu0
        %v1763 = vadd.f32 0.0, %v1762
        %v1764 = vpop.f32.mrf.mxu0
        %v1765 = vadd.f32 0.0, %v1764
        %1766 = vmatmul.bf16.gmra.mxu0 %v1278
        %v1767 = vpop.f32.mrf.mxu0
        %v1768 = vadd.f32 0.0, %v1767
        %v1769 = vpop.f32.mrf.mxu0
        %v1770 = vadd.f32 0.0, %v1769
        %1771 = vmatmul.bf16.gmra.mxu0 %v1279
        %v1772 = vpop.f32.mrf.mxu0
        %v1773 = vadd.f32 0.0, %v1772
        %v1774 = vpop.f32.mrf.mxu0
        %v1775 = vadd.f32 0.0, %v1774
        %1776 = vmatmul.bf16.gmra.mxu0 %v1280
        %v1777 = vpop.f32.mrf.mxu0
        %v1778 = vadd.f32 0.0, %v1777
        %v1779 = vpop.f32.mrf.mxu0
        %v1780 = vadd.f32 0.0, %v1779
        %1781 = vmatmul.bf16.gmra.mxu0 %v1281
        %v1782 = vpop.f32.mrf.mxu0
        %v1783 = vadd.f32 0.0, %v1782
        %v1784 = vpop.f32.mrf.mxu0
        %v1785 = vadd.f32 0.0, %v1784
        %1786 = vmatmul.bf16.gmra.mxu0 %v1282
        %v1787 = vpop.f32.mrf.mxu0
        %v1788 = vadd.f32 0.0, %v1787
        %v1789 = vpop.f32.mrf.mxu0
        %v1790 = vadd.f32 0.0, %v1789
        %1791 = vmatmul.bf16.gmra.mxu0 %v1283
        %v1792 = vpop.f32.mrf.mxu0
        %v1793 = vadd.f32 0.0, %v1792
        %v1794 = vpop.f32.mrf.mxu0
        %v1795 = vadd.f32 0.0, %v1794
        %1796 = vmatmul.bf16.gmra.mxu0 %v1284
        %v1797 = vpop.f32.mrf.mxu0
        %v1798 = vadd.f32 0.0, %v1797
        %v1799 = vpop.f32.mrf.mxu0
        %v1800 = vadd.f32 0.0, %v1799
        %1801 = vmatmul.bf16.gmra.mxu0 %v1285
        %v1802 = vpop.f32.mrf.mxu0
        %v1803 = vadd.f32 0.0, %v1802
        %v1804 = vpop.f32.mrf.mxu0
        %v1805 = vadd.f32 0.0, %v1804
        %1806 = vmatmul.bf16.gmra.mxu0 %v1286
        %v1807 = vpop.f32.mrf.mxu0
        %v1808 = vadd.f32 0.0, %v1807
        %v1809 = vpop.f32.mrf.mxu0
        %v1810 = vadd.f32 0.0, %v1809
        %1811 = vdwg.mxu0
        %v1812 = vld [vmem:[#allocation3] sm:$0xf]
        %v1813 = vld [vmem:[#allocation3 + $0x4] sm:$0xf]
        %v1814 = vld [vmem:[#allocation3 + $0x8] sm:$0xf]
        %v1815 = vld [vmem:[#allocation3 + $0xc] sm:$0xf]
        %v1816 = vld [vmem:[#allocation3 + $0x10] sm:$0xf]
        %v1817 = vld [vmem:[#allocation3 + $0x14] sm:$0xf]
        %v1818 = vld [vmem:[#allocation3 + $0x18] sm:$0xf]
        %v1819 = vld [vmem:[#allocation3 + $0x1c] sm:$0xf]
        %v1820 = vld [vmem:[#allocation3 + $0x20] sm:$0xf]
        %v1821 = vld [vmem:[#allocation3 + $0x24] sm:$0xf]
        %v1822 = vld [vmem:[#allocation3 + $0x28] sm:$0xf]
        %v1823 = vld [vmem:[#allocation3 + $0x2c] sm:$0xf]
        %v1824 = vld [vmem:[#allocation3 + $0x30] sm:$0xf]
        %v1825 = vld [vmem:[#allocation3 + $0x34] sm:$0xf]
        %v1826 = vld [vmem:[#allocation3 + $0x38] sm:$0xf]
        %v1827 = vld [vmem:[#allocation3 + $0x3c] sm:$0xf]
        %v1844 = vunpack.c.l.b16 %v1812
        %v1845 = vunpack.c.l.b16 %v1813
        %v1846 = vunpack.c.l.b16 %v1814
        %v1847 = vunpack.c.l.b16 %v1815
        %v1848 = vunpack.c.l.b16 %v1816
        %v1849 = vunpack.c.l.b16 %v1817
        %v1850 = vunpack.c.l.b16 %v1818
        %v1851 = vunpack.c.l.b16 %v1819
        %v1852 = vunpack.c.l.b16 %v1820
        %v1853 = vunpack.c.l.b16 %v1821
        %v1854 = vunpack.c.l.b16 %v1822
        %v1855 = vunpack.c.l.b16 %v1823
        %v1856 = vunpack.c.l.b16 %v1824
        %v1857 = vunpack.c.l.b16 %v1825
        %v1858 = vunpack.c.l.b16 %v1826
        %v1859 = vunpack.c.l.b16 %v1827
        %v1860 = vpack.c.b16 %v1845, %v1844
        %v1861 = vpack.c.b16 %v1847, %v1846
        %v1862 = vpack.c.b16 %v1849, %v1848
        %v1863 = vpack.c.b16 %v1851, %v1850
        %v1864 = vpack.c.b16 %v1853, %v1852
        %v1865 = vpack.c.b16 %v1855, %v1854
        %v1866 = vpack.c.b16 %v1857, %v1856
        %v1867 = vpack.c.b16 %v1859, %v1858
        %1876 = vmatpush.bf16.msra.mxu0 %v1867
        %1877 = vmatpush.bf16.msra.mxu0 %v1866
        %1878 = vmatpush.bf16.msra.mxu0 %v1865
        %1879 = vmatpush.bf16.msra.mxu0 %v1864
        %1880 = vmatpush.bf16.msra.mxu0 %v1863
        %1881 = vmatpush.bf16.msra.mxu0 %v1862
        %1882 = vmatpush.bf16.msra.mxu0 %v1861
        %1883 = vmatpush.bf16.msra.mxu0 %v1860
        %1884 = vmatmul.bf16.gmra.mxu0 %v1511
        %v1885 = vpop.f32.mrf.mxu0
        %v1886 = vadd.f32 0.0, %v1885
        %v1887 = vpop.f32.mrf.mxu0
        %v1888 = vadd.f32 0.0, %v1887
        %1889 = vmatmul.bf16.gmra.mxu0 %v1512
        %v1890 = vpop.f32.mrf.mxu0
        %v1891 = vadd.f32 0.0, %v1890
        %v1892 = vpop.f32.mrf.mxu0
        %v1893 = vadd.f32 0.0, %v1892
        %1894 = vmatmul.bf16.gmra.mxu0 %v1513
        %v1895 = vpop.f32.mrf.mxu0
        %v1896 = vadd.f32 0.0, %v1895
        %v1897 = vpop.f32.mrf.mxu0
        %v1898 = vadd.f32 0.0, %v1897
        %1899 = vmatmul.bf16.gmra.mxu0 %v1514
        %v1900 = vpop.f32.mrf.mxu0
        %v1901 = vadd.f32 0.0, %v1900
        %v1902 = vpop.f32.mrf.mxu0
        %v1903 = vadd.f32 0.0, %v1902
        %1904 = vmatmul.bf16.gmra.mxu0 %v1515
        %v1905 = vpop.f32.mrf.mxu0
        %v1906 = vadd.f32 0.0, %v1905
        %v1907 = vpop.f32.mrf.mxu0
        %v1908 = vadd.f32 0.0, %v1907
        %1909 = vmatmul.bf16.gmra.mxu0 %v1516
        %v1910 = vpop.f32.mrf.mxu0
        %v1911 = vadd.f32 0.0, %v1910
        %v1912 = vpop.f32.mrf.mxu0
        %v1913 = vadd.f32 0.0, %v1912
        %1914 = vmatmul.bf16.gmra.mxu0 %v1517
        %v1915 = vpop.f32.mrf.mxu0
        %v1916 = vadd.f32 0.0, %v1915
        %v1917 = vpop.f32.mrf.mxu0
        %v1918 = vadd.f32 0.0, %v1917
        %1919 = vmatmul.bf16.gmra.mxu0 %v1518
        %v1920 = vpop.f32.mrf.mxu0
        %v1921 = vadd.f32 0.0, %v1920
        %v1922 = vpop.f32.mrf.mxu0
        %v1923 = vadd.f32 0.0, %v1922
        %1924 = vmatmul.bf16.gmra.mxu0 %v1519
        %v1925 = vpop.f32.mrf.mxu0
        %v1926 = vadd.f32 0.0, %v1925
        %v1927 = vpop.f32.mrf.mxu0
        %v1928 = vadd.f32 0.0, %v1927
        %1929 = vmatmul.bf16.gmra.mxu0 %v1520
        %v1930 = vpop.f32.mrf.mxu0
        %v1931 = vadd.f32 0.0, %v1930
        %v1932 = vpop.f32.mrf.mxu0
        %v1933 = vadd.f32 0.0, %v1932
        %1934 = vmatmul.bf16.gmra.mxu0 %v1521
        %v1935 = vpop.f32.mrf.mxu0
        %v1936 = vadd.f32 0.0, %v1935
        %v1937 = vpop.f32.mrf.mxu0
        %v1938 = vadd.f32 0.0, %v1937
        %1939 = vmatmul.bf16.gmra.mxu0 %v1522
        %v1940 = vpop.f32.mrf.mxu0
        %v1941 = vadd.f32 0.0, %v1940
        %v1942 = vpop.f32.mrf.mxu0
        %v1943 = vadd.f32 0.0, %v1942
        %1944 = vmatmul.bf16.gmra.mxu0 %v1523
        %v1945 = vpop.f32.mrf.mxu0
        %v1946 = vadd.f32 0.0, %v1945
        %v1947 = vpop.f32.mrf.mxu0
        %v1948 = vadd.f32 0.0, %v1947
        %1949 = vmatmul.bf16.gmra.mxu0 %v1524
        %v1950 = vpop.f32.mrf.mxu0
        %v1951 = vadd.f32 0.0, %v1950
        %v1952 = vpop.f32.mrf.mxu0
        %v1953 = vadd.f32 0.0, %v1952
        %1954 = vmatmul.bf16.gmra.mxu0 %v1525
        %v1955 = vpop.f32.mrf.mxu0
        %v1956 = vadd.f32 0.0, %v1955
        %v1957 = vpop.f32.mrf.mxu0
        %v1958 = vadd.f32 0.0, %v1957
        %1959 = vmatmul.bf16.gmra.mxu0 %v1526
        %v1960 = vpop.f32.mrf.mxu0
        %v1961 = vadd.f32 0.0, %v1960
        %v1962 = vpop.f32.mrf.mxu0
        %v1963 = vadd.f32 0.0, %v1962
        %1964 = vdwg.mxu0
        %v1965 = vpack.c.bf16 %v1735, %v1733
        %v1966 = vpack.c.bf16 %v1740, %v1738
        %v1967 = vpack.c.bf16 %v1745, %v1743
        %v1968 = vpack.c.bf16 %v1750, %v1748
        %v1969 = vpack.c.bf16 %v1755, %v1753
        %v1970 = vpack.c.bf16 %v1760, %v1758
        %v1971 = vpack.c.bf16 %v1765, %v1763
        %v1972 = vpack.c.bf16 %v1770, %v1768
        %v1973 = vpack.c.bf16 %v1775, %v1773
        %v1974 = vpack.c.bf16 %v1780, %v1778
        %v1975 = vpack.c.bf16 %v1785, %v1783
        %v1976 = vpack.c.bf16 %v1790, %v1788
        %v1977 = vpack.c.bf16 %v1795, %v1793
        %v1978 = vpack.c.bf16 %v1800, %v1798
        %v1979 = vpack.c.bf16 %v1805, %v1803
        %v1980 = vpack.c.bf16 %v1810, %v1808
        %v1981 = vld [vmem:[%s10] sm:$0xf]
        %v1982 = vld [vmem:[%s10 + $0x4] sm:$0xf]
        %v1983 = vld [vmem:[%s10 + $0x8] sm:$0xf]
        %v1984 = vld [vmem:[%s10 + $0xc] sm:$0xf]
        %v1985 = vld [vmem:[%s10 + $0x10] sm:$0xf]
        %v1986 = vld [vmem:[%s10 + $0x14] sm:$0xf]
        %v1987 = vld [vmem:[%s10 + $0x18] sm:$0xf]
        %v1988 = vld [vmem:[%s10 + $0x1c] sm:$0xf]
        %v1989 = vld [vmem:[%s10 + $0x20] sm:$0xf]
        %v1990 = vld [vmem:[%s10 + $0x24] sm:$0xf]
        %v1991 = vld [vmem:[%s10 + $0x28] sm:$0xf]
        %v1992 = vld [vmem:[%s10 + $0x2c] sm:$0xf]
        %v1993 = vld [vmem:[%s10 + $0x30] sm:$0xf]
        %v1994 = vld [vmem:[%s10 + $0x34] sm:$0xf]
        %v1995 = vld [vmem:[%s10 + $0x38] sm:$0xf]
        %v1996 = vld [vmem:[%s10 + $0x3c] sm:$0xf]
        %v2013 = vunpack.c.l.b16 %v1981
        %v2014 = vunpack.c.l.b16 %v1982
        %v2015 = vunpack.c.l.b16 %v1983
        %v2016 = vunpack.c.l.b16 %v1984
        %v2017 = vunpack.c.l.b16 %v1985
        %v2018 = vunpack.c.l.b16 %v1986
        %v2019 = vunpack.c.l.b16 %v1987
        %v2020 = vunpack.c.l.b16 %v1988
        %v2021 = vunpack.c.l.b16 %v1989
        %v2022 = vunpack.c.l.b16 %v1990
        %v2023 = vunpack.c.l.b16 %v1991
        %v2024 = vunpack.c.l.b16 %v1992
        %v2025 = vunpack.c.l.b16 %v1993
        %v2026 = vunpack.c.l.b16 %v1994
        %v2027 = vunpack.c.l.b16 %v1995
        %v2028 = vunpack.c.l.b16 %v1996
        %v2029 = vpack.c.b16 %v2014, %v2013
        %v2030 = vpack.c.b16 %v2016, %v2015
        %v2031 = vpack.c.b16 %v2018, %v2017
        %v2032 = vpack.c.b16 %v2020, %v2019
        %v2033 = vpack.c.b16 %v2022, %v2021
        %v2034 = vpack.c.b16 %v2024, %v2023
        %v2035 = vpack.c.b16 %v2026, %v2025
        %v2036 = vpack.c.b16 %v2028, %v2027
        %2045 = vmatpush.bf16.msra.mxu0 %v2036
        %2046 = vmatpush.bf16.msra.mxu0 %v2035
        %2047 = vmatpush.bf16.msra.mxu0 %v2034
        %2048 = vmatpush.bf16.msra.mxu0 %v2033
        %2049 = vmatpush.bf16.msra.mxu0 %v2032
        %2050 = vmatpush.bf16.msra.mxu0 %v2031
        %2051 = vmatpush.bf16.msra.mxu0 %v2030
        %2052 = vmatpush.bf16.msra.mxu0 %v2029
        %2053 = vmatmul.bf16.gmra.mxu0 %v1965
        %v2054 = vpop.f32.mrf.mxu0
        %v2055 = vadd.f32 %v1886, %v2054
        %v2056 = vpop.f32.mrf.mxu0
        %v2057 = vadd.f32 %v1888, %v2056
        %2058 = vmatmul.bf16.gmra.mxu0 %v1966
        %v2059 = vpop.f32.mrf.mxu0
        %v2060 = vadd.f32 %v1891, %v2059
        %v2061 = vpop.f32.mrf.mxu0
        %v2062 = vadd.f32 %v1893, %v2061
        %2063 = vmatmul.bf16.gmra.mxu0 %v1967
        %v2064 = vpop.f32.mrf.mxu0
        %v2065 = vadd.f32 %v1896, %v2064
        %v2066 = vpop.f32.mrf.mxu0
        %v2067 = vadd.f32 %v1898, %v2066
        %2068 = vmatmul.bf16.gmra.mxu0 %v1968
        %v2069 = vpop.f32.mrf.mxu0
        %v2070 = vadd.f32 %v1901, %v2069
        %v2071 = vpop.f32.mrf.mxu0
        %v2072 = vadd.f32 %v1903, %v2071
        %2073 = vmatmul.bf16.gmra.mxu0 %v1969
        %v2074 = vpop.f32.mrf.mxu0
        %v2075 = vadd.f32 %v1906, %v2074
        %v2076 = vpop.f32.mrf.mxu0
        %v2077 = vadd.f32 %v1908, %v2076
        %2078 = vmatmul.bf16.gmra.mxu0 %v1970
        %v2079 = vpop.f32.mrf.mxu0
        %v2080 = vadd.f32 %v1911, %v2079
        %v2081 = vpop.f32.mrf.mxu0
        %v2082 = vadd.f32 %v1913, %v2081
        %2083 = vmatmul.bf16.gmra.mxu0 %v1971
        %v2084 = vpop.f32.mrf.mxu0
        %v2085 = vadd.f32 %v1916, %v2084
        %v2086 = vpop.f32.mrf.mxu0
        %v2087 = vadd.f32 %v1918, %v2086
        %2088 = vmatmul.bf16.gmra.mxu0 %v1972
        %v2089 = vpop.f32.mrf.mxu0
        %v2090 = vadd.f32 %v1921, %v2089
        %v2091 = vpop.f32.mrf.mxu0
        %v2092 = vadd.f32 %v1923, %v2091
        %2093 = vmatmul.bf16.gmra.mxu0 %v1973
        %v2094 = vpop.f32.mrf.mxu0
        %v2095 = vadd.f32 %v1926, %v2094
        %v2096 = vpop.f32.mrf.mxu0
        %v2097 = vadd.f32 %v1928, %v2096
        %2098 = vmatmul.bf16.gmra.mxu0 %v1974
        %v2099 = vpop.f32.mrf.mxu0
        %v2100 = vadd.f32 %v1931, %v2099
        %v2101 = vpop.f32.mrf.mxu0
        %v2102 = vadd.f32 %v1933, %v2101
        %2103 = vmatmul.bf16.gmra.mxu0 %v1975
        %v2104 = vpop.f32.mrf.mxu0
        %v2105 = vadd.f32 %v1936, %v2104
        %v2106 = vpop.f32.mrf.mxu0
        %v2107 = vadd.f32 %v1938, %v2106
        %2108 = vmatmul.bf16.gmra.mxu0 %v1976
        %v2109 = vpop.f32.mrf.mxu0
        %v2110 = vadd.f32 %v1941, %v2109
        %v2111 = vpop.f32.mrf.mxu0
        %v2112 = vadd.f32 %v1943, %v2111
        %2113 = vmatmul.bf16.gmra.mxu0 %v1977
        %v2114 = vpop.f32.mrf.mxu0
        %v2115 = vadd.f32 %v1946, %v2114
        %v2116 = vpop.f32.mrf.mxu0
        %v2117 = vadd.f32 %v1948, %v2116
        %2118 = vmatmul.bf16.gmra.mxu0 %v1978
        %v2119 = vpop.f32.mrf.mxu0
        %v2120 = vadd.f32 %v1951, %v2119
        %v2121 = vpop.f32.mrf.mxu0
        %v2122 = vadd.f32 %v1953, %v2121
        %2123 = vmatmul.bf16.gmra.mxu0 %v1979
        %v2124 = vpop.f32.mrf.mxu0
        %v2125 = vadd.f32 %v1956, %v2124
        %v2126 = vpop.f32.mrf.mxu0
        %v2127 = vadd.f32 %v1958, %v2126
        %2128 = vmatmul.bf16.gmra.mxu0 %v1980
        %v2129 = vpop.f32.mrf.mxu0
        %v2130 = vadd.f32 %v1961, %v2129
        %v2131 = vpop.f32.mrf.mxu0
        %v2132 = vadd.f32 %v1963, %v2131
        %2133 = vdwg.mxu0
        %v2134 = vld [vmem:[%s637] sm:$0xf]
        %v2135 = vld [vmem:[%s637 + $0x4] sm:$0xf]
        %v2136 = vld [vmem:[%s637 + $0x8] sm:$0xf]
        %v2137 = vld [vmem:[%s637 + $0xc] sm:$0xf]
        %v2138 = vld [vmem:[%s637 + $0x10] sm:$0xf]
        %v2139 = vld [vmem:[%s637 + $0x14] sm:$0xf]
        %v2140 = vld [vmem:[%s637 + $0x18] sm:$0xf]
        %v2141 = vld [vmem:[%s637 + $0x1c] sm:$0xf]
        %v2142 = vld [vmem:[%s637 + $0x20] sm:$0xf]
        %v2143 = vld [vmem:[%s637 + $0x24] sm:$0xf]
        %v2144 = vld [vmem:[%s637 + $0x28] sm:$0xf]
        %v2145 = vld [vmem:[%s637 + $0x2c] sm:$0xf]
        %v2146 = vld [vmem:[%s637 + $0x30] sm:$0xf]
        %v2147 = vld [vmem:[%s637 + $0x34] sm:$0xf]
        %v2148 = vld [vmem:[%s637 + $0x38] sm:$0xf]
        %v2149 = vld [vmem:[%s637 + $0x3c] sm:$0xf]
        %v2150 = vld [vmem:[%s637 + $0x40] sm:$0xf]
        %v2151 = vld [vmem:[%s637 + $0x44] sm:$0xf]
        %v2152 = vld [vmem:[%s637 + $0x48] sm:$0xf]
        %v2153 = vld [vmem:[%s637 + $0x4c] sm:$0xf]
        %v2154 = vld [vmem:[%s637 + $0x50] sm:$0xf]
        %v2155 = vld [vmem:[%s637 + $0x54] sm:$0xf]
        %v2156 = vld [vmem:[%s637 + $0x58] sm:$0xf]
        %v2157 = vld [vmem:[%s637 + $0x5c] sm:$0xf]
        %v2158 = vld [vmem:[%s637 + $0x60] sm:$0xf]
        %v2159 = vld [vmem:[%s637 + $0x64] sm:$0xf]
        %v2160 = vld [vmem:[%s637 + $0x68] sm:$0xf]
        %v2161 = vld [vmem:[%s637 + $0x6c] sm:$0xf]
        %v2162 = vld [vmem:[%s637 + $0x70] sm:$0xf]
        %v2163 = vld [vmem:[%s637 + $0x74] sm:$0xf]
        %v2164 = vld [vmem:[%s637 + $0x78] sm:$0xf]
        %v2165 = vld [vmem:[%s637 + $0x7c] sm:$0xf]
        %v2166 = vld [vmem:[%s11] sm:$0xf]
        %v2199 = vunpack.c.l.b16 %v2134
        %v2200 = vunpack.c.l.b16 %v2135
        %v2201 = vunpack.c.l.b16 %v2136
        %v2202 = vunpack.c.l.b16 %v2137
        %v2203 = vunpack.c.l.b16 %v2138
        %v2204 = vunpack.c.l.b16 %v2139
        %v2205 = vunpack.c.l.b16 %v2140
        %v2206 = vunpack.c.l.b16 %v2141
        %v2207 = vunpack.c.l.b16 %v2142
        %v2208 = vunpack.c.l.b16 %v2143
        %v2209 = vunpack.c.l.b16 %v2144
        %v2210 = vunpack.c.l.b16 %v2145
        %v2211 = vunpack.c.l.b16 %v2146
        %v2212 = vunpack.c.l.b16 %v2147
        %v2213 = vunpack.c.l.b16 %v2148
        %v2214 = vunpack.c.l.b16 %v2149
        %v2215 = vunpack.c.l.b16 %v2150
        %v2216 = vunpack.c.l.b16 %v2151
        %v2217 = vunpack.c.l.b16 %v2152
        %v2218 = vunpack.c.l.b16 %v2153
        %v2219 = vunpack.c.l.b16 %v2154
        %v2220 = vunpack.c.l.b16 %v2155
        %v2221 = vunpack.c.l.b16 %v2156
        %v2222 = vunpack.c.l.b16 %v2157
        %v2223 = vunpack.c.l.b16 %v2158
        %v2224 = vunpack.c.l.b16 %v2159
        %v2225 = vunpack.c.l.b16 %v2160
        %v2226 = vunpack.c.l.b16 %v2161
        %v2227 = vunpack.c.l.b16 %v2162
        %v2228 = vunpack.c.l.b16 %v2163
        %v2229 = vunpack.c.l.b16 %v2164
        %v2230 = vunpack.c.l.b16 %v2165
        %v2231 = vpack.c.b16 %v2200, %v2199
        %v2232 = vpack.c.b16 %v2202, %v2201
        %v2233 = vpack.c.b16 %v2204, %v2203
        %v2234 = vpack.c.b16 %v2206, %v2205
        %v2235 = vpack.c.b16 %v2208, %v2207
        %v2236 = vpack.c.b16 %v2210, %v2209
        %v2237 = vpack.c.b16 %v2212, %v2211
        %v2238 = vpack.c.b16 %v2214, %v2213
        %v2239 = vpack.c.b16 %v2216, %v2215
        %v2240 = vpack.c.b16 %v2218, %v2217
        %v2241 = vpack.c.b16 %v2220, %v2219
        %v2242 = vpack.c.b16 %v2222, %v2221
        %v2243 = vpack.c.b16 %v2224, %v2223
        %v2244 = vpack.c.b16 %v2226, %v2225
        %v2245 = vpack.c.b16 %v2228, %v2227
        %v2246 = vpack.c.b16 %v2230, %v2229
        %vm2247 = vcmask 64512
        %v2249 = vsel %vm2247, %v2231, 0
        %v2252 = vsel %vm2247, %v2232, 0
        %v2255 = vsel %vm2247, %v2233, 0
        %v2258 = vsel %vm2247, %v2234, 0
        %v2261 = vsel %vm2247, %v2235, 0
        %v2264 = vsel %vm2247, %v2236, 0
        %v2267 = vsel %vm2247, %v2237, 0
        %v2270 = vsel %vm2247, %v2238, 0
        %v2273 = vsel %vm2247, %v2239, 0
        %v2276 = vsel %vm2247, %v2240, 0
        %v2279 = vsel %vm2247, %v2241, 0
        %v2282 = vsel %vm2247, %v2242, 0
        %v2285 = vsel %vm2247, %v2243, 0
        %v2288 = vsel %vm2247, %v2244, 0
        %v2291 = vsel %vm2247, %v2245, 0
        %v2294 = vsel %vm2247, %v2246, 0
        %vm2296 = vcmask 1043456
        %v2298 = vsel %vm2296, %v2166, 0
        %2300 = vmatpush.bf16.msra.mxu0 0
        %2301 = vmatpush.bf16.msra.mxu0 0
        %2302 = vmatpush.bf16.msra.mxu0 0
        %2303 = vmatpush.bf16.msra.mxu0 0
        %2304 = vmatpush.bf16.msra.mxu0 0
        %2305 = vmatpush.bf16.msra.mxu0 0
        %2306 = vmatpush.bf16.msra.mxu0 0
        %2307 = vmatpush.bf16.msra.mxu0 %v2298
        %2308 = vmatmul.bf16.gmra.mxu0 %v2249
        %v2309 = vpop.f32.mrf.mxu0
        %v2310 = vadd.f32 0.0, %v2309
        %v2311 = vpop.f32.mrf.mxu0
        %v2312 = vadd.f32 0.0, %v2311
        %2313 = vmatmul.bf16.gmra.mxu0 %v2252
        %v2314 = vpop.f32.mrf.mxu0
        %v2315 = vadd.f32 0.0, %v2314
        %v2316 = vpop.f32.mrf.mxu0
        %v2317 = vadd.f32 0.0, %v2316
        %2318 = vmatmul.bf16.gmra.mxu0 %v2255
        %v2319 = vpop.f32.mrf.mxu0
        %v2320 = vadd.f32 0.0, %v2319
        %v2321 = vpop.f32.mrf.mxu0
        %v2322 = vadd.f32 0.0, %v2321
        %2323 = vmatmul.bf16.gmra.mxu0 %v2258
        %v2324 = vpop.f32.mrf.mxu0
        %v2325 = vadd.f32 0.0, %v2324
        %v2326 = vpop.f32.mrf.mxu0
        %v2327 = vadd.f32 0.0, %v2326
        %2328 = vmatmul.bf16.gmra.mxu0 %v2261
        %v2329 = vpop.f32.mrf.mxu0
        %v2330 = vadd.f32 0.0, %v2329
        %v2331 = vpop.f32.mrf.mxu0
        %v2332 = vadd.f32 0.0, %v2331
        %2333 = vmatmul.bf16.gmra.mxu0 %v2264
        %v2334 = vpop.f32.mrf.mxu0
        %v2335 = vadd.f32 0.0, %v2334
        %v2336 = vpop.f32.mrf.mxu0
        %v2337 = vadd.f32 0.0, %v2336
        %2338 = vmatmul.bf16.gmra.mxu0 %v2267
        %v2339 = vpop.f32.mrf.mxu0
        %v2340 = vadd.f32 0.0, %v2339
        %v2341 = vpop.f32.mrf.mxu0
        %v2342 = vadd.f32 0.0, %v2341
        %2343 = vmatmul.bf16.gmra.mxu0 %v2270
        %v2344 = vpop.f32.mrf.mxu0
        %v2345 = vadd.f32 0.0, %v2344
        %v2346 = vpop.f32.mrf.mxu0
        %v2347 = vadd.f32 0.0, %v2346
        %2348 = vmatmul.bf16.gmra.mxu0 %v2273
        %v2349 = vpop.f32.mrf.mxu0
        %v2350 = vadd.f32 0.0, %v2349
        %v2351 = vpop.f32.mrf.mxu0
        %v2352 = vadd.f32 0.0, %v2351
        %2353 = vmatmul.bf16.gmra.mxu0 %v2276
        %v2354 = vpop.f32.mrf.mxu0
        %v2355 = vadd.f32 0.0, %v2354
        %v2356 = vpop.f32.mrf.mxu0
        %v2357 = vadd.f32 0.0, %v2356
        %2358 = vmatmul.bf16.gmra.mxu0 %v2279
        %v2359 = vpop.f32.mrf.mxu0
        %v2360 = vadd.f32 0.0, %v2359
        %v2361 = vpop.f32.mrf.mxu0
        %v2362 = vadd.f32 0.0, %v2361
        %2363 = vmatmul.bf16.gmra.mxu0 %v2282
        %v2364 = vpop.f32.mrf.mxu0
        %v2365 = vadd.f32 0.0, %v2364
        %v2366 = vpop.f32.mrf.mxu0
        %v2367 = vadd.f32 0.0, %v2366
        %2368 = vmatmul.bf16.gmra.mxu0 %v2285
        %v2369 = vpop.f32.mrf.mxu0
        %v2370 = vadd.f32 0.0, %v2369
        %v2371 = vpop.f32.mrf.mxu0
        %v2372 = vadd.f32 0.0, %v2371
        %2373 = vmatmul.bf16.gmra.mxu0 %v2288
        %v2374 = vpop.f32.mrf.mxu0
        %v2375 = vadd.f32 0.0, %v2374
        %v2376 = vpop.f32.mrf.mxu0
        %v2377 = vadd.f32 0.0, %v2376
        %2378 = vmatmul.bf16.gmra.mxu0 %v2291
        %v2379 = vpop.f32.mrf.mxu0
        %v2380 = vadd.f32 0.0, %v2379
        %v2381 = vpop.f32.mrf.mxu0
        %v2382 = vadd.f32 0.0, %v2381
        %2383 = vmatmul.bf16.gmra.mxu0 %v2294
        %v2384 = vpop.f32.mrf.mxu0
        %v2385 = vadd.f32 0.0, %v2384
        %v2386 = vpop.f32.mrf.mxu0
        %v2387 = vadd.f32 0.0, %v2386
        %2388 = vdwg.mxu0
        %v2389 = vadd.f32 %v2055, %v2310
        %v2390 = vadd.f32 %v2057, %v2312
        %v2391 = vadd.f32 %v2060, %v2315
        %v2392 = vadd.f32 %v2062, %v2317
        %v2393 = vadd.f32 %v2065, %v2320
        %v2394 = vadd.f32 %v2067, %v2322
        %v2395 = vadd.f32 %v2070, %v2325
        %v2396 = vadd.f32 %v2072, %v2327
        %v2397 = vadd.f32 %v2075, %v2330
        %v2398 = vadd.f32 %v2077, %v2332
        %v2399 = vadd.f32 %v2080, %v2335
        %v2400 = vadd.f32 %v2082, %v2337
        %v2401 = vadd.f32 %v2085, %v2340
        %v2402 = vadd.f32 %v2087, %v2342
        %v2403 = vadd.f32 %v2090, %v2345
        %v2404 = vadd.f32 %v2092, %v2347
        %v2405 = vadd.f32 %v2095, %v2350
        %v2406 = vadd.f32 %v2097, %v2352
        %v2407 = vadd.f32 %v2100, %v2355
        %v2408 = vadd.f32 %v2102, %v2357
        %v2409 = vadd.f32 %v2105, %v2360
        %v2410 = vadd.f32 %v2107, %v2362
        %v2411 = vadd.f32 %v2110, %v2365
        %v2412 = vadd.f32 %v2112, %v2367
        %v2413 = vadd.f32 %v2115, %v2370
        %v2414 = vadd.f32 %v2117, %v2372
        %v2415 = vadd.f32 %v2120, %v2375
        %v2416 = vadd.f32 %v2122, %v2377
        %v2417 = vadd.f32 %v2125, %v2380
        %v2418 = vadd.f32 %v2127, %v2382
        %v2419 = vadd.f32 %v2130, %v2385
        %v2420 = vadd.f32 %v2132, %v2387
        %v2421 = vld [vmem:[%s12] sm:$0x1]
        %v2423 = vperm.slane %v2421, 0
        %v2425 = vadd.f32 %v2389, %v2423
        %v2426 = vadd.f32 %v2390, %v2423
        %v2427 = vadd.f32 %v2391, %v2423
        %v2428 = vadd.f32 %v2392, %v2423
        %v2429 = vadd.f32 %v2393, %v2423
        %v2430 = vadd.f32 %v2394, %v2423
        %v2431 = vadd.f32 %v2395, %v2423
        %v2432 = vadd.f32 %v2396, %v2423
        %v2433 = vadd.f32 %v2397, %v2423
        %v2434 = vadd.f32 %v2398, %v2423
        %v2435 = vadd.f32 %v2399, %v2423
        %v2436 = vadd.f32 %v2400, %v2423
        %v2437 = vadd.f32 %v2401, %v2423
        %v2438 = vadd.f32 %v2402, %v2423
        %v2439 = vadd.f32 %v2403, %v2423
        %v2440 = vadd.f32 %v2404, %v2423
        %v2441 = vadd.f32 %v2405, %v2423
        %v2442 = vadd.f32 %v2406, %v2423
        %v2443 = vadd.f32 %v2407, %v2423
        %v2444 = vadd.f32 %v2408, %v2423
        %v2445 = vadd.f32 %v2409, %v2423
        %v2446 = vadd.f32 %v2410, %v2423
        %v2447 = vadd.f32 %v2411, %v2423
        %v2448 = vadd.f32 %v2412, %v2423
        %v2449 = vadd.f32 %v2413, %v2423
        %v2450 = vadd.f32 %v2414, %v2423
        %v2451 = vadd.f32 %v2415, %v2423
        %v2452 = vadd.f32 %v2416, %v2423
        %v2453 = vadd.f32 %v2417, %v2423
        %v2454 = vadd.f32 %v2418, %v2423
        %v2455 = vadd.f32 %v2419, %v2423
        %v2456 = vadd.f32 %v2420, %v2423
        %vm2457 = vcmp.gt.f32.partialorder %v2425, 0.0
        %vm2458 = vcmp.gt.f32.partialorder %v2426, 0.0
        %vm2459 = vcmp.gt.f32.partialorder %v2427, 0.0
        %vm2460 = vcmp.gt.f32.partialorder %v2428, 0.0
        %vm2461 = vcmp.gt.f32.partialorder %v2429, 0.0
        %vm2462 = vcmp.gt.f32.partialorder %v2430, 0.0
        %vm2463 = vcmp.gt.f32.partialorder %v2431, 0.0
        %vm2464 = vcmp.gt.f32.partialorder %v2432, 0.0
        %vm2465 = vcmp.gt.f32.partialorder %v2433, 0.0
        %vm2466 = vcmp.gt.f32.partialorder %v2434, 0.0
        %vm2467 = vcmp.gt.f32.partialorder %v2435, 0.0
        %vm2468 = vcmp.gt.f32.partialorder %v2436, 0.0
        %vm2469 = vcmp.gt.f32.partialorder %v2437, 0.0
        %vm2470 = vcmp.gt.f32.partialorder %v2438, 0.0
        %vm2471 = vcmp.gt.f32.partialorder %v2439, 0.0
        %vm2472 = vcmp.gt.f32.partialorder %v2440, 0.0
        %vm2473 = vcmp.gt.f32.partialorder %v2441, 0.0
        %vm2474 = vcmp.gt.f32.partialorder %v2442, 0.0
        %vm2475 = vcmp.gt.f32.partialorder %v2443, 0.0
        %vm2476 = vcmp.gt.f32.partialorder %v2444, 0.0
        %vm2477 = vcmp.gt.f32.partialorder %v2445, 0.0
        %vm2478 = vcmp.gt.f32.partialorder %v2446, 0.0
        %vm2479 = vcmp.gt.f32.partialorder %v2447, 0.0
        %vm2480 = vcmp.gt.f32.partialorder %v2448, 0.0
        %vm2481 = vcmp.gt.f32.partialorder %v2449, 0.0
        %vm2482 = vcmp.gt.f32.partialorder %v2450, 0.0
        %vm2483 = vcmp.gt.f32.partialorder %v2451, 0.0
        %vm2484 = vcmp.gt.f32.partialorder %v2452, 0.0
        %vm2485 = vcmp.gt.f32.partialorder %v2453, 0.0
        %vm2486 = vcmp.gt.f32.partialorder %v2454, 0.0
        %vm2487 = vcmp.gt.f32.partialorder %v2455, 0.0
        %vm2488 = vcmp.gt.f32.partialorder %v2456, 0.0
        %v2489 = vmul.f32 %v2425, 0.01
        %v2490 = vmul.f32 %v2426, 0.01
        %v2491 = vmul.f32 %v2427, 0.01
        %v2492 = vmul.f32 %v2428, 0.01
        %v2493 = vmul.f32 %v2429, 0.01
        %v2494 = vmul.f32 %v2430, 0.01
        %v2495 = vmul.f32 %v2431, 0.01
        %v2496 = vmul.f32 %v2432, 0.01
        %v2497 = vmul.f32 %v2433, 0.01
        %v2498 = vmul.f32 %v2434, 0.01
        %v2499 = vmul.f32 %v2435, 0.01
        %v2500 = vmul.f32 %v2436, 0.01
        %v2501 = vmul.f32 %v2437, 0.01
        %v2502 = vmul.f32 %v2438, 0.01
        %v2503 = vmul.f32 %v2439, 0.01
        %v2504 = vmul.f32 %v2440, 0.01
        %v2505 = vmul.f32 %v2441, 0.01
        %v2506 = vmul.f32 %v2442, 0.01
        %v2507 = vmul.f32 %v2443, 0.01
        %v2508 = vmul.f32 %v2444, 0.01
        %v2509 = vmul.f32 %v2445, 0.01
        %v2510 = vmul.f32 %v2446, 0.01
        %v2511 = vmul.f32 %v2447, 0.01
        %v2512 = vmul.f32 %v2448, 0.01
        %v2513 = vmul.f32 %v2449, 0.01
        %v2514 = vmul.f32 %v2450, 0.01
        %v2515 = vmul.f32 %v2451, 0.01
        %v2516 = vmul.f32 %v2452, 0.01
        %v2517 = vmul.f32 %v2453, 0.01
        %v2518 = vmul.f32 %v2454, 0.01
        %v2519 = vmul.f32 %v2455, 0.01
        %v2520 = vmul.f32 %v2456, 0.01
        %v2521 = vsel %vm2457, %v2425, %v2489
        %v2522 = vsel %vm2458, %v2426, %v2490
        %v2523 = vsel %vm2459, %v2427, %v2491
        %v2524 = vsel %vm2460, %v2428, %v2492
        %v2525 = vsel %vm2461, %v2429, %v2493
        %v2526 = vsel %vm2462, %v2430, %v2494
        %v2527 = vsel %vm2463, %v2431, %v2495
        %v2528 = vsel %vm2464, %v2432, %v2496
        %v2529 = vsel %vm2465, %v2433, %v2497
        %v2530 = vsel %vm2466, %v2434, %v2498
        %v2531 = vsel %vm2467, %v2435, %v2499
        %v2532 = vsel %vm2468, %v2436, %v2500
        %v2533 = vsel %vm2469, %v2437, %v2501
        %v2534 = vsel %vm2470, %v2438, %v2502
        %v2535 = vsel %vm2471, %v2439, %v2503
        %v2536 = vsel %vm2472, %v2440, %v2504
        %v2537 = vsel %vm2473, %v2441, %v2505
        %v2538 = vsel %vm2474, %v2442, %v2506
        %v2539 = vsel %vm2475, %v2443, %v2507
        %v2540 = vsel %vm2476, %v2444, %v2508
        %v2541 = vsel %vm2477, %v2445, %v2509
        %v2542 = vsel %vm2478, %v2446, %v2510
        %v2543 = vsel %vm2479, %v2447, %v2511
        %v2544 = vsel %vm2480, %v2448, %v2512
        %v2545 = vsel %vm2481, %v2449, %v2513
        %v2546 = vsel %vm2482, %v2450, %v2514
        %v2547 = vsel %vm2483, %v2451, %v2515
        %v2548 = vsel %vm2484, %v2452, %v2516
        %v2549 = vsel %vm2485, %v2453, %v2517
        %v2550 = vsel %vm2486, %v2454, %v2518
        %v2551 = vsel %vm2487, %v2455, %v2519
        %v2552 = vsel %vm2488, %v2456, %v2520
        %v2553 = vpack.c.bf16 %v2522, %v2521
        %v2554 = vpack.c.bf16 %v2524, %v2523
        %v2555 = vpack.c.bf16 %v2526, %v2525
        %v2556 = vpack.c.bf16 %v2528, %v2527
        %v2557 = vpack.c.bf16 %v2530, %v2529
        %v2558 = vpack.c.bf16 %v2532, %v2531
        %v2559 = vpack.c.bf16 %v2534, %v2533
        %v2560 = vpack.c.bf16 %v2536, %v2535
        %v2561 = vpack.c.bf16 %v2538, %v2537
        %v2562 = vpack.c.bf16 %v2540, %v2539
        %v2563 = vpack.c.bf16 %v2542, %v2541
        %v2564 = vpack.c.bf16 %v2544, %v2543
        %v2565 = vpack.c.bf16 %v2546, %v2545
        %v2566 = vpack.c.bf16 %v2548, %v2547
        %v2567 = vpack.c.bf16 %v2550, %v2549
        %v2568 = vpack.c.bf16 %v2552, %v2551
        %v2569 = vld [vmem:[%s13] sm:$0xf]
        %v2570 = vld [vmem:[%s13 + $0x4] sm:$0xf]
        %v2571 = vld [vmem:[%s13 + $0x8] sm:$0xf]
        %v2572 = vld [vmem:[%s13 + $0xc] sm:$0xf]
        %v2573 = vld [vmem:[%s13 + $0x10] sm:$0xf]
        %v2574 = vld [vmem:[%s13 + $0x14] sm:$0xf]
        %v2575 = vld [vmem:[%s13 + $0x18] sm:$0xf]
        %v2576 = vld [vmem:[%s13 + $0x1c] sm:$0xf]
        %v2577 = vld [vmem:[%s13 + $0x20] sm:$0xf]
        %v2578 = vld [vmem:[%s13 + $0x24] sm:$0xf]
        %v2579 = vld [vmem:[%s13 + $0x28] sm:$0xf]
        %v2580 = vld [vmem:[%s13 + $0x2c] sm:$0xf]
        %v2581 = vld [vmem:[%s13 + $0x30] sm:$0xf]
        %v2582 = vld [vmem:[%s13 + $0x34] sm:$0xf]
        %v2583 = vld [vmem:[%s13 + $0x38] sm:$0xf]
        %v2584 = vld [vmem:[%s13 + $0x3c] sm:$0xf]
        %v2585 = vld [vmem:[%s14] sm:$0x1]
        %v2587 = vperm.slane %v2585, 0
        %v2605 = vunpack.c.l.b16 %v2569
        %v2606 = vunpack.c.l.b16 %v2570
        %v2607 = vunpack.c.l.b16 %v2571
        %v2608 = vunpack.c.l.b16 %v2572
        %v2609 = vunpack.c.l.b16 %v2573
        %v2610 = vunpack.c.l.b16 %v2574
        %v2611 = vunpack.c.l.b16 %v2575
        %v2612 = vunpack.c.l.b16 %v2576
        %v2613 = vunpack.c.l.b16 %v2577
        %v2614 = vunpack.c.l.b16 %v2578
        %v2615 = vunpack.c.l.b16 %v2579
        %v2616 = vunpack.c.l.b16 %v2580
        %v2617 = vunpack.c.l.b16 %v2581
        %v2618 = vunpack.c.l.b16 %v2582
        %v2619 = vunpack.c.l.b16 %v2583
        %v2620 = vunpack.c.l.b16 %v2584
        %v2621 = vpack.c.b16 %v2606, %v2605
        %v2622 = vpack.c.b16 %v2608, %v2607
        %v2623 = vpack.c.b16 %v2610, %v2609
        %v2624 = vpack.c.b16 %v2612, %v2611
        %v2625 = vpack.c.b16 %v2614, %v2613
        %v2626 = vpack.c.b16 %v2616, %v2615
        %v2627 = vpack.c.b16 %v2618, %v2617
        %v2628 = vpack.c.b16 %v2620, %v2619
        %2637 = vmatpush.bf16.msra.mxu0 %v2628
        %2638 = vmatpush.bf16.msra.mxu0 %v2627
        %2639 = vmatpush.bf16.msra.mxu0 %v2626
        %2640 = vmatpush.bf16.msra.mxu0 %v2625
        %2641 = vmatpush.bf16.msra.mxu0 %v2624
        %2642 = vmatpush.bf16.msra.mxu0 %v2623
        %2643 = vmatpush.bf16.msra.mxu0 %v2622
        %2644 = vmatpush.bf16.msra.mxu0 %v2621
        %2645 = vmatmul.bf16.gmra.mxu0 %v2553
        %v2646 = vpop.f32.mrf.mxu0
        %v2647 = vadd.f32 %v2587, %v2646
        %v2648 = vpop.f32.mrf.mxu0
        %v2649 = vadd.f32 %v2587, %v2648
        %2650 = vmatmul.bf16.gmra.mxu0 %v2554
        %v2651 = vpop.f32.mrf.mxu0
        %v2652 = vadd.f32 %v2587, %v2651
        %v2653 = vpop.f32.mrf.mxu0
        %v2654 = vadd.f32 %v2587, %v2653
        %2655 = vmatmul.bf16.gmra.mxu0 %v2555
        %v2656 = vpop.f32.mrf.mxu0
        %v2657 = vadd.f32 %v2587, %v2656
        %v2658 = vpop.f32.mrf.mxu0
        %v2659 = vadd.f32 %v2587, %v2658
        %2660 = vmatmul.bf16.gmra.mxu0 %v2556
        %v2661 = vpop.f32.mrf.mxu0
        %v2662 = vadd.f32 %v2587, %v2661
        %v2663 = vpop.f32.mrf.mxu0
        %v2664 = vadd.f32 %v2587, %v2663
        %2665 = vmatmul.bf16.gmra.mxu0 %v2557
        %v2666 = vpop.f32.mrf.mxu0
        %v2667 = vadd.f32 %v2587, %v2666
        %v2668 = vpop.f32.mrf.mxu0
        %v2669 = vadd.f32 %v2587, %v2668
        %2670 = vmatmul.bf16.gmra.mxu0 %v2558
        %v2671 = vpop.f32.mrf.mxu0
        %v2672 = vadd.f32 %v2587, %v2671
        %v2673 = vpop.f32.mrf.mxu0
        %v2674 = vadd.f32 %v2587, %v2673
        %2675 = vmatmul.bf16.gmra.mxu0 %v2559
        %v2676 = vpop.f32.mrf.mxu0
        %v2677 = vadd.f32 %v2587, %v2676
        %v2678 = vpop.f32.mrf.mxu0
        %v2679 = vadd.f32 %v2587, %v2678
        %2680 = vmatmul.bf16.gmra.mxu0 %v2560
        %v2681 = vpop.f32.mrf.mxu0
        %v2682 = vadd.f32 %v2587, %v2681
        %v2683 = vpop.f32.mrf.mxu0
        %v2684 = vadd.f32 %v2587, %v2683
        %2685 = vmatmul.bf16.gmra.mxu0 %v2561
        %v2686 = vpop.f32.mrf.mxu0
        %v2687 = vadd.f32 %v2587, %v2686
        %v2688 = vpop.f32.mrf.mxu0
        %v2689 = vadd.f32 %v2587, %v2688
        %2690 = vmatmul.bf16.gmra.mxu0 %v2562
        %v2691 = vpop.f32.mrf.mxu0
        %v2692 = vadd.f32 %v2587, %v2691
        %v2693 = vpop.f32.mrf.mxu0
        %v2694 = vadd.f32 %v2587, %v2693
        %2695 = vmatmul.bf16.gmra.mxu0 %v2563
        %v2696 = vpop.f32.mrf.mxu0
        %v2697 = vadd.f32 %v2587, %v2696
        %v2698 = vpop.f32.mrf.mxu0
        %v2699 = vadd.f32 %v2587, %v2698
        %2700 = vmatmul.bf16.gmra.mxu0 %v2564
        %v2701 = vpop.f32.mrf.mxu0
        %v2702 = vadd.f32 %v2587, %v2701
        %v2703 = vpop.f32.mrf.mxu0
        %v2704 = vadd.f32 %v2587, %v2703
        %2705 = vmatmul.bf16.gmra.mxu0 %v2565
        %v2706 = vpop.f32.mrf.mxu0
        %v2707 = vadd.f32 %v2587, %v2706
        %v2708 = vpop.f32.mrf.mxu0
        %v2709 = vadd.f32 %v2587, %v2708
        %2710 = vmatmul.bf16.gmra.mxu0 %v2566
        %v2711 = vpop.f32.mrf.mxu0
        %v2712 = vadd.f32 %v2587, %v2711
        %v2713 = vpop.f32.mrf.mxu0
        %v2714 = vadd.f32 %v2587, %v2713
        %2715 = vmatmul.bf16.gmra.mxu0 %v2567
        %v2716 = vpop.f32.mrf.mxu0
        %v2717 = vadd.f32 %v2587, %v2716
        %v2718 = vpop.f32.mrf.mxu0
        %v2719 = vadd.f32 %v2587, %v2718
        %2720 = vmatmul.bf16.gmra.mxu0 %v2568
        %v2721 = vpop.f32.mrf.mxu0
        %v2722 = vadd.f32 %v2587, %v2721
        %v2723 = vpop.f32.mrf.mxu0
        %v2724 = vadd.f32 %v2587, %v2723
        %2725 = vdwg.mxu0
        %vm2726 = vcmp.gt.f32.partialorder %v2647, 0.0
        %vm2727 = vcmp.gt.f32.partialorder %v2649, 0.0
        %vm2728 = vcmp.gt.f32.partialorder %v2652, 0.0
        %vm2729 = vcmp.gt.f32.partialorder %v2654, 0.0
        %vm2730 = vcmp.gt.f32.partialorder %v2657, 0.0
        %vm2731 = vcmp.gt.f32.partialorder %v2659, 0.0
        %vm2732 = vcmp.gt.f32.partialorder %v2662, 0.0
        %vm2733 = vcmp.gt.f32.partialorder %v2664, 0.0
        %vm2734 = vcmp.gt.f32.partialorder %v2667, 0.0
        %vm2735 = vcmp.gt.f32.partialorder %v2669, 0.0
        %vm2736 = vcmp.gt.f32.partialorder %v2672, 0.0
        %vm2737 = vcmp.gt.f32.partialorder %v2674, 0.0
        %vm2738 = vcmp.gt.f32.partialorder %v2677, 0.0
        %vm2739 = vcmp.gt.f32.partialorder %v2679, 0.0
        %vm2740 = vcmp.gt.f32.partialorder %v2682, 0.0
        %vm2741 = vcmp.gt.f32.partialorder %v2684, 0.0
        %vm2742 = vcmp.gt.f32.partialorder %v2687, 0.0
        %vm2743 = vcmp.gt.f32.partialorder %v2689, 0.0
        %vm2744 = vcmp.gt.f32.partialorder %v2692, 0.0
        %vm2745 = vcmp.gt.f32.partialorder %v2694, 0.0
        %vm2746 = vcmp.gt.f32.partialorder %v2697, 0.0
        %vm2747 = vcmp.gt.f32.partialorder %v2699, 0.0
        %vm2748 = vcmp.gt.f32.partialorder %v2702, 0.0
        %vm2749 = vcmp.gt.f32.partialorder %v2704, 0.0
        %vm2750 = vcmp.gt.f32.partialorder %v2707, 0.0
        %vm2751 = vcmp.gt.f32.partialorder %v2709, 0.0
        %vm2752 = vcmp.gt.f32.partialorder %v2712, 0.0
        %vm2753 = vcmp.gt.f32.partialorder %v2714, 0.0
        %vm2754 = vcmp.gt.f32.partialorder %v2717, 0.0
        %vm2755 = vcmp.gt.f32.partialorder %v2719, 0.0
        %vm2756 = vcmp.gt.f32.partialorder %v2722, 0.0
        %vm2757 = vcmp.gt.f32.partialorder %v2724, 0.0
        %v2758 = vmul.f32 %v2647, 0.01
        %v2759 = vmul.f32 %v2649, 0.01
        %v2760 = vmul.f32 %v2652, 0.01
        %v2761 = vmul.f32 %v2654, 0.01
        %v2762 = vmul.f32 %v2657, 0.01
        %v2763 = vmul.f32 %v2659, 0.01
        %v2764 = vmul.f32 %v2662, 0.01
        %v2765 = vmul.f32 %v2664, 0.01
        %v2766 = vmul.f32 %v2667, 0.01
        %v2767 = vmul.f32 %v2669, 0.01
        %v2768 = vmul.f32 %v2672, 0.01
        %v2769 = vmul.f32 %v2674, 0.01
        %v2770 = vmul.f32 %v2677, 0.01
        %v2771 = vmul.f32 %v2679, 0.01
        %v2772 = vmul.f32 %v2682, 0.01
        %v2773 = vmul.f32 %v2684, 0.01
        %v2774 = vmul.f32 %v2687, 0.01
        %v2775 = vmul.f32 %v2689, 0.01
        %v2776 = vmul.f32 %v2692, 0.01
        %v2777 = vmul.f32 %v2694, 0.01
        %v2778 = vmul.f32 %v2697, 0.01
        %v2779 = vmul.f32 %v2699, 0.01
        %v2780 = vmul.f32 %v2702, 0.01
        %v2781 = vmul.f32 %v2704, 0.01
        %v2782 = vmul.f32 %v2707, 0.01
        %v2783 = vmul.f32 %v2709, 0.01
        %v2784 = vmul.f32 %v2712, 0.01
        %v2785 = vmul.f32 %v2714, 0.01
        %v2786 = vmul.f32 %v2717, 0.01
        %v2787 = vmul.f32 %v2719, 0.01
        %v2788 = vmul.f32 %v2722, 0.01
        %v2789 = vmul.f32 %v2724, 0.01
        %v2790 = vsel %vm2726, %v2647, %v2758
        %v2791 = vsel %vm2727, %v2649, %v2759
        %v2792 = vsel %vm2728, %v2652, %v2760
        %v2793 = vsel %vm2729, %v2654, %v2761
        %v2794 = vsel %vm2730, %v2657, %v2762
        %v2795 = vsel %vm2731, %v2659, %v2763
        %v2796 = vsel %vm2732, %v2662, %v2764
        %v2797 = vsel %vm2733, %v2664, %v2765
        %v2798 = vsel %vm2734, %v2667, %v2766
        %v2799 = vsel %vm2735, %v2669, %v2767
        %v2800 = vsel %vm2736, %v2672, %v2768
        %v2801 = vsel %vm2737, %v2674, %v2769
        %v2802 = vsel %vm2738, %v2677, %v2770
        %v2803 = vsel %vm2739, %v2679, %v2771
        %v2804 = vsel %vm2740, %v2682, %v2772
        %v2805 = vsel %vm2741, %v2684, %v2773
        %v2806 = vsel %vm2742, %v2687, %v2774
        %v2807 = vsel %vm2743, %v2689, %v2775
        %v2808 = vsel %vm2744, %v2692, %v2776
        %v2809 = vsel %vm2745, %v2694, %v2777
        %v2810 = vsel %vm2746, %v2697, %v2778
        %v2811 = vsel %vm2747, %v2699, %v2779
        %v2812 = vsel %vm2748, %v2702, %v2780
        %v2813 = vsel %vm2749, %v2704, %v2781
        %v2814 = vsel %vm2750, %v2707, %v2782
        %v2815 = vsel %vm2751, %v2709, %v2783
        %v2816 = vsel %vm2752, %v2712, %v2784
        %v2817 = vsel %vm2753, %v2714, %v2785
        %v2818 = vsel %vm2754, %v2717, %v2786
        %v2819 = vsel %vm2755, %v2719, %v2787
        %v2820 = vsel %vm2756, %v2722, %v2788
        %v2821 = vsel %vm2757, %v2724, %v2789
        %v2822 = vld [vmem:[%s15] sm:$0x1]
        %v2824 = vperm.slane %v2822, 0
        %v2826 = vmul.f32 %v2790, %v2824
        %v2827 = vmul.f32 %v2791, %v2824
        %v2828 = vmul.f32 %v2792, %v2824
        %v2829 = vmul.f32 %v2793, %v2824
        %v2830 = vmul.f32 %v2794, %v2824
        %v2831 = vmul.f32 %v2795, %v2824
        %v2832 = vmul.f32 %v2796, %v2824
        %v2833 = vmul.f32 %v2797, %v2824
        %v2834 = vmul.f32 %v2798, %v2824
        %v2835 = vmul.f32 %v2799, %v2824
        %v2836 = vmul.f32 %v2800, %v2824
        %v2837 = vmul.f32 %v2801, %v2824
        %v2838 = vmul.f32 %v2802, %v2824
        %v2839 = vmul.f32 %v2803, %v2824
        %v2840 = vmul.f32 %v2804, %v2824
        %v2841 = vmul.f32 %v2805, %v2824
        %v2842 = vmul.f32 %v2806, %v2824
        %v2843 = vmul.f32 %v2807, %v2824
        %v2844 = vmul.f32 %v2808, %v2824
        %v2845 = vmul.f32 %v2809, %v2824
        %v2846 = vmul.f32 %v2810, %v2824
        %v2847 = vmul.f32 %v2811, %v2824
        %v2848 = vmul.f32 %v2812, %v2824
        %v2849 = vmul.f32 %v2813, %v2824
        %v2850 = vmul.f32 %v2814, %v2824
        %v2851 = vmul.f32 %v2815, %v2824
        %v2852 = vmul.f32 %v2816, %v2824
        %v2853 = vmul.f32 %v2817, %v2824
        %v2854 = vmul.f32 %v2818, %v2824
        %v2855 = vmul.f32 %v2819, %v2824
        %v2856 = vmul.f32 %v2820, %v2824
        %v2857 = vmul.f32 %v2821, %v2824
        %vm2858 = vcmask 523264
        %v2859 = vsel %vm2858, %v2826, 0.0
        %2860 = vadd.xlane.f32.xlu0 %v2859
        %v2861 = vpop.xlane.xlu0 %2860
        %v2862 = vsel %vm2858, %v2827, 0.0
        %2863 = vadd.xlane.f32.xlu0 %v2862
        %v2864 = vpop.xlane.xlu0 %2863
        %v2865 = vsel %vm2858, %v2828, 0.0
        %2866 = vadd.xlane.f32.xlu0 %v2865
        %v2867 = vpop.xlane.xlu0 %2866
        %v2868 = vsel %vm2858, %v2829, 0.0
        %2869 = vadd.xlane.f32.xlu0 %v2868
        %v2870 = vpop.xlane.xlu0 %2869
        %v2871 = vsel %vm2858, %v2830, 0.0
        %2872 = vadd.xlane.f32.xlu0 %v2871
        %v2873 = vpop.xlane.xlu0 %2872
        %v2874 = vsel %vm2858, %v2831, 0.0
        %2875 = vadd.xlane.f32.xlu0 %v2874
        %v2876 = vpop.xlane.xlu0 %2875
        %v2877 = vsel %vm2858, %v2832, 0.0
        %2878 = vadd.xlane.f32.xlu0 %v2877
        %v2879 = vpop.xlane.xlu0 %2878
        %v2880 = vsel %vm2858, %v2833, 0.0
        %2881 = vadd.xlane.f32.xlu0 %v2880
        %v2882 = vpop.xlane.xlu0 %2881
        %v2883 = vsel %vm2858, %v2834, 0.0
        %2884 = vadd.xlane.f32.xlu0 %v2883
        %v2885 = vpop.xlane.xlu0 %2884
        %v2886 = vsel %vm2858, %v2835, 0.0
        %2887 = vadd.xlane.f32.xlu0 %v2886
        %v2888 = vpop.xlane.xlu0 %2887
        %v2889 = vsel %vm2858, %v2836, 0.0
        %2890 = vadd.xlane.f32.xlu0 %v2889
        %v2891 = vpop.xlane.xlu0 %2890
        %v2892 = vsel %vm2858, %v2837, 0.0
        %2893 = vadd.xlane.f32.xlu0 %v2892
        %v2894 = vpop.xlane.xlu0 %2893
        %v2895 = vsel %vm2858, %v2838, 0.0
        %2896 = vadd.xlane.f32.xlu0 %v2895
        %v2897 = vpop.xlane.xlu0 %2896
        %v2898 = vsel %vm2858, %v2839, 0.0
        %2899 = vadd.xlane.f32.xlu0 %v2898
        %v2900 = vpop.xlane.xlu0 %2899
        %v2901 = vsel %vm2858, %v2840, 0.0
        %2902 = vadd.xlane.f32.xlu0 %v2901
        %v2903 = vpop.xlane.xlu0 %2902
        %v2904 = vsel %vm2858, %v2841, 0.0
        %2905 = vadd.xlane.f32.xlu0 %v2904
        %v2906 = vpop.xlane.xlu0 %2905
        %v2907 = vsel %vm2858, %v2842, 0.0
        %2908 = vadd.xlane.f32.xlu0 %v2907
        %v2909 = vpop.xlane.xlu0 %2908
        %v2910 = vsel %vm2858, %v2843, 0.0
        %2911 = vadd.xlane.f32.xlu0 %v2910
        %v2912 = vpop.xlane.xlu0 %2911
        %v2913 = vsel %vm2858, %v2844, 0.0
        %2914 = vadd.xlane.f32.xlu0 %v2913
        %v2915 = vpop.xlane.xlu0 %2914
        %v2916 = vsel %vm2858, %v2845, 0.0
        %2917 = vadd.xlane.f32.xlu0 %v2916
        %v2918 = vpop.xlane.xlu0 %2917
        %v2919 = vsel %vm2858, %v2846, 0.0
        %2920 = vadd.xlane.f32.xlu0 %v2919
        %v2921 = vpop.xlane.xlu0 %2920
        %v2922 = vsel %vm2858, %v2847, 0.0
        %2923 = vadd.xlane.f32.xlu0 %v2922
        %v2924 = vpop.xlane.xlu0 %2923
        %v2925 = vsel %vm2858, %v2848, 0.0
        %2926 = vadd.xlane.f32.xlu0 %v2925
        %v2927 = vpop.xlane.xlu0 %2926
        %v2928 = vsel %vm2858, %v2849, 0.0
        %2929 = vadd.xlane.f32.xlu0 %v2928
        %v2930 = vpop.xlane.xlu0 %2929
        %v2931 = vsel %vm2858, %v2850, 0.0
        %2932 = vadd.xlane.f32.xlu0 %v2931
        %v2933 = vpop.xlane.xlu0 %2932
        %v2934 = vsel %vm2858, %v2851, 0.0
        %2935 = vadd.xlane.f32.xlu0 %v2934
        %v2936 = vpop.xlane.xlu0 %2935
        %v2937 = vsel %vm2858, %v2852, 0.0
        %2938 = vadd.xlane.f32.xlu0 %v2937
        %v2939 = vpop.xlane.xlu0 %2938
        %v2940 = vsel %vm2858, %v2853, 0.0
        %2941 = vadd.xlane.f32.xlu0 %v2940
        %v2942 = vpop.xlane.xlu0 %2941
        %v2943 = vsel %vm2858, %v2854, 0.0
        %2944 = vadd.xlane.f32.xlu0 %v2943
        %v2945 = vpop.xlane.xlu0 %2944
        %v2946 = vsel %vm2858, %v2855, 0.0
        %2947 = vadd.xlane.f32.xlu0 %v2946
        %v2948 = vpop.xlane.xlu0 %2947
        %v2949 = vsel %vm2858, %v2856, 0.0
        %2950 = vadd.xlane.f32.xlu0 %v2949
        %v2951 = vpop.xlane.xlu0 %2950
        %v2952 = vsel %vm2858, %v2857, 0.0
        %2953 = vadd.xlane.f32.xlu0 %v2952
        %v2954 = vpop.xlane.xlu0 %2953
        %v2955 = vld [vmem:[#allocation5] sm:$0x1]
        %v2957 = vperm.slane %v2955, 0
        %v2959 = vadd.f32 %v2861, %v2957
        %v2960 = vadd.f32 %v2864, %v2957
        %v2961 = vadd.f32 %v2867, %v2957
        %v2962 = vadd.f32 %v2870, %v2957
        %v2963 = vadd.f32 %v2873, %v2957
        %v2964 = vadd.f32 %v2876, %v2957
        %v2965 = vadd.f32 %v2879, %v2957
        %v2966 = vadd.f32 %v2882, %v2957
        %v2967 = vadd.f32 %v2885, %v2957
        %v2968 = vadd.f32 %v2888, %v2957
        %v2969 = vadd.f32 %v2891, %v2957
        %v2970 = vadd.f32 %v2894, %v2957
        %v2971 = vadd.f32 %v2897, %v2957
        %v2972 = vadd.f32 %v2900, %v2957
        %v2973 = vadd.f32 %v2903, %v2957
        %v2974 = vadd.f32 %v2906, %v2957
        %v2975 = vadd.f32 %v2909, %v2957
        %v2976 = vadd.f32 %v2912, %v2957
        %v2977 = vadd.f32 %v2915, %v2957
        %v2978 = vadd.f32 %v2918, %v2957
        %v2979 = vadd.f32 %v2921, %v2957
        %v2980 = vadd.f32 %v2924, %v2957
        %v2981 = vadd.f32 %v2927, %v2957
        %v2982 = vadd.f32 %v2930, %v2957
        %v2983 = vadd.f32 %v2933, %v2957
        %v2984 = vadd.f32 %v2936, %v2957
        %v2985 = vadd.f32 %v2939, %v2957
        %v2986 = vadd.f32 %v2942, %v2957
        %v2987 = vadd.f32 %v2945, %v2957
        %v2988 = vadd.f32 %v2948, %v2957
        %v2989 = vadd.f32 %v2951, %v2957
        %v2990 = vadd.f32 %v2954, %v2957
        %v2991 = vmax.f32 %v2959, 0.0
        %v2992 = vmax.f32 %v2960, 0.0
        %v2993 = vmax.f32 %v2961, 0.0
        %v2994 = vmax.f32 %v2962, 0.0
        %v2995 = vmax.f32 %v2963, 0.0
        %v2996 = vmax.f32 %v2964, 0.0
        %v2997 = vmax.f32 %v2965, 0.0
        %v2998 = vmax.f32 %v2966, 0.0
        %v2999 = vmax.f32 %v2967, 0.0
        %v3000 = vmax.f32 %v2968, 0.0
        %v3001 = vmax.f32 %v2969, 0.0
        %v3002 = vmax.f32 %v2970, 0.0
        %v3003 = vmax.f32 %v2971, 0.0
        %v3004 = vmax.f32 %v2972, 0.0
        %v3005 = vmax.f32 %v2973, 0.0
        %v3006 = vmax.f32 %v2974, 0.0
        %v3007 = vmax.f32 %v2975, 0.0
        %v3008 = vmax.f32 %v2976, 0.0
        %v3009 = vmax.f32 %v2977, 0.0
        %v3010 = vmax.f32 %v2978, 0.0
        %v3011 = vmax.f32 %v2979, 0.0
        %v3012 = vmax.f32 %v2980, 0.0
        %v3013 = vmax.f32 %v2981, 0.0
        %v3014 = vmax.f32 %v2982, 0.0
        %v3015 = vmax.f32 %v2983, 0.0
        %v3016 = vmax.f32 %v2984, 0.0
        %v3017 = vmax.f32 %v2985, 0.0
        %v3018 = vmax.f32 %v2986, 0.0
        %v3019 = vmax.f32 %v2987, 0.0
        %v3020 = vmax.f32 %v2988, 0.0
        %v3021 = vmax.f32 %v2989, 0.0
        %v3022 = vmax.f32 %v2990, 0.0
        %vm3023 = vcmp.lt.s32.totalorder %v1287, 128
        %vm3024 = vcmp.lt.s32.totalorder %v1288, 128
        %vm3025 = vcmp.lt.s32.totalorder %v1289, 128
        %vm3026 = vcmp.lt.s32.totalorder %v1290, 128
        %vm3027 = vcmp.lt.s32.totalorder %v1291, 128
        %vm3028 = vcmp.lt.s32.totalorder %v1292, 128
        %vm3029 = vcmp.lt.s32.totalorder %v1293, 128
        %vm3030 = vcmp.lt.s32.totalorder %v1294, 128
        %vm3031 = vcmp.lt.s32.totalorder %v1295, 128
        %vm3032 = vcmp.lt.s32.totalorder %v1296, 128
        %vm3033 = vcmp.lt.s32.totalorder %v1297, 128
        %vm3034 = vcmp.lt.s32.totalorder %v1298, 128
        %vm3035 = vcmp.lt.s32.totalorder %v1299, 128
        %vm3036 = vcmp.lt.s32.totalorder %v1300, 128
        %vm3037 = vcmp.lt.s32.totalorder %v1301, 128
        %vm3038 = vcmp.lt.s32.totalorder %v1302, 128
        %vm3039 = vcmp.lt.s32.totalorder %v1303, 128
        %vm3040 = vcmp.lt.s32.totalorder %v1304, 128
        %vm3041 = vcmp.lt.s32.totalorder %v1305, 128
        %vm3042 = vcmp.lt.s32.totalorder %v1306, 128
        %vm3043 = vcmp.lt.s32.totalorder %v1307, 128
        %vm3044 = vcmp.lt.s32.totalorder %v1308, 128
        %vm3045 = vcmp.lt.s32.totalorder %v1309, 128
        %vm3046 = vcmp.lt.s32.totalorder %v1310, 128
        %vm3047 = vcmp.lt.s32.totalorder %v1311, 128
        %vm3048 = vcmp.lt.s32.totalorder %v1312, 128
        %vm3049 = vcmp.lt.s32.totalorder %v1313, 128
        %vm3050 = vcmp.lt.s32.totalorder %v1314, 128
        %vm3051 = vcmp.lt.s32.totalorder %v1315, 128
        %vm3052 = vcmp.lt.s32.totalorder %v1316, 128
        %vm3053 = vcmp.lt.s32.totalorder %v1317, 128
        %vm3054 = vcmp.lt.s32.totalorder %v1318, 128
        %v3055 = vsel %vm3023, %v2991, 0.0
        %v3056 = vsel %vm3024, %v2992, 0.0
        %v3057 = vsel %vm3025, %v2993, 0.0
        %v3058 = vsel %vm3026, %v2994, 0.0
        %v3059 = vsel %vm3027, %v2995, 0.0
        %v3060 = vsel %vm3028, %v2996, 0.0
        %v3061 = vsel %vm3029, %v2997, 0.0
        %v3062 = vsel %vm3030, %v2998, 0.0
        %v3063 = vsel %vm3031, %v2999, 0.0
        %v3064 = vsel %vm3032, %v3000, 0.0
        %v3065 = vsel %vm3033, %v3001, 0.0
        %v3066 = vsel %vm3034, %v3002, 0.0
        %v3067 = vsel %vm3035, %v3003, 0.0
        %v3068 = vsel %vm3036, %v3004, 0.0
        %v3069 = vsel %vm3037, %v3005, 0.0
        %v3070 = vsel %vm3038, %v3006, 0.0
        %v3071 = vsel %vm3039, %v3007, 0.0
        %v3072 = vsel %vm3040, %v3008, 0.0
        %v3073 = vsel %vm3041, %v3009, 0.0
        %v3074 = vsel %vm3042, %v3010, 0.0
        %v3075 = vsel %vm3043, %v3011, 0.0
        %v3076 = vsel %vm3044, %v3012, 0.0
        %v3077 = vsel %vm3045, %v3013, 0.0
        %v3078 = vsel %vm3046, %v3014, 0.0
        %v3079 = vsel %vm3047, %v3015, 0.0
        %v3080 = vsel %vm3048, %v3016, 0.0
        %v3081 = vsel %vm3049, %v3017, 0.0
        %v3082 = vsel %vm3050, %v3018, 0.0
        %v3083 = vsel %vm3051, %v3019, 0.0
        %v3084 = vsel %vm3052, %v3020, 0.0
        %v3085 = vsel %vm3053, %v3021, 0.0
        %v3086 = vsel %vm3054, %v3022, 0.0
        %3088 = vset.pattern.permute.xlu0 0
        %3089 = vperm.xlu0 %3088, %v3055
        %v3090 = vpop.permute.xlu0 %3089
        %3093 = vset.pattern.permute.xlu0 0
        %3094 = vperm.xlu0 %3093, %v3056
        %v3095 = vpop.permute.xlu0 %3094
        %3098 = vset.pattern.permute.xlu0 0
        %3099 = vperm.xlu0 %3098, %v3057
        %v3100 = vpop.permute.xlu0 %3099
        %3103 = vset.pattern.permute.xlu0 0
        %3104 = vperm.xlu0 %3103, %v3058
        %v3105 = vpop.permute.xlu0 %3104
        %3108 = vset.pattern.permute.xlu0 0
        %3109 = vperm.xlu0 %3108, %v3059
        %v3110 = vpop.permute.xlu0 %3109
        %3113 = vset.pattern.permute.xlu0 0
        %3114 = vperm.xlu0 %3113, %v3060
        %v3115 = vpop.permute.xlu0 %3114
        %3118 = vset.pattern.permute.xlu0 0
        %3119 = vperm.xlu0 %3118, %v3061
        %v3120 = vpop.permute.xlu0 %3119
        %3123 = vset.pattern.permute.xlu0 0
        %3124 = vperm.xlu0 %3123, %v3062
        %v3125 = vpop.permute.xlu0 %3124
        %3128 = vset.pattern.permute.xlu0 0
        %3129 = vperm.xlu0 %3128, %v3063
        %v3130 = vpop.permute.xlu0 %3129
        %3133 = vset.pattern.permute.xlu0 0
        %3134 = vperm.xlu0 %3133, %v3064
        %v3135 = vpop.permute.xlu0 %3134
        %3138 = vset.pattern.permute.xlu0 0
        %3139 = vperm.xlu0 %3138, %v3065
        %v3140 = vpop.permute.xlu0 %3139
        %3143 = vset.pattern.permute.xlu0 0
        %3144 = vperm.xlu0 %3143, %v3066
        %v3145 = vpop.permute.xlu0 %3144
        %3148 = vset.pattern.permute.xlu0 0
        %3149 = vperm.xlu0 %3148, %v3067
        %v3150 = vpop.permute.xlu0 %3149
        %3153 = vset.pattern.permute.xlu0 0
        %3154 = vperm.xlu0 %3153, %v3068
        %v3155 = vpop.permute.xlu0 %3154
        %3158 = vset.pattern.permute.xlu0 0
        %3159 = vperm.xlu0 %3158, %v3069
        %v3160 = vpop.permute.xlu0 %3159
        %3163 = vset.pattern.permute.xlu0 0
        %3164 = vperm.xlu0 %3163, %v3070
        %v3165 = vpop.permute.xlu0 %3164
        %3168 = vset.pattern.permute.xlu0 0
        %3169 = vperm.xlu0 %3168, %v3071
        %v3170 = vpop.permute.xlu0 %3169
        %3173 = vset.pattern.permute.xlu0 0
        %3174 = vperm.xlu0 %3173, %v3072
        %v3175 = vpop.permute.xlu0 %3174
        %3178 = vset.pattern.permute.xlu0 0
        %3179 = vperm.xlu0 %3178, %v3073
        %v3180 = vpop.permute.xlu0 %3179
        %3183 = vset.pattern.permute.xlu0 0
        %3184 = vperm.xlu0 %3183, %v3074
        %v3185 = vpop.permute.xlu0 %3184
        %3188 = vset.pattern.permute.xlu0 0
        %3189 = vperm.xlu0 %3188, %v3075
        %v3190 = vpop.permute.xlu0 %3189
        %3193 = vset.pattern.permute.xlu0 0
        %3194 = vperm.xlu0 %3193, %v3076
        %v3195 = vpop.permute.xlu0 %3194
        %3198 = vset.pattern.permute.xlu0 0
        %3199 = vperm.xlu0 %3198, %v3077
        %v3200 = vpop.permute.xlu0 %3199
        %3203 = vset.pattern.permute.xlu0 0
        %3204 = vperm.xlu0 %3203, %v3078
        %v3205 = vpop.permute.xlu0 %3204
        %3208 = vset.pattern.permute.xlu0 0
        %3209 = vperm.xlu0 %3208, %v3079
        %v3210 = vpop.permute.xlu0 %3209
        %3213 = vset.pattern.permute.xlu0 0
        %3214 = vperm.xlu0 %3213, %v3080
        %v3215 = vpop.permute.xlu0 %3214
        %3218 = vset.pattern.permute.xlu0 0
        %3219 = vperm.xlu0 %3218, %v3081
        %v3220 = vpop.permute.xlu0 %3219
        %3223 = vset.pattern.permute.xlu0 0
        %3224 = vperm.xlu0 %3223, %v3082
        %v3225 = vpop.permute.xlu0 %3224
        %3228 = vset.pattern.permute.xlu0 0
        %3229 = vperm.xlu0 %3228, %v3083
        %v3230 = vpop.permute.xlu0 %3229
        %3233 = vset.pattern.permute.xlu0 0
        %3234 = vperm.xlu0 %3233, %v3084
        %v3235 = vpop.permute.xlu0 %3234
        %3238 = vset.pattern.permute.xlu0 0
        %3239 = vperm.xlu0 %3238, %v3085
        %v3240 = vpop.permute.xlu0 %3239
        %3243 = vset.pattern.permute.xlu0 0
        %3244 = vperm.xlu0 %3243, %v3086
        %v3245 = vpop.permute.xlu0 %3244
        %v3247 = vmul.f32 %v3090, %v1733
        %v3248 = vmul.f32 %v3095, %v1735
        %v3249 = vmul.f32 %v3100, %v1738
        %v3250 = vmul.f32 %v3105, %v1740
        %v3251 = vmul.f32 %v3110, %v1743
        %v3252 = vmul.f32 %v3115, %v1745
        %v3253 = vmul.f32 %v3120, %v1748
        %v3254 = vmul.f32 %v3125, %v1750
        %v3255 = vmul.f32 %v3130, %v1753
        %v3256 = vmul.f32 %v3135, %v1755
        %v3257 = vmul.f32 %v3140, %v1758
        %v3258 = vmul.f32 %v3145, %v1760
        %v3259 = vmul.f32 %v3150, %v1763
        %v3260 = vmul.f32 %v3155, %v1765
        %v3261 = vmul.f32 %v3160, %v1768
        %v3262 = vmul.f32 %v3165, %v1770
        %v3263 = vmul.f32 %v3170, %v1773
        %v3264 = vmul.f32 %v3175, %v1775
        %v3265 = vmul.f32 %v3180, %v1778
        %v3266 = vmul.f32 %v3185, %v1780
        %v3267 = vmul.f32 %v3190, %v1783
        %v3268 = vmul.f32 %v3195, %v1785
        %v3269 = vmul.f32 %v3200, %v1788
        %v3270 = vmul.f32 %v3205, %v1790
        %v3271 = vmul.f32 %v3210, %v1793
        %v3272 = vmul.f32 %v3215, %v1795
        %v3273 = vmul.f32 %v3220, %v1798
        %v3274 = vmul.f32 %v3225, %v1800
        %v3275 = vmul.f32 %v3230, %v1803
        %v3276 = vmul.f32 %v3235, %v1805
        %v3277 = vmul.f32 %v3240, %v1808
        %v3278 = vmul.f32 %v3245, %v1810
        %v3279 = vpack.c.bf16 %v3248, %v3247
        %v3280 = vpack.c.bf16 %v3250, %v3249
        %v3281 = vpack.c.bf16 %v3252, %v3251
        %v3282 = vpack.c.bf16 %v3254, %v3253
        %v3283 = vpack.c.bf16 %v3256, %v3255
        %v3284 = vpack.c.bf16 %v3258, %v3257
        %v3285 = vpack.c.bf16 %v3260, %v3259
        %v3286 = vpack.c.bf16 %v3262, %v3261
        %v3287 = vpack.c.bf16 %v3264, %v3263
        %v3288 = vpack.c.bf16 %v3266, %v3265
        %v3289 = vpack.c.bf16 %v3268, %v3267
        %v3290 = vpack.c.bf16 %v3270, %v3269
        %v3291 = vpack.c.bf16 %v3272, %v3271
        %v3292 = vpack.c.bf16 %v3274, %v3273
        %v3293 = vpack.c.bf16 %v3276, %v3275
        %v3294 = vpack.c.bf16 %v3278, %v3277
        %v3295 = vld [vmem:[#allocation6] sm:$0xff]
        %v3296 = vld [vmem:[#allocation6 + $0x8] sm:$0xff]
        %v3297 = vld [vmem:[#allocation6 + $0x10] sm:$0xff]
        %v3298 = vld [vmem:[#allocation6 + $0x18] sm:$0xff]
        %v3299 = vld [vmem:[#allocation6 + $0x20] sm:$0xff]
        %v3300 = vld [vmem:[#allocation6 + $0x28] sm:$0xff]
        %v3301 = vld [vmem:[#allocation6 + $0x30] sm:$0xff]
        %v3302 = vld [vmem:[#allocation6 + $0x38] sm:$0xff]
        %v3303 = vld [vmem:[#allocation6 + $0x40] sm:$0xff]
        %v3304 = vld [vmem:[#allocation6 + $0x48] sm:$0xff]
        %v3305 = vld [vmem:[#allocation6 + $0x50] sm:$0xff]
        %v3306 = vld [vmem:[#allocation6 + $0x58] sm:$0xff]
        %v3307 = vld [vmem:[#allocation6 + $0x60] sm:$0xff]
        %v3308 = vld [vmem:[#allocation6 + $0x68] sm:$0xff]
        %v3309 = vld [vmem:[#allocation6 + $0x70] sm:$0xff]
        %v3310 = vld [vmem:[#allocation6 + $0x78] sm:$0xff]
        %3311 = vmatpush.bf16.msra.mxu0 %v3286
        %3312 = vmatpush.bf16.msra.mxu0 %v3285
        %3313 = vmatpush.bf16.msra.mxu0 %v3284
        %3314 = vmatpush.bf16.msra.mxu0 %v3283
        %3315 = vmatpush.bf16.msra.mxu0 %v3282
        %3316 = vmatpush.bf16.msra.mxu0 %v3281
        %3317 = vmatpush.bf16.msra.mxu0 %v3280
        %3318 = vmatpush.bf16.msra.mxu0 %v3279
        %3319 = vmatmul.bf16.gmra.mxu0 %v1643
        %v3320 = vpop.f32.mrf.mxu0
        %v3321 = vadd.f32 0.0, %v3320
        %v3322 = vpop.f32.mrf.mxu0
        %v3323 = vadd.f32 0.0, %v3322
        %3324 = vmatmul.bf16.gmra.mxu0 %v1645
        %v3325 = vpop.f32.mrf.mxu0
        %v3326 = vadd.f32 0.0, %v3325
        %v3327 = vpop.f32.mrf.mxu0
        %v3328 = vadd.f32 0.0, %v3327
        %3329 = vmatmul.bf16.gmra.mxu0 %v1647
        %v3330 = vpop.f32.mrf.mxu0
        %v3331 = vadd.f32 0.0, %v3330
        %v3332 = vpop.f32.mrf.mxu0
        %v3333 = vadd.f32 0.0, %v3332
        %3334 = vmatmul.bf16.gmra.mxu0 %v1649
        %v3335 = vpop.f32.mrf.mxu0
        %v3336 = vadd.f32 0.0, %v3335
        %v3337 = vpop.f32.mrf.mxu0
        %v3338 = vadd.f32 0.0, %v3337
        %3339 = vmatmul.bf16.gmra.mxu0 %v1651
        %v3340 = vpop.f32.mrf.mxu0
        %v3341 = vadd.f32 0.0, %v3340
        %v3342 = vpop.f32.mrf.mxu0
        %v3343 = vadd.f32 0.0, %v3342
        %3344 = vmatmul.bf16.gmra.mxu0 %v1653
        %v3345 = vpop.f32.mrf.mxu0
        %v3346 = vadd.f32 0.0, %v3345
        %v3347 = vpop.f32.mrf.mxu0
        %v3348 = vadd.f32 0.0, %v3347
        %3349 = vmatmul.bf16.gmra.mxu0 %v1655
        %v3350 = vpop.f32.mrf.mxu0
        %v3351 = vadd.f32 0.0, %v3350
        %v3352 = vpop.f32.mrf.mxu0
        %v3353 = vadd.f32 0.0, %v3352
        %3354 = vmatmul.bf16.gmra.mxu0 %v1657
        %v3355 = vpop.f32.mrf.mxu0
        %v3356 = vadd.f32 0.0, %v3355
        %v3357 = vpop.f32.mrf.mxu0
        %v3358 = vadd.f32 0.0, %v3357
        %3359 = vdwg.mxu0
        %3360 = vmatpush.bf16.msra.mxu0 %v3294
        %3361 = vmatpush.bf16.msra.mxu0 %v3293
        %3362 = vmatpush.bf16.msra.mxu0 %v3292
        %3363 = vmatpush.bf16.msra.mxu0 %v3291
        %3364 = vmatpush.bf16.msra.mxu0 %v3290
        %3365 = vmatpush.bf16.msra.mxu0 %v3289
        %3366 = vmatpush.bf16.msra.mxu0 %v3288
        %3367 = vmatpush.bf16.msra.mxu0 %v3287
        %3368 = vmatmul.bf16.gmra.mxu0 %v1644
        %v3369 = vpop.f32.mrf.mxu0
        %v3370 = vadd.f32 %v3321, %v3369
        %v3371 = vpop.f32.mrf.mxu0
        %v3372 = vadd.f32 %v3323, %v3371
        %3373 = vmatmul.bf16.gmra.mxu0 %v1646
        %v3374 = vpop.f32.mrf.mxu0
        %v3375 = vadd.f32 %v3326, %v3374
        %v3376 = vpop.f32.mrf.mxu0
        %v3377 = vadd.f32 %v3328, %v3376
        %3378 = vmatmul.bf16.gmra.mxu0 %v1648
        %v3379 = vpop.f32.mrf.mxu0
        %v3380 = vadd.f32 %v3331, %v3379
        %v3381 = vpop.f32.mrf.mxu0
        %v3382 = vadd.f32 %v3333, %v3381
        %3383 = vmatmul.bf16.gmra.mxu0 %v1650
        %v3384 = vpop.f32.mrf.mxu0
        %v3385 = vadd.f32 %v3336, %v3384
        %v3386 = vpop.f32.mrf.mxu0
        %v3387 = vadd.f32 %v3338, %v3386
        %3388 = vmatmul.bf16.gmra.mxu0 %v1652
        %v3389 = vpop.f32.mrf.mxu0
        %v3390 = vadd.f32 %v3341, %v3389
        %v3391 = vpop.f32.mrf.mxu0
        %v3392 = vadd.f32 %v3343, %v3391
        %3393 = vmatmul.bf16.gmra.mxu0 %v1654
        %v3394 = vpop.f32.mrf.mxu0
        %v3395 = vadd.f32 %v3346, %v3394
        %v3396 = vpop.f32.mrf.mxu0
        %v3397 = vadd.f32 %v3348, %v3396
        %3398 = vmatmul.bf16.gmra.mxu0 %v1656
        %v3399 = vpop.f32.mrf.mxu0
        %v3400 = vadd.f32 %v3351, %v3399
        %v3401 = vpop.f32.mrf.mxu0
        %v3402 = vadd.f32 %v3353, %v3401
        %3403 = vmatmul.bf16.gmra.mxu0 %v1658
        %v3404 = vpop.f32.mrf.mxu0
        %v3405 = vadd.f32 %v3356, %v3404
        %v3406 = vpop.f32.mrf.mxu0
        %v3407 = vadd.f32 %v3358, %v3406
        %3408 = vdwg.mxu0
        %v3409 = vadd.f32 %v3295, %v3370
        %v3410 = vadd.f32 %v3296, %v3372
        %v3411 = vadd.f32 %v3297, %v3375
        %v3412 = vadd.f32 %v3298, %v3377
        %v3413 = vadd.f32 %v3299, %v3380
        %v3414 = vadd.f32 %v3300, %v3382
        %v3415 = vadd.f32 %v3301, %v3385
        %v3416 = vadd.f32 %v3302, %v3387
        %v3417 = vadd.f32 %v3303, %v3390
        %v3418 = vadd.f32 %v3304, %v3392
        %v3419 = vadd.f32 %v3305, %v3395
        %v3420 = vadd.f32 %v3306, %v3397
        %v3421 = vadd.f32 %v3307, %v3400
        %v3422 = vadd.f32 %v3308, %v3402
        %v3423 = vadd.f32 %v3309, %v3405
        %v3424 = vadd.f32 %v3310, %v3407
        %3425 = vst [vmem:[#allocation6] sm:$0xff] %v3409
        %3426 = vst [vmem:[#allocation6 + $0x8] sm:$0xff] %v3410
        %3427 = vst [vmem:[#allocation6 + $0x10] sm:$0xff] %v3411
        %3428 = vst [vmem:[#allocation6 + $0x18] sm:$0xff] %v3412
        %3429 = vst [vmem:[#allocation6 + $0x20] sm:$0xff] %v3413
        %3430 = vst [vmem:[#allocation6 + $0x28] sm:$0xff] %v3414
        %3431 = vst [vmem:[#allocation6 + $0x30] sm:$0xff] %v3415
        %3432 = vst [vmem:[#allocation6 + $0x38] sm:$0xff] %v3416
        %3433 = vst [vmem:[#allocation6 + $0x40] sm:$0xff] %v3417
        %3434 = vst [vmem:[#allocation6 + $0x48] sm:$0xff] %v3418
        %3435 = vst [vmem:[#allocation6 + $0x50] sm:$0xff] %v3419
        %3436 = vst [vmem:[#allocation6 + $0x58] sm:$0xff] %v3420
        %3437 = vst [vmem:[#allocation6 + $0x60] sm:$0xff] %v3421
        %3438 = vst [vmem:[#allocation6 + $0x68] sm:$0xff] %v3422
        %3439 = vst [vmem:[#allocation6 + $0x70] sm:$0xff] %v3423
        %3440 = vst [vmem:[#allocation6 + $0x78] sm:$0xff] %v3424
        %p3441 = scmp.eq.s32.totalorder %s33, 1
        // Predicated region
        $region101: #{tpu_custom_call.1} parent=95 // pred_check
          %p3442 = pneg %p3441
        $region102: #{tpu_custom_call.1} parent=95 // pred_check_branch
          %3444 = sbr.rel (%p3442) target = $region104
        $region103: #{tpu_custom_call.1} parent=95 // pred_region
          %v3445 = vld [vmem:[#allocation6] sm:$0xff]
          %v3446 = vld [vmem:[#allocation6 + $0x8] sm:$0xff]
          %v3447 = vld [vmem:[#allocation6 + $0x10] sm:$0xff]
          %v3448 = vld [vmem:[#allocation6 + $0x18] sm:$0xff]
          %v3449 = vld [vmem:[#allocation6 + $0x20] sm:$0xff]
          %v3450 = vld [vmem:[#allocation6 + $0x28] sm:$0xff]
          %v3451 = vld [vmem:[#allocation6 + $0x30] sm:$0xff]
          %v3452 = vld [vmem:[#allocation6 + $0x38] sm:$0xff]
          %v3453 = vld [vmem:[#allocation6 + $0x40] sm:$0xff]
          %v3454 = vld [vmem:[#allocation6 + $0x48] sm:$0xff]
          %v3455 = vld [vmem:[#allocation6 + $0x50] sm:$0xff]
          %v3456 = vld [vmem:[#allocation6 + $0x58] sm:$0xff]
          %v3457 = vld [vmem:[#allocation6 + $0x60] sm:$0xff]
          %v3458 = vld [vmem:[#allocation6 + $0x68] sm:$0xff]
          %v3459 = vld [vmem:[#allocation6 + $0x70] sm:$0xff]
          %v3460 = vld [vmem:[#allocation6 + $0x78] sm:$0xff]
          %v3461 = vld [vmem:[#allocation4] sm:$0xff]
          %v3462 = vld [vmem:[#allocation4 + $0x8] sm:$0xff]
          %v3463 = vld [vmem:[#allocation4 + $0x10] sm:$0xff]
          %v3464 = vld [vmem:[#allocation4 + $0x18] sm:$0xff]
          %v3465 = vld [vmem:[#allocation4 + $0x20] sm:$0xff]
          %v3466 = vld [vmem:[#allocation4 + $0x28] sm:$0xff]
          %v3467 = vld [vmem:[#allocation4 + $0x30] sm:$0xff]
          %v3468 = vld [vmem:[#allocation4 + $0x38] sm:$0xff]
          %v3469 = vld [vmem:[#allocation4 + $0x40] sm:$0xff]
          %v3470 = vld [vmem:[#allocation4 + $0x48] sm:$0xff]
          %v3471 = vld [vmem:[#allocation4 + $0x50] sm:$0xff]
          %v3472 = vld [vmem:[#allocation4 + $0x58] sm:$0xff]
          %v3473 = vld [vmem:[#allocation4 + $0x60] sm:$0xff]
          %v3474 = vld [vmem:[#allocation4 + $0x68] sm:$0xff]
          %v3475 = vld [vmem:[#allocation4 + $0x70] sm:$0xff]
          %v3476 = vld [vmem:[#allocation4 + $0x78] sm:$0xff]
          %v3477 = vadd.f32 %v3445, %v3461
          %v3478 = vadd.f32 %v3446, %v3462
          %v3479 = vadd.f32 %v3447, %v3463
          %v3480 = vadd.f32 %v3448, %v3464
          %v3481 = vadd.f32 %v3449, %v3465
          %v3482 = vadd.f32 %v3450, %v3466
          %v3483 = vadd.f32 %v3451, %v3467
          %v3484 = vadd.f32 %v3452, %v3468
          %v3485 = vadd.f32 %v3453, %v3469
          %v3486 = vadd.f32 %v3454, %v3470
          %v3487 = vadd.f32 %v3455, %v3471
          %v3488 = vadd.f32 %v3456, %v3472
          %v3489 = vadd.f32 %v3457, %v3473
          %v3490 = vadd.f32 %v3458, %v3474
          %v3491 = vadd.f32 %v3459, %v3475
          %v3492 = vadd.f32 %v3460, %v3476
          %v3493 = vld [vmem:[%s17] sm:$0x1]
          %v3495 = vperm.slane %v3493, 0
          %v3497 = vmul.f32 %v3477, %v3495
          %v3498 = vmul.f32 %v3478, %v3495
          %v3499 = vmul.f32 %v3479, %v3495
          %v3500 = vmul.f32 %v3480, %v3495
          %v3501 = vmul.f32 %v3481, %v3495
          %v3502 = vmul.f32 %v3482, %v3495
          %v3503 = vmul.f32 %v3483, %v3495
          %v3504 = vmul.f32 %v3484, %v3495
          %v3505 = vmul.f32 %v3485, %v3495
          %v3506 = vmul.f32 %v3486, %v3495
          %v3507 = vmul.f32 %v3487, %v3495
          %v3508 = vmul.f32 %v3488, %v3495
          %v3509 = vmul.f32 %v3489, %v3495
          %v3510 = vmul.f32 %v3490, %v3495
          %v3511 = vmul.f32 %v3491, %v3495
          %v3512 = vmul.f32 %v3492, %v3495
          %v3513 = vld [vmem:[%s18] sm:$0x1]
          %v3515 = vperm.slane %v3513, 0
          %v3517 = vadd.f32 %v3497, %v3515
          %v3518 = vadd.f32 %v3498, %v3515
          %v3519 = vadd.f32 %v3499, %v3515
          %v3520 = vadd.f32 %v3500, %v3515
          %v3521 = vadd.f32 %v3501, %v3515
          %v3522 = vadd.f32 %v3502, %v3515
          %v3523 = vadd.f32 %v3503, %v3515
          %v3524 = vadd.f32 %v3504, %v3515
          %v3525 = vadd.f32 %v3505, %v3515
          %v3526 = vadd.f32 %v3506, %v3515
          %v3527 = vadd.f32 %v3507, %v3515
          %v3528 = vadd.f32 %v3508, %v3515
          %v3529 = vadd.f32 %v3509, %v3515
          %v3530 = vadd.f32 %v3510, %v3515
          %v3531 = vadd.f32 %v3511, %v3515
          %v3532 = vadd.f32 %v3512, %v3515
          %v3533 = vmax.f32 %v3517, 0.0
          %v3534 = vmax.f32 %v3518, 0.0
          %v3535 = vmax.f32 %v3519, 0.0
          %v3536 = vmax.f32 %v3520, 0.0
          %v3537 = vmax.f32 %v3521, 0.0
          %v3538 = vmax.f32 %v3522, 0.0
          %v3539 = vmax.f32 %v3523, 0.0
          %v3540 = vmax.f32 %v3524, 0.0
          %v3541 = vmax.f32 %v3525, 0.0
          %v3542 = vmax.f32 %v3526, 0.0
          %v3543 = vmax.f32 %v3527, 0.0
          %v3544 = vmax.f32 %v3528, 0.0
          %v3545 = vmax.f32 %v3529, 0.0
          %v3546 = vmax.f32 %v3530, 0.0
          %v3547 = vmax.f32 %v3531, 0.0
          %v3548 = vmax.f32 %v3532, 0.0
          %3549 = vst [vmem:[#allocation6] sm:$0xff] %v3533
          %3550 = vst [vmem:[#allocation6 + $0x8] sm:$0xff] %v3534
          %3551 = vst [vmem:[#allocation6 + $0x10] sm:$0xff] %v3535
          %3552 = vst [vmem:[#allocation6 + $0x18] sm:$0xff] %v3536
          %3553 = vst [vmem:[#allocation6 + $0x20] sm:$0xff] %v3537
          %3554 = vst [vmem:[#allocation6 + $0x28] sm:$0xff] %v3538
          %3555 = vst [vmem:[#allocation6 + $0x30] sm:$0xff] %v3539
          %3556 = vst [vmem:[#allocation6 + $0x38] sm:$0xff] %v3540
          %3557 = vst [vmem:[#allocation6 + $0x40] sm:$0xff] %v3541
          %3558 = vst [vmem:[#allocation6 + $0x48] sm:$0xff] %v3542
          %3559 = vst [vmem:[#allocation6 + $0x50] sm:$0xff] %v3543
          %3560 = vst [vmem:[#allocation6 + $0x58] sm:$0xff] %v3544
          %3561 = vst [vmem:[#allocation6 + $0x60] sm:$0xff] %v3545
          %3562 = vst [vmem:[#allocation6 + $0x68] sm:$0xff] %v3546
          %3563 = vst [vmem:[#allocation6 + $0x70] sm:$0xff] %v3547
          %3564 = vst [vmem:[#allocation6 + $0x78] sm:$0xff] %v3548
        $region104: #{tpu_custom_call.1} parent=95 // pred_fallthru
          _
        // Predicated region
        $region105: #{tpu_custom_call.1} parent=95 // pred_check
          %p3565 = pneg %p465
        $region106: #{tpu_custom_call.1} parent=95 // pred_check_branch
          %3567 = sbr.rel (%p3565) target = $region108
        $region107: #{tpu_custom_call.1} parent=95 // pred_region
          %3569 = vsyncadd [#allocation7], 0
          %s3570 = sshll.u32 [#allocation6], 4
          %s3571 = int_to_ptr.vmem [resolvable:$true] %s3570
          %s3572 = sshll.u32 %s19, 4
          %s3573 = int_to_ptr.hbm [resolvable:$true] %s3572
          %3578 = dma.vmem_to_hbm [thread:$0]  %s3571, 2048, %s3573, [#allocation7], 128, 128, 8
        $region108: #{tpu_custom_call.1} parent=95 // pred_fallthru
          _
        // Predicated region
        $region109: #{tpu_custom_call.1} parent=95 // pred_check
          %p3579 = pneg %p465
        $region110: #{tpu_custom_call.1} parent=95 // pred_check_branch
          %3581 = sbr.rel (%p3579) target = $region112
        $region111: #{tpu_custom_call.1} parent=95 // pred_region
          %3583 = dma.done [#allocation7], 2048
        $region112: #{tpu_custom_call.1} parent=95 // pred_fallthru
          _
      $region96: #{tpu_custom_call.1} parent=5 // pred_fallthru
        _
      %p3584 = scmp.le.s32.totalorder 2, %s28
      // Predicated region
      $region113: #{tpu_custom_call.1} parent=5 // pred_check
        %p3585 = pneg %p3584
      $region114: #{tpu_custom_call.1} parent=5 // pred_check_branch
        %3587 = sbr.rel (%p3585) target = $region116
      $region115: #{tpu_custom_call.1} parent=5 // pred_region
        %s3588 = ssub.s32 %s28, 2
      $region116: #{tpu_custom_call.1} parent=5 // pred_fallthru
        _
    $region6: #{tpu_custom_call.1} parent=1 // loop_footer
      %s32 = sadd.s32 1, %s28
    $region7: #{tpu_custom_call.1} parent=1 // loop_footer_branch
      %27 = sbr.rel target = $region3
    $region8: #{tpu_custom_call.1} parent=1 // loop_exit
      _
    %3589 = vsyncpa [#allocation7], 1
    %s3590 = scalar_lea.sflag [#allocation7], 1
    %3591 = vsyncpa %s3590, 1

</llo_original>
